<compile_context>
chip_gen: v7x
topology: tpu7x:2x2x1
jax: 0.10.0
libtpu: 0.0.40
codegen_flags: <defaults>
</compile_context>

<pallas_src>
import jax
import jax.numpy as jnp
from jax.experimental import pallas as pl
from jax.experimental.pallas import tpu as pltpu


def _mlp_kernel(x_ref,
                w1_ref, b1_ref,
                w2_ref, b2_ref,
                w3_ref, b3_ref,
                w4_ref, b4_ref,
                out_ref):
    # hidden1 + ReLU   (bf16 MXU matmul, f32 accumulate)
    h1 = jnp.dot(x_ref[...], w1_ref[...], preferred_element_type=jnp.float32)
    h1 = jnp.maximum(h1 + b1_ref[...], 0.0).astype(jnp.bfloat16)
    # hidden2 + ReLU
    h2 = jnp.dot(h1, w2_ref[...], preferred_element_type=jnp.float32)
    h2 = jnp.maximum(h2 + b2_ref[...], 0.0).astype(jnp.bfloat16)
    # hidden3 + ReLU (keep f32 for the final reduction)
    h3 = jnp.dot(h2, w3_ref[...], preferred_element_type=jnp.float32)
    h3 = jnp.maximum(h3 + b3_ref[...], 0.0)
    # predict: 512 -> 1 as elementwise mul + lane reduce (VPU/XLU, not MXU)
    y = jnp.sum(h3 * w4_ref[...], axis=-1, keepdims=True) + b4_ref[...]
    out_ref[...] = y.astype(out_ref.dtype)


def _round_up(n, m):
    return ((n + m - 1) // m) * m


def mlp_regression_forward(x, params, *, max_batch_tile=256):
    """x: (B, 256) f32.  Returns (B,) f32, matching output[:, 0] in PyTorch."""
    (w1, b1, w2, b2, w3, b3, w4, b4) = params
    B, F = x.shape
    assert F == 256, F

    # Batch tile: multiple of 8 (f32 sublane), up to 256 (MXU rows on v6e/v7x).
    TB = min(max_batch_tile, _round_up(B, 8))
    Bp = _round_up(B, TB)
    if Bp != B:
        x = jnp.pad(x, ((0, Bp - B), (0, 0)))

    # bf16 matmul operands (MXU-native, half the weight HBM traffic);
    # biases and the tiny final-layer weight row stay f32.
    xb = x.astype(jnp.bfloat16)
    w1b = w1.astype(jnp.bfloat16)
    w2b = w2.astype(jnp.bfloat16)
    w3b = w3.astype(jnp.bfloat16)
    w4_row = w4.reshape(1, 512)          # (512, 1) -> broadcastable (1, 512) row
    b4_2d = b4.reshape(1, 1)

    const = lambda shape: pl.BlockSpec(shape, lambda i: (0, 0))

    out2d = pl.pallas_call(
        _mlp_kernel,
        out_shape=jax.ShapeDtypeStruct((Bp, 1), jnp.float32),
        grid=(Bp // TB,),
        in_specs=[
            pl.BlockSpec((TB, 256), lambda i: (i, 0)),     # x: tiled over batch
            const(w1b.shape), const(b1.shape),             # weights/biases: VMEM-resident
            const(w2b.shape), const(b2.shape),
            const(w3b.shape), const(b3.shape),
            const(w4_row.shape), const(b4_2d.shape),
        ],
        out_specs=pl.BlockSpec((TB, 1), lambda i: (i, 0)),
        compiler_params=pltpu.CompilerParams(
            dimension_semantics=("parallel",),             # v7x: 2 TCs share the batch grid
            vmem_limit_bytes=32 << 20,
        ),
    )(xb, w1b, b1, w2b, b2, w3b, b3, w4_row, b4_2d)

    # PyTorch: output[:, 0]  -> shape (B,)
    return out2d[:B, 0]


def init_params(key):
    """Deterministic synthetic parameters with the module's shapes.

    PyTorch nn.Linear(in, out) has weight (out, in); we store the transpose
    (in, out) so the kernel does x @ W + b.  Biases are (1, out) f32.
    """
    dims = [(256, 1024), (1024, 1024), (1024, 512), (512, 1)]
    params = []
    for i, (fin, fout) in enumerate(dims):
        kw, kb, key = jax.random.split(jax.random.fold_in(key, i), 3)
        bound = 1.0 / jnp.sqrt(fin)
        w = jax.random.uniform(kw, (fin, fout), jnp.float32, -bound, bound)
        b = jax.random.uniform(kb, (1, fout), jnp.float32, -bound, bound)
        params += [w, b]
    return tuple(params)


def reference_forward(x, params):
    """Pure-f32 reference matching the PyTorch module's math."""
    (w1, b1, w2, b2, w3, b3, w4, b4) = params
    h = jnp.maximum(x @ w1 + b1, 0.0)
    h = jnp.maximum(h @ w2 + b2, 0.0)
    h = jnp.maximum(h @ w3 + b3, 0.0)
    y = h @ w4 + b4
    return y[:, 0]


if __name__ == "__main__":
    key = jax.random.PRNGKey(0)
    kx, kp = jax.random.split(key)
    params = init_params(kp)

    # Case 1: tiny batch (single grid step).
    B1 = 8
    x1 = jax.random.normal(kx, (B1, 256), dtype=jnp.float32)
    out1 = jax.block_until_ready(mlp_regression_forward(x1, params))
    ref1 = reference_forward(x1, params)
    assert out1.shape == (B1,), out1.shape
    # bf16 matmul inputs (f32 accumulation) -> loosened tolerance vs f32 reference.
    assert jnp.allclose(out1, ref1, atol=2e-2, rtol=2e-2), (out1, ref1)

    # Case 2: multi-step batch grid with padding (B=40, TB=16 -> grid=(3,)).
    B2 = 40
    x2 = jax.random.normal(jax.random.fold_in(kx, 1), (B2, 256), dtype=jnp.float32)
    out2 = jax.block_until_ready(
        mlp_regression_forward(x2, params, max_batch_tile=16))
    ref2 = reference_forward(x2, params)
    assert out2.shape == (B2,), out2.shape
    assert jnp.allclose(out2, ref2, atol=2e-2, rtol=2e-2), (out2, ref2)

    print("KERNEL_OK")
</pallas_src>

<mosaic_0001>
module attributes {stable_mosaic.version = 11 : i64} {
  func.func @_mlp_kernel(%arg0: i32, %arg1: memref<8x256xbf16, #tpu.memory_space<vmem>>, %arg2: memref<256x1024xbf16, #tpu.memory_space<vmem>>, %arg3: memref<1x1024xf32, #tpu.memory_space<vmem>>, %arg4: memref<1024x1024xbf16, #tpu.memory_space<vmem>>, %arg5: memref<1x1024xf32, #tpu.memory_space<vmem>>, %arg6: memref<1024x512xbf16, #tpu.memory_space<vmem>>, %arg7: memref<1x512xf32, #tpu.memory_space<vmem>>, %arg8: memref<1x512xf32, #tpu.memory_space<vmem>>, %arg9: memref<1x1xf32, #tpu.memory_space<vmem>>, %arg10: memref<8x1xf32, #tpu.memory_space<vmem>>) attributes {dimension_semantics = [#tpu.dimension_semantics<parallel>], iteration_bounds = array<i64: 1>, scalar_prefetch = 0 : i64, scratch_operands = 0 : i64, tpu.core_type = #tpu.core_type<tc>, window_params = [{transform_indices = @transform_0, window_bounds = array<i64: 8, 256>}, {pipeline_mode = #tpu.pipeline_mode<synchronous>, transform_indices = @transform_1, window_bounds = array<i64: 256, 1024>}, {pipeline_mode = #tpu.pipeline_mode<synchronous>, transform_indices = @transform_2, window_bounds = array<i64: 1, 1024>}, {pipeline_mode = #tpu.pipeline_mode<synchronous>, transform_indices = @transform_3, window_bounds = array<i64: 1024, 1024>}, {pipeline_mode = #tpu.pipeline_mode<synchronous>, transform_indices = @transform_4, window_bounds = array<i64: 1, 1024>}, {pipeline_mode = #tpu.pipeline_mode<synchronous>, transform_indices = @transform_5, window_bounds = array<i64: 1024, 512>}, {pipeline_mode = #tpu.pipeline_mode<synchronous>, transform_indices = @transform_6, window_bounds = array<i64: 1, 512>}, {pipeline_mode = #tpu.pipeline_mode<synchronous>, transform_indices = @transform_7, window_bounds = array<i64: 1, 512>}, {pipeline_mode = #tpu.pipeline_mode<synchronous>, transform_indices = @transform_8, window_bounds = array<i64: 1, 1>}, {transform_indices = @transform_9, window_bounds = array<i64: 8, 1>}]} {
    %c0 = arith.constant 0 : index
    %c0_0 = arith.constant 0 : index
    %0 = vector.load %arg1[%c0, %c0_0] : memref<8x256xbf16, #tpu.memory_space<vmem>>, vector<8x256xbf16>
    %c0_1 = arith.constant 0 : index
    %c0_2 = arith.constant 0 : index
    %1 = vector.load %arg2[%c0_1, %c0_2] : memref<256x1024xbf16, #tpu.memory_space<vmem>>, vector<256x1024xbf16>
    %cst = arith.constant dense<0.000000e+00> : vector<8x1024xf32>
    %2 = tpu.matmul %0, %1, %cst {dimension_numbers = #tpu.dot_dimension_numbers<[1], [0], [0], [1], [0, 0, 1, 1], [], []>} : vector<8x256xbf16>, vector<256x1024xbf16>, vector<8x1024xf32> -> vector<8x1024xf32>
    %c0_3 = arith.constant 0 : index
    %c0_4 = arith.constant 0 : index
    %3 = vector.load %arg3[%c0_3, %c0_4] : memref<1x1024xf32, #tpu.memory_space<vmem>>, vector<1x1024xf32>
    %4 = vector.broadcast %3 : vector<1x1024xf32> to vector<8x1024xf32>
    %5 = arith.addf %2, %4 : vector<8x1024xf32>
    %cst_5 = arith.constant 0.000000e+00 : f32
    %6 = vector.broadcast %cst_5 : f32 to vector<8x1024xf32>
    %7 = arith.maximumf %5, %6 : vector<8x1024xf32>
    %8 = arith.truncf %7 : vector<8x1024xf32> to vector<8x1024xbf16>
    %c0_6 = arith.constant 0 : index
    %c0_7 = arith.constant 0 : index
    %9 = vector.load %arg4[%c0_6, %c0_7] : memref<1024x1024xbf16, #tpu.memory_space<vmem>>, vector<1024x1024xbf16>
    %cst_8 = arith.constant dense<0.000000e+00> : vector<8x1024xf32>
    %10 = tpu.matmul %8, %9, %cst_8 {dimension_numbers = #tpu.dot_dimension_numbers<[1], [0], [0], [1], [0, 0, 1, 1], [], []>} : vector<8x1024xbf16>, vector<1024x1024xbf16>, vector<8x1024xf32> -> vector<8x1024xf32>
    %c0_9 = arith.constant 0 : index
    %c0_10 = arith.constant 0 : index
    %11 = vector.load %arg5[%c0_9, %c0_10] : memref<1x1024xf32, #tpu.memory_space<vmem>>, vector<1x1024xf32>
    %12 = vector.broadcast %11 : vector<1x1024xf32> to vector<8x1024xf32>
    %13 = arith.addf %10, %12 : vector<8x1024xf32>
    %cst_11 = arith.constant 0.000000e+00 : f32
    %14 = vector.broadcast %cst_11 : f32 to vector<8x1024xf32>
    %15 = arith.maximumf %13, %14 : vector<8x1024xf32>
    %16 = arith.truncf %15 : vector<8x1024xf32> to vector<8x1024xbf16>
    %c0_12 = arith.constant 0 : index
    %c0_13 = arith.constant 0 : index
    %17 = vector.load %arg6[%c0_12, %c0_13] : memref<1024x512xbf16, #tpu.memory_space<vmem>>, vector<1024x512xbf16>
    %cst_14 = arith.constant dense<0.000000e+00> : vector<8x512xf32>
    %18 = tpu.matmul %16, %17, %cst_14 {dimension_numbers = #tpu.dot_dimension_numbers<[1], [0], [0], [1], [0, 0, 1, 1], [], []>} : vector<8x1024xbf16>, vector<1024x512xbf16>, vector<8x512xf32> -> vector<8x512xf32>
    %c0_15 = arith.constant 0 : index
    %c0_16 = arith.constant 0 : index
    %19 = vector.load %arg7[%c0_15, %c0_16] : memref<1x512xf32, #tpu.memory_space<vmem>>, vector<1x512xf32>
    %20 = vector.broadcast %19 : vector<1x512xf32> to vector<8x512xf32>
    %21 = arith.addf %18, %20 : vector<8x512xf32>
    %cst_17 = arith.constant 0.000000e+00 : f32
    %22 = vector.broadcast %cst_17 : f32 to vector<8x512xf32>
    %23 = arith.maximumf %21, %22 : vector<8x512xf32>
    %c0_18 = arith.constant 0 : index
    %c0_19 = arith.constant 0 : index
    %24 = vector.load %arg8[%c0_18, %c0_19] : memref<1x512xf32, #tpu.memory_space<vmem>>, vector<1x512xf32>
    %25 = vector.broadcast %24 : vector<1x512xf32> to vector<8x512xf32>
    %26 = arith.mulf %23, %25 : vector<8x512xf32>
    %cst_20 = arith.constant dense<0.000000e+00> : vector<8xf32>
    %27 = vector.multi_reduction <add>, %26, %cst_20 [1] : vector<8x512xf32> to vector<8xf32>
    %28 = vector.shape_cast %27 : vector<8xf32> to vector<8x1xf32>
    %c0_21 = arith.constant 0 : index
    %c0_22 = arith.constant 0 : index
    %29 = vector.load %arg9[%c0_21, %c0_22] : memref<1x1xf32, #tpu.memory_space<vmem>>, vector<1x1xf32>
    %30 = vector.broadcast %29 : vector<1x1xf32> to vector<8x1xf32>
    %31 = arith.addf %28, %30 : vector<8x1xf32>
    %c0_23 = arith.constant 0 : index
    %c0_24 = arith.constant 0 : index
    %32 = vector.load %arg10[%c0_23, %c0_24] : memref<8x1xf32, #tpu.memory_space<vmem>>, vector<8x1xf32>
    tpu.vector_store %arg10[%c0_23, %c0_24], %31 {strides = array<i32>} : memref<8x1xf32, #tpu.memory_space<vmem>>, vector<8x1xf32>,
    return
  }
  func.func @transform_0(%arg0: i32) -> (i32, i32) {
    %c0_i32 = arith.constant 0 : i32
    %c0_i32_0 = arith.constant 0 : i32
    return %arg0, %c0_i32 : i32, i32
  }
  func.func @transform_1(%arg0: i32) -> (i32, i32) {
    %c0_i32 = arith.constant 0 : i32
    %c0_i32_0 = arith.constant 0 : i32
    %c0_i32_1 = arith.constant 0 : i32
    return %c0_i32, %c0_i32_0 : i32, i32
  }
  func.func @transform_2(%arg0: i32) -> (i32, i32) {
    %c0_i32 = arith.constant 0 : i32
    %c0_i32_0 = arith.constant 0 : i32
    %c0_i32_1 = arith.constant 0 : i32
    return %c0_i32, %c0_i32_0 : i32, i32
  }
  func.func @transform_3(%arg0: i32) -> (i32, i32) {
    %c0_i32 = arith.constant 0 : i32
    %c0_i32_0 = arith.constant 0 : i32
    %c0_i32_1 = arith.constant 0 : i32
    return %c0_i32, %c0_i32_0 : i32, i32
  }
  func.func @transform_4(%arg0: i32) -> (i32, i32) {
    %c0_i32 = arith.constant 0 : i32
    %c0_i32_0 = arith.constant 0 : i32
    %c0_i32_1 = arith.constant 0 : i32
    return %c0_i32, %c0_i32_0 : i32, i32
  }
  func.func @transform_5(%arg0: i32) -> (i32, i32) {
    %c0_i32 = arith.constant 0 : i32
    %c0_i32_0 = arith.constant 0 : i32
    %c0_i32_1 = arith.constant 0 : i32
    return %c0_i32, %c0_i32_0 : i32, i32
  }
  func.func @transform_6(%arg0: i32) -> (i32, i32) {
    %c0_i32 = arith.constant 0 : i32
    %c0_i32_0 = arith.constant 0 : i32
    %c0_i32_1 = arith.constant 0 : i32
    return %c0_i32, %c0_i32_0 : i32, i32
  }
  func.func @transform_7(%arg0: i32) -> (i32, i32) {
    %c0_i32 = arith.constant 0 : i32
    %c0_i32_0 = arith.constant 0 : i32
    %c0_i32_1 = arith.constant 0 : i32
    return %c0_i32, %c0_i32_0 : i32, i32
  }
  func.func @transform_8(%arg0: i32) -> (i32, i32) {
    %c0_i32 = arith.constant 0 : i32
    %c0_i32_0 = arith.constant 0 : i32
    %c0_i32_1 = arith.constant 0 : i32
    return %c0_i32, %c0_i32_0 : i32, i32
  }
  func.func @transform_9(%arg0: i32) -> (i32, i32) {
    %c0_i32 = arith.constant 0 : i32
    %c0_i32_0 = arith.constant 0 : i32
    return %arg0, %c0_i32 : i32, i32
  }
}

</mosaic_0001>

<llo_original>
// kernel: tpu_custom_call.1
$region0: #{tpu_custom_call.1}
  #allocation0 [shape = 'u32[]', space=smem, size = 0x4, offset = 0x4, fixed_abs, tag = 'smem constant byte address 0x4 - core index']
  #allocation1 [shape = 'u32[144,128]{1,0:T(1,128)}', space=vmem, size = 0x12000, scoped, tag = 'internal scratch']
  #allocation2 [shape = 'f32[1,1]{1,0:T(1,128)S(1)}', space=vmem, size = 0x200, scoped, tag = 'scoped memory for tpu_custom_call.1']
  %s0 = inlined_call_operand.hbm [shape: bf16[8,256], index: 0, kind: input, shape index: {}]
  %s1 = inlined_call_operand.hbm [shape: bf16[256,1024], index: 1, kind: input, shape index: {}]
  %s2 = inlined_call_operand.hbm [shape: f32[1,1024], index: 2, kind: input, shape index: {}]
  %s3 = inlined_call_operand.hbm [shape: bf16[1024,1024], index: 3, kind: input, shape index: {}]
  %s4 = inlined_call_operand.hbm [shape: f32[1,1024], index: 4, kind: input, shape index: {}]
  %s5 = inlined_call_operand.hbm [shape: bf16[1024,512], index: 5, kind: input, shape index: {}]
  %s6 = inlined_call_operand.hbm [shape: f32[1,512], index: 6, kind: input, shape index: {}]
  %s7 = inlined_call_operand.hbm [shape: f32[1,512], index: 7, kind: input, shape index: {}]
  %s8 = inlined_call_operand.<no memory space> [shape: f32[1,1], index: 8, kind: input, shape index: {}]
  %s9 = inlined_call_operand.vmem [shape: f32[8,1], index: 9, kind: output, shape index: {}]
  %s10 = sld [smem:[#allocation0]]
  $region78: #{tpu_custom_call.1} parent=0
    _
  %s12 = ssub.s32 1, %s10
  %s13 = scalar_select 0, %s12, %s10
  %v14 = vstv %s8
  %15 = vst [vmem:[#allocation2] sm:$0x1] %v14
  $region1: #{tpu_custom_call.1} parent=0
    #allocation3 [shape = 'u8[4096]{0}', space=vmem, size = 0x1000, scoped, tag = 'input window, operand 0, single buffered']
    #allocation4 [shape = 's32[1]{0}', space=sflag, size = 0x4, scoped, tag = 'scoped memory for tpu_custom_call.1']
    #allocation5 [shape = 'u8[524288]{0}', space=vmem, size = 0x80000, scoped, tag = 'input window, operand 1, single buffered']
    #allocation6 [shape = 's32[1]{0}', space=sflag, size = 0x4, scoped, tag = 'scoped memory for tpu_custom_call.1']
    #allocation7 [shape = 'u8[4096]{0}', space=vmem, size = 0x1000, scoped, tag = 'input window, operand 2, single buffered']
    #allocation8 [shape = 'u8[2097152]{0}', space=vmem, size = 0x200000, scoped, tag = 'input window, operand 3, single buffered']
    #allocation9 [shape = 's32[1]{0}', space=sflag, size = 0x4, scoped, tag = 'scoped memory for tpu_custom_call.1']
    #allocation10 [shape = 'u8[4096]{0}', space=vmem, size = 0x1000, scoped, tag = 'input window, operand 4, single buffered']
    #allocation11 [shape = 'u8[1048576]{0}', space=vmem, size = 0x100000, scoped, tag = 'input window, operand 5, single buffered']
    #allocation12 [shape = 's32[1]{0}', space=sflag, size = 0x4, scoped, tag = 'scoped memory for tpu_custom_call.1']
    #allocation13 [shape = 'u8[2048]{0}', space=vmem, size = 0x800, scoped, tag = 'input window, operand 6, single buffered']
    #allocation14 [shape = 'u8[2048]{0}', space=vmem, size = 0x800, scoped, tag = 'input window, operand 7, single buffered']
    #allocation15 [shape = 's32[1]{0}', space=sflag, size = 0x4, scoped, tag = 'scoped memory for tpu_custom_call.1']
    %16 = vsyncpa [#allocation4], 0
    %17 = vsyncpa [#allocation6], 0
    %18 = vsyncpa [#allocation9], 0
    %19 = vsyncpa [#allocation12], 0
    %20 = vsyncpa [#allocation15], 0
    // Predicated region
    $region2: #{tpu_custom_call.1} parent=1 // pred_check
      _
    $region3: #{tpu_custom_call.1} parent=1 // pred_check_branch
      %22 = sbr.rel (0) target = $region5
    $region4: #{tpu_custom_call.1} parent=1 // pred_region
      %s24 = ssub.s32 128, 128
      %25 = vsyncadd [#allocation4], %s24
      %s27 = sshll.u32 [#allocation3], 4
      %s28 = int_to_ptr.vmem [resolvable:$true] %s27
      %30 = dma.hbm_to_vmem [thread:$0]  %s0, 128, %s28, [#allocation4]
    $region5: #{tpu_custom_call.1} parent=1 // pred_fallthru
      _
    // Predicated region
    $region6: #{tpu_custom_call.1} parent=1 // pred_check
      _
    $region7: #{tpu_custom_call.1} parent=1 // pred_check_branch
      %32 = sbr.rel (0) target = $region9
    $region8: #{tpu_custom_call.1} parent=1 // pred_region
      %s34 = ssub.s32 16384, 16384
      %35 = vsyncadd [#allocation6], %s34
      %s36 = sshll.u32 [#allocation5], 4
      %s37 = int_to_ptr.vmem [resolvable:$true] %s36
      %42 = dma.hbm_to_vmem [thread:$0]  %s1, 16384, %s37, [#allocation6], 512, 512, 32
    $region9: #{tpu_custom_call.1} parent=1 // pred_fallthru
      _
    // Predicated region
    $region10: #{tpu_custom_call.1} parent=1 // pred_check
      _
    $region11: #{tpu_custom_call.1} parent=1 // pred_check_branch
      %44 = sbr.rel (0) target = $region13
    $region12: #{tpu_custom_call.1} parent=1 // pred_region
      %s46 = ssub.s32 128, 128
      %47 = vsyncadd [#allocation6], %s46
      %s49 = sshll.u32 [#allocation7], 4
      %s50 = int_to_ptr.vmem [resolvable:$true] %s49
      %52 = dma.hbm_to_vmem [thread:$0]  %s2, 128, %s50, [#allocation6]
    $region13: #{tpu_custom_call.1} parent=1 // pred_fallthru
      _
    // Predicated region
    $region14: #{tpu_custom_call.1} parent=1 // pred_check
      _
    $region15: #{tpu_custom_call.1} parent=1 // pred_check_branch
      %54 = sbr.rel (0) target = $region17
    $region16: #{tpu_custom_call.1} parent=1 // pred_region
      %s56 = ssub.s32 65536, 65536
      %57 = vsyncadd [#allocation9], %s56
      %s58 = sshll.u32 [#allocation8], 4
      %s59 = int_to_ptr.vmem [resolvable:$true] %s58
      %64 = dma.hbm_to_vmem [thread:$0]  %s3, 65536, %s59, [#allocation9], 512, 512, 32
    $region17: #{tpu_custom_call.1} parent=1 // pred_fallthru
      _
    // Predicated region
    $region18: #{tpu_custom_call.1} parent=1 // pred_check
      _
    $region19: #{tpu_custom_call.1} parent=1 // pred_check_branch
      %66 = sbr.rel (0) target = $region21
    $region20: #{tpu_custom_call.1} parent=1 // pred_region
      %s68 = ssub.s32 128, 128
      %69 = vsyncadd [#allocation9], %s68
      %s71 = sshll.u32 [#allocation10], 4
      %s72 = int_to_ptr.vmem [resolvable:$true] %s71
      %74 = dma.hbm_to_vmem [thread:$0]  %s4, 128, %s72, [#allocation9]
    $region21: #{tpu_custom_call.1} parent=1 // pred_fallthru
      _
    // Predicated region
    $region22: #{tpu_custom_call.1} parent=1 // pred_check
      _
    $region23: #{tpu_custom_call.1} parent=1 // pred_check_branch
      %76 = sbr.rel (0) target = $region25
    $region24: #{tpu_custom_call.1} parent=1 // pred_region
      %s78 = ssub.s32 32768, 32768
      %79 = vsyncadd [#allocation12], %s78
      %s80 = sshll.u32 [#allocation11], 4
      %s81 = int_to_ptr.vmem [resolvable:$true] %s80
      %86 = dma.hbm_to_vmem [thread:$0]  %s5, 32768, %s81, [#allocation12], 256, 256, 16
    $region25: #{tpu_custom_call.1} parent=1 // pred_fallthru
      _
    // Predicated region
    $region26: #{tpu_custom_call.1} parent=1 // pred_check
      _
    $region27: #{tpu_custom_call.1} parent=1 // pred_check_branch
      %88 = sbr.rel (0) target = $region29
    $region28: #{tpu_custom_call.1} parent=1 // pred_region
      %s90 = ssub.s32 64, 64
      %91 = vsyncadd [#allocation12], %s90
      %s93 = sshll.u32 [#allocation13], 4
      %s94 = int_to_ptr.vmem [resolvable:$true] %s93
      %96 = dma.hbm_to_vmem [thread:$0]  %s6, 64, %s94, [#allocation12]
    $region29: #{tpu_custom_call.1} parent=1 // pred_fallthru
      _
    // Predicated region
    $region30: #{tpu_custom_call.1} parent=1 // pred_check
      _
    $region31: #{tpu_custom_call.1} parent=1 // pred_check_branch
      %98 = sbr.rel (0) target = $region33
    $region32: #{tpu_custom_call.1} parent=1 // pred_region
      %s100 = ssub.s32 64, 64
      %101 = vsyncadd [#allocation15], %s100
      %s103 = sshll.u32 [#allocation14], 4
      %s104 = int_to_ptr.vmem [resolvable:$true] %s103
      %106 = dma.hbm_to_vmem [thread:$0]  %s7, 64, %s104, [#allocation15]
    $region33: #{tpu_custom_call.1} parent=1 // pred_fallthru
      _
    // Predicated region
    $region34: #{tpu_custom_call.1} parent=1 // pred_check
      _
    $region35: #{tpu_custom_call.1} parent=1 // pred_check_branch
      %108 = sbr.rel (0) target = $region37
    $region36: #{tpu_custom_call.1} parent=1 // pred_region
      _
    $region37: #{tpu_custom_call.1} parent=1 // pred_fallthru
      _
    // Predicated region
    $region38: #{tpu_custom_call.1} parent=1 // pred_check
      _
    $region39: #{tpu_custom_call.1} parent=1 // pred_check_branch
      %110 = sbr.rel (0) target = $region41
    $region40: #{tpu_custom_call.1} parent=1 // pred_region
      %111 = dma.done [#allocation4], 128
    $region41: #{tpu_custom_call.1} parent=1 // pred_fallthru
      _
    // Predicated region
    $region42: #{tpu_custom_call.1} parent=1 // pred_check
      _
    $region43: #{tpu_custom_call.1} parent=1 // pred_check_branch
      %113 = sbr.rel (0) target = $region45
    $region44: #{tpu_custom_call.1} parent=1 // pred_region
      %114 = dma.done [#allocation6], 16384
    $region45: #{tpu_custom_call.1} parent=1 // pred_fallthru
      _
    // Predicated region
    $region46: #{tpu_custom_call.1} parent=1 // pred_check
      _
    $region47: #{tpu_custom_call.1} parent=1 // pred_check_branch
      %116 = sbr.rel (0) target = $region49
    $region48: #{tpu_custom_call.1} parent=1 // pred_region
      %117 = dma.done [#allocation6], 128
    $region49: #{tpu_custom_call.1} parent=1 // pred_fallthru
      _
    // Predicated region
    $region50: #{tpu_custom_call.1} parent=1 // pred_check
      _
    $region51: #{tpu_custom_call.1} parent=1 // pred_check_branch
      %119 = sbr.rel (0) target = $region53
    $region52: #{tpu_custom_call.1} parent=1 // pred_region
      %120 = dma.done [#allocation9], 65536
    $region53: #{tpu_custom_call.1} parent=1 // pred_fallthru
      _
    // Predicated region
    $region54: #{tpu_custom_call.1} parent=1 // pred_check
      _
    $region55: #{tpu_custom_call.1} parent=1 // pred_check_branch
      %122 = sbr.rel (0) target = $region57
    $region56: #{tpu_custom_call.1} parent=1 // pred_region
      %123 = dma.done [#allocation9], 128
    $region57: #{tpu_custom_call.1} parent=1 // pred_fallthru
      _
    // Predicated region
    $region58: #{tpu_custom_call.1} parent=1 // pred_check
      _
    $region59: #{tpu_custom_call.1} parent=1 // pred_check_branch
      %125 = sbr.rel (0) target = $region61
    $region60: #{tpu_custom_call.1} parent=1 // pred_region
      %126 = dma.done [#allocation12], 32768
    $region61: #{tpu_custom_call.1} parent=1 // pred_fallthru
      _
    // Predicated region
    $region62: #{tpu_custom_call.1} parent=1 // pred_check
      _
    $region63: #{tpu_custom_call.1} parent=1 // pred_check_branch
      %128 = sbr.rel (0) target = $region65
    $region64: #{tpu_custom_call.1} parent=1 // pred_region
      %129 = dma.done [#allocation12], 64
    $region65: #{tpu_custom_call.1} parent=1 // pred_fallthru
      _
    // Predicated region
    $region66: #{tpu_custom_call.1} parent=1 // pred_check
      _
    $region67: #{tpu_custom_call.1} parent=1 // pred_check_branch
      %131 = sbr.rel (0) target = $region69
    $region68: #{tpu_custom_call.1} parent=1 // pred_region
      %132 = dma.done [#allocation15], 64
    $region69: #{tpu_custom_call.1} parent=1 // pred_fallthru
      _
    %v133 = vld [vmem:[#allocation3] sm:$0xff]
    %v134 = vld [vmem:[#allocation5] sm:$0xff]
    %v135 = vld [vmem:[#allocation5 + $0x8] sm:$0xff]
    %v136 = vld [vmem:[#allocation5 + $0x10] sm:$0xff]
    %v137 = vld [vmem:[#allocation5 + $0x18] sm:$0xff]
    %v138 = vld [vmem:[#allocation5 + $0x20] sm:$0xff]
    %v139 = vld [vmem:[#allocation5 + $0x28] sm:$0xff]
    %v140 = vld [vmem:[#allocation5 + $0x30] sm:$0xff]
    %v141 = vld [vmem:[#allocation5 + $0x38] sm:$0xff]
    %v142 = vld [vmem:[#allocation5 + $0x40] sm:$0xff]
    %v143 = vld [vmem:[#allocation5 + $0x48] sm:$0xff]
    %v144 = vld [vmem:[#allocation5 + $0x50] sm:$0xff]
    %v145 = vld [vmem:[#allocation5 + $0x58] sm:$0xff]
    %v146 = vld [vmem:[#allocation5 + $0x60] sm:$0xff]
    %v147 = vld [vmem:[#allocation5 + $0x68] sm:$0xff]
    %v148 = vld [vmem:[#allocation5 + $0x70] sm:$0xff]
    %v149 = vld [vmem:[#allocation5 + $0x78] sm:$0xff]
    %v150 = vld [vmem:[#allocation5 + $0x80] sm:$0xff]
    %v151 = vld [vmem:[#allocation5 + $0x88] sm:$0xff]
    %v152 = vld [vmem:[#allocation5 + $0x90] sm:$0xff]
    %v153 = vld [vmem:[#allocation5 + $0x98] sm:$0xff]
    %v154 = vld [vmem:[#allocation5 + $0xa0] sm:$0xff]
    %v155 = vld [vmem:[#allocation5 + $0xa8] sm:$0xff]
    %v156 = vld [vmem:[#allocation5 + $0xb0] sm:$0xff]
    %v157 = vld [vmem:[#allocation5 + $0xb8] sm:$0xff]
    %v158 = vld [vmem:[#allocation5 + $0xc0] sm:$0xff]
    %v159 = vld [vmem:[#allocation5 + $0xc8] sm:$0xff]
    %v160 = vld [vmem:[#allocation5 + $0xd0] sm:$0xff]
    %v161 = vld [vmem:[#allocation5 + $0xd8] sm:$0xff]
    %v162 = vld [vmem:[#allocation5 + $0xe0] sm:$0xff]
    %v163 = vld [vmem:[#allocation5 + $0xe8] sm:$0xff]
    %v164 = vld [vmem:[#allocation5 + $0xf0] sm:$0xff]
    %v165 = vld [vmem:[#allocation5 + $0xf8] sm:$0xff]
    %v166 = vld [vmem:[#allocation5 + $0x100] sm:$0xff]
    %v167 = vld [vmem:[#allocation5 + $0x108] sm:$0xff]
    %v168 = vld [vmem:[#allocation5 + $0x110] sm:$0xff]
    %v169 = vld [vmem:[#allocation5 + $0x118] sm:$0xff]
    %v170 = vld [vmem:[#allocation5 + $0x120] sm:$0xff]
    %v171 = vld [vmem:[#allocation5 + $0x128] sm:$0xff]
    %v172 = vld [vmem:[#allocation5 + $0x130] sm:$0xff]
    %v173 = vld [vmem:[#allocation5 + $0x138] sm:$0xff]
    %v174 = vld [vmem:[#allocation5 + $0x140] sm:$0xff]
    %v175 = vld [vmem:[#allocation5 + $0x148] sm:$0xff]
    %v176 = vld [vmem:[#allocation5 + $0x150] sm:$0xff]
    %v177 = vld [vmem:[#allocation5 + $0x158] sm:$0xff]
    %v178 = vld [vmem:[#allocation5 + $0x160] sm:$0xff]
    %v179 = vld [vmem:[#allocation5 + $0x168] sm:$0xff]
    %v180 = vld [vmem:[#allocation5 + $0x170] sm:$0xff]
    %v181 = vld [vmem:[#allocation5 + $0x178] sm:$0xff]
    %v182 = vld [vmem:[#allocation5 + $0x180] sm:$0xff]
    %v183 = vld [vmem:[#allocation5 + $0x188] sm:$0xff]
    %v184 = vld [vmem:[#allocation5 + $0x190] sm:$0xff]
    %v185 = vld [vmem:[#allocation5 + $0x198] sm:$0xff]
    %v186 = vld [vmem:[#allocation5 + $0x1a0] sm:$0xff]
    %v187 = vld [vmem:[#allocation5 + $0x1a8] sm:$0xff]
    %v188 = vld [vmem:[#allocation5 + $0x1b0] sm:$0xff]
    %v189 = vld [vmem:[#allocation5 + $0x1b8] sm:$0xff]
    %v190 = vld [vmem:[#allocation5 + $0x1c0] sm:$0xff]
    %v191 = vld [vmem:[#allocation5 + $0x1c8] sm:$0xff]
    %v192 = vld [vmem:[#allocation5 + $0x1d0] sm:$0xff]
    %v193 = vld [vmem:[#allocation5 + $0x1d8] sm:$0xff]
    %v194 = vld [vmem:[#allocation5 + $0x1e0] sm:$0xff]
    %v195 = vld [vmem:[#allocation5 + $0x1e8] sm:$0xff]
    %v196 = vld [vmem:[#allocation5 + $0x1f0] sm:$0xff]
    %v197 = vld [vmem:[#allocation5 + $0x1f8] sm:$0xff]
    %v198 = vld [vmem:[#allocation5 + $0x200] sm:$0xff]
    %v199 = vld [vmem:[#allocation5 + $0x208] sm:$0xff]
    %v200 = vld [vmem:[#allocation5 + $0x210] sm:$0xff]
    %v201 = vld [vmem:[#allocation5 + $0x218] sm:$0xff]
    %v202 = vld [vmem:[#allocation5 + $0x220] sm:$0xff]
    %v203 = vld [vmem:[#allocation5 + $0x228] sm:$0xff]
    %v204 = vld [vmem:[#allocation5 + $0x230] sm:$0xff]
    %v205 = vld [vmem:[#allocation5 + $0x238] sm:$0xff]
    %v206 = vld [vmem:[#allocation5 + $0x240] sm:$0xff]
    %v207 = vld [vmem:[#allocation5 + $0x248] sm:$0xff]
    %v208 = vld [vmem:[#allocation5 + $0x250] sm:$0xff]
    %v209 = vld [vmem:[#allocation5 + $0x258] sm:$0xff]
    %v210 = vld [vmem:[#allocation5 + $0x260] sm:$0xff]
    %v211 = vld [vmem:[#allocation5 + $0x268] sm:$0xff]
    %v212 = vld [vmem:[#allocation5 + $0x270] sm:$0xff]
    %v213 = vld [vmem:[#allocation5 + $0x278] sm:$0xff]
    %v214 = vld [vmem:[#allocation5 + $0x280] sm:$0xff]
    %v215 = vld [vmem:[#allocation5 + $0x288] sm:$0xff]
    %v216 = vld [vmem:[#allocation5 + $0x290] sm:$0xff]
    %v217 = vld [vmem:[#allocation5 + $0x298] sm:$0xff]
    %v218 = vld [vmem:[#allocation5 + $0x2a0] sm:$0xff]
    %v219 = vld [vmem:[#allocation5 + $0x2a8] sm:$0xff]
    %v220 = vld [vmem:[#allocation5 + $0x2b0] sm:$0xff]
    %v221 = vld [vmem:[#allocation5 + $0x2b8] sm:$0xff]
    %v222 = vld [vmem:[#allocation5 + $0x2c0] sm:$0xff]
    %v223 = vld [vmem:[#allocation5 + $0x2c8] sm:$0xff]
    %v224 = vld [vmem:[#allocation5 + $0x2d0] sm:$0xff]
    %v225 = vld [vmem:[#allocation5 + $0x2d8] sm:$0xff]
    %v226 = vld [vmem:[#allocation5 + $0x2e0] sm:$0xff]
    %v227 = vld [vmem:[#allocation5 + $0x2e8] sm:$0xff]
    %v228 = vld [vmem:[#allocation5 + $0x2f0] sm:$0xff]
    %v229 = vld [vmem:[#allocation5 + $0x2f8] sm:$0xff]
    %v230 = vld [vmem:[#allocation5 + $0x300] sm:$0xff]
    %v231 = vld [vmem:[#allocation5 + $0x308] sm:$0xff]
    %v232 = vld [vmem:[#allocation5 + $0x310] sm:$0xff]
    %v233 = vld [vmem:[#allocation5 + $0x318] sm:$0xff]
    %v234 = vld [vmem:[#allocation5 + $0x320] sm:$0xff]
    %v235 = vld [vmem:[#allocation5 + $0x328] sm:$0xff]
    %v236 = vld [vmem:[#allocation5 + $0x330] sm:$0xff]
    %v237 = vld [vmem:[#allocation5 + $0x338] sm:$0xff]
    %v238 = vld [vmem:[#allocation5 + $0x340] sm:$0xff]
    %v239 = vld [vmem:[#allocation5 + $0x348] sm:$0xff]
    %v240 = vld [vmem:[#allocation5 + $0x350] sm:$0xff]
    %v241 = vld [vmem:[#allocation5 + $0x358] sm:$0xff]
    %v242 = vld [vmem:[#allocation5 + $0x360] sm:$0xff]
    %v243 = vld [vmem:[#allocation5 + $0x368] sm:$0xff]
    %v244 = vld [vmem:[#allocation5 + $0x370] sm:$0xff]
    %v245 = vld [vmem:[#allocation5 + $0x378] sm:$0xff]
    %v246 = vld [vmem:[#allocation5 + $0x380] sm:$0xff]
    %v247 = vld [vmem:[#allocation5 + $0x388] sm:$0xff]
    %v248 = vld [vmem:[#allocation5 + $0x390] sm:$0xff]
    %v249 = vld [vmem:[#allocation5 + $0x398] sm:$0xff]
    %v250 = vld [vmem:[#allocation5 + $0x3a0] sm:$0xff]
    %v251 = vld [vmem:[#allocation5 + $0x3a8] sm:$0xff]
    %v252 = vld [vmem:[#allocation5 + $0x3b0] sm:$0xff]
    %v253 = vld [vmem:[#allocation5 + $0x3b8] sm:$0xff]
    %v254 = vld [vmem:[#allocation5 + $0x3c0] sm:$0xff]
    %v255 = vld [vmem:[#allocation5 + $0x3c8] sm:$0xff]
    %v256 = vld [vmem:[#allocation5 + $0x3d0] sm:$0xff]
    %v257 = vld [vmem:[#allocation5 + $0x3d8] sm:$0xff]
    %v258 = vld [vmem:[#allocation5 + $0x3e0] sm:$0xff]
    %v259 = vld [vmem:[#allocation5 + $0x3e8] sm:$0xff]
    %v260 = vld [vmem:[#allocation5 + $0x3f0] sm:$0xff]
    %v261 = vld [vmem:[#allocation5 + $0x3f8] sm:$0xff]
    %v262 = vld [vmem:[#allocation7] sm:$0xff]
    %v264 = vlaneseq
    %v265 = vshrl.u32 %v264, 7
    %v266 = vsub.s32 0, %v265
    %v267 = vrot.slane %v262, %v266
    %v268 = vlaneseq
    %v269 = vshrl.u32 %v268, 7
    %v270 = vsub.s32 1, %v269
    %v271 = vrot.slane %v262, %v270
    %v272 = vlaneseq
    %v273 = vshrl.u32 %v272, 7
    %v274 = vsub.s32 2, %v273
    %v275 = vrot.slane %v262, %v274
    %v276 = vlaneseq
    %v277 = vshrl.u32 %v276, 7
    %v278 = vsub.s32 3, %v277
    %v279 = vrot.slane %v262, %v278
    %v280 = vlaneseq
    %v281 = vshrl.u32 %v280, 7
    %v282 = vsub.s32 4, %v281
    %v283 = vrot.slane %v262, %v282
    %v284 = vlaneseq
    %v285 = vshrl.u32 %v284, 7
    %v286 = vsub.s32 5, %v285
    %v287 = vrot.slane %v262, %v286
    %v288 = vlaneseq
    %v289 = vshrl.u32 %v288, 7
    %v290 = vsub.s32 6, %v289
    %v291 = vrot.slane %v262, %v290
    %v292 = vlaneseq
    %v293 = vshrl.u32 %v292, 7
    %v294 = vsub.s32 7, %v293
    %v295 = vrot.slane %v262, %v294
    %v305 = vunpack.c.l.b16 %v133
    %v306 = vunpack.c.h.b16 %v133
    %v307 = vpack.c.b16 %v305, %v305
    %v308 = vpack.c.b16 %v306, %v306
    %v439 = vunpack.c.l.b16 %v134
    %v440 = vunpack.c.h.b16 %v134
    %v441 = vunpack.c.l.b16 %v135
    %v442 = vunpack.c.h.b16 %v135
    %v443 = vunpack.c.l.b16 %v136
    %v444 = vunpack.c.h.b16 %v136
    %v445 = vunpack.c.l.b16 %v137
    %v446 = vunpack.c.h.b16 %v137
    %v447 = vunpack.c.l.b16 %v138
    %v448 = vunpack.c.h.b16 %v138
    %v449 = vunpack.c.l.b16 %v139
    %v450 = vunpack.c.h.b16 %v139
    %v451 = vunpack.c.l.b16 %v140
    %v452 = vunpack.c.h.b16 %v140
    %v453 = vunpack.c.l.b16 %v141
    %v454 = vunpack.c.h.b16 %v141
    %v455 = vunpack.c.l.b16 %v142
    %v456 = vunpack.c.h.b16 %v142
    %v457 = vunpack.c.l.b16 %v143
    %v458 = vunpack.c.h.b16 %v143
    %v459 = vunpack.c.l.b16 %v144
    %v460 = vunpack.c.h.b16 %v144
    %v461 = vunpack.c.l.b16 %v145
    %v462 = vunpack.c.h.b16 %v145
    %v463 = vunpack.c.l.b16 %v146
    %v464 = vunpack.c.h.b16 %v146
    %v465 = vunpack.c.l.b16 %v147
    %v466 = vunpack.c.h.b16 %v147
    %v467 = vunpack.c.l.b16 %v148
    %v468 = vunpack.c.h.b16 %v148
    %v469 = vunpack.c.l.b16 %v149
    %v470 = vunpack.c.h.b16 %v149
    %v471 = vunpack.c.l.b16 %v150
    %v472 = vunpack.c.h.b16 %v150
    %v473 = vunpack.c.l.b16 %v151
    %v474 = vunpack.c.h.b16 %v151
    %v475 = vunpack.c.l.b16 %v152
    %v476 = vunpack.c.h.b16 %v152
    %v477 = vunpack.c.l.b16 %v153
    %v478 = vunpack.c.h.b16 %v153
    %v479 = vunpack.c.l.b16 %v154
    %v480 = vunpack.c.h.b16 %v154
    %v481 = vunpack.c.l.b16 %v155
    %v482 = vunpack.c.h.b16 %v155
    %v483 = vunpack.c.l.b16 %v156
    %v484 = vunpack.c.h.b16 %v156
    %v485 = vunpack.c.l.b16 %v157
    %v486 = vunpack.c.h.b16 %v157
    %v487 = vunpack.c.l.b16 %v158
    %v488 = vunpack.c.h.b16 %v158
    %v489 = vunpack.c.l.b16 %v159
    %v490 = vunpack.c.h.b16 %v159
    %v491 = vunpack.c.l.b16 %v160
    %v492 = vunpack.c.h.b16 %v160
    %v493 = vunpack.c.l.b16 %v161
    %v494 = vunpack.c.h.b16 %v161
    %v495 = vunpack.c.l.b16 %v162
    %v496 = vunpack.c.h.b16 %v162
    %v497 = vunpack.c.l.b16 %v163
    %v498 = vunpack.c.h.b16 %v163
    %v499 = vunpack.c.l.b16 %v164
    %v500 = vunpack.c.h.b16 %v164
    %v501 = vunpack.c.l.b16 %v165
    %v502 = vunpack.c.h.b16 %v165
    %v503 = vunpack.c.l.b16 %v166
    %v504 = vunpack.c.h.b16 %v166
    %v505 = vunpack.c.l.b16 %v167
    %v506 = vunpack.c.h.b16 %v167
    %v507 = vunpack.c.l.b16 %v168
    %v508 = vunpack.c.h.b16 %v168
    %v509 = vunpack.c.l.b16 %v169
    %v510 = vunpack.c.h.b16 %v169
    %v511 = vunpack.c.l.b16 %v170
    %v512 = vunpack.c.h.b16 %v170
    %v513 = vunpack.c.l.b16 %v171
    %v514 = vunpack.c.h.b16 %v171
    %v515 = vunpack.c.l.b16 %v172
    %v516 = vunpack.c.h.b16 %v172
    %v517 = vunpack.c.l.b16 %v173
    %v518 = vunpack.c.h.b16 %v173
    %v519 = vunpack.c.l.b16 %v174
    %v520 = vunpack.c.h.b16 %v174
    %v521 = vunpack.c.l.b16 %v175
    %v522 = vunpack.c.h.b16 %v175
    %v523 = vunpack.c.l.b16 %v176
    %v524 = vunpack.c.h.b16 %v176
    %v525 = vunpack.c.l.b16 %v177
    %v526 = vunpack.c.h.b16 %v177
    %v527 = vunpack.c.l.b16 %v178
    %v528 = vunpack.c.h.b16 %v178
    %v529 = vunpack.c.l.b16 %v179
    %v530 = vunpack.c.h.b16 %v179
    %v531 = vunpack.c.l.b16 %v180
    %v532 = vunpack.c.h.b16 %v180
    %v533 = vunpack.c.l.b16 %v181
    %v534 = vunpack.c.h.b16 %v181
    %v535 = vunpack.c.l.b16 %v182
    %v536 = vunpack.c.h.b16 %v182
    %v537 = vunpack.c.l.b16 %v183
    %v538 = vunpack.c.h.b16 %v183
    %v539 = vunpack.c.l.b16 %v184
    %v540 = vunpack.c.h.b16 %v184
    %v541 = vunpack.c.l.b16 %v185
    %v542 = vunpack.c.h.b16 %v185
    %v543 = vunpack.c.l.b16 %v186
    %v544 = vunpack.c.h.b16 %v186
    %v545 = vunpack.c.l.b16 %v187
    %v546 = vunpack.c.h.b16 %v187
    %v547 = vunpack.c.l.b16 %v188
    %v548 = vunpack.c.h.b16 %v188
    %v549 = vunpack.c.l.b16 %v189
    %v550 = vunpack.c.h.b16 %v189
    %v551 = vunpack.c.l.b16 %v190
    %v552 = vunpack.c.h.b16 %v190
    %v553 = vunpack.c.l.b16 %v191
    %v554 = vunpack.c.h.b16 %v191
    %v555 = vunpack.c.l.b16 %v192
    %v556 = vunpack.c.h.b16 %v192
    %v557 = vunpack.c.l.b16 %v193
    %v558 = vunpack.c.h.b16 %v193
    %v559 = vunpack.c.l.b16 %v194
    %v560 = vunpack.c.h.b16 %v194
    %v561 = vunpack.c.l.b16 %v195
    %v562 = vunpack.c.h.b16 %v195
    %v563 = vunpack.c.l.b16 %v196
    %v564 = vunpack.c.h.b16 %v196
    %v565 = vunpack.c.l.b16 %v197
    %v566 = vunpack.c.h.b16 %v197
    %v567 = vunpack.c.l.b16 %v198
    %v568 = vunpack.c.h.b16 %v198
    %v569 = vunpack.c.l.b16 %v199
    %v570 = vunpack.c.h.b16 %v199
    %v571 = vunpack.c.l.b16 %v200
    %v572 = vunpack.c.h.b16 %v200
    %v573 = vunpack.c.l.b16 %v201
    %v574 = vunpack.c.h.b16 %v201
    %v575 = vunpack.c.l.b16 %v202
    %v576 = vunpack.c.h.b16 %v202
    %v577 = vunpack.c.l.b16 %v203
    %v578 = vunpack.c.h.b16 %v203
    %v579 = vunpack.c.l.b16 %v204
    %v580 = vunpack.c.h.b16 %v204
    %v581 = vunpack.c.l.b16 %v205
    %v582 = vunpack.c.h.b16 %v205
    %v583 = vunpack.c.l.b16 %v206
    %v584 = vunpack.c.h.b16 %v206
    %v585 = vunpack.c.l.b16 %v207
    %v586 = vunpack.c.h.b16 %v207
    %v587 = vunpack.c.l.b16 %v208
    %v588 = vunpack.c.h.b16 %v208
    %v589 = vunpack.c.l.b16 %v209
    %v590 = vunpack.c.h.b16 %v209
    %v591 = vunpack.c.l.b16 %v210
    %v592 = vunpack.c.h.b16 %v210
    %v593 = vunpack.c.l.b16 %v211
    %v594 = vunpack.c.h.b16 %v211
    %v595 = vunpack.c.l.b16 %v212
    %v596 = vunpack.c.h.b16 %v212
    %v597 = vunpack.c.l.b16 %v213
    %v598 = vunpack.c.h.b16 %v213
    %v599 = vunpack.c.l.b16 %v214
    %v600 = vunpack.c.h.b16 %v214
    %v601 = vunpack.c.l.b16 %v215
    %v602 = vunpack.c.h.b16 %v215
    %v603 = vunpack.c.l.b16 %v216
    %v604 = vunpack.c.h.b16 %v216
    %v605 = vunpack.c.l.b16 %v217
    %v606 = vunpack.c.h.b16 %v217
    %v607 = vunpack.c.l.b16 %v218
    %v608 = vunpack.c.h.b16 %v218
    %v609 = vunpack.c.l.b16 %v219
    %v610 = vunpack.c.h.b16 %v219
    %v611 = vunpack.c.l.b16 %v220
    %v612 = vunpack.c.h.b16 %v220
    %v613 = vunpack.c.l.b16 %v221
    %v614 = vunpack.c.h.b16 %v221
    %v615 = vunpack.c.l.b16 %v222
    %v616 = vunpack.c.h.b16 %v222
    %v617 = vunpack.c.l.b16 %v223
    %v618 = vunpack.c.h.b16 %v223
    %v619 = vunpack.c.l.b16 %v224
    %v620 = vunpack.c.h.b16 %v224
    %v621 = vunpack.c.l.b16 %v225
    %v622 = vunpack.c.h.b16 %v225
    %v623 = vunpack.c.l.b16 %v226
    %v624 = vunpack.c.h.b16 %v226
    %v625 = vunpack.c.l.b16 %v227
    %v626 = vunpack.c.h.b16 %v227
    %v627 = vunpack.c.l.b16 %v228
    %v628 = vunpack.c.h.b16 %v228
    %v629 = vunpack.c.l.b16 %v229
    %v630 = vunpack.c.h.b16 %v229
    %v631 = vunpack.c.l.b16 %v230
    %v632 = vunpack.c.h.b16 %v230
    %v633 = vunpack.c.l.b16 %v231
    %v634 = vunpack.c.h.b16 %v231
    %v635 = vunpack.c.l.b16 %v232
    %v636 = vunpack.c.h.b16 %v232
    %v637 = vunpack.c.l.b16 %v233
    %v638 = vunpack.c.h.b16 %v233
    %v639 = vunpack.c.l.b16 %v234
    %v640 = vunpack.c.h.b16 %v234
    %v641 = vunpack.c.l.b16 %v235
    %v642 = vunpack.c.h.b16 %v235
    %v643 = vunpack.c.l.b16 %v236
    %v644 = vunpack.c.h.b16 %v236
    %v645 = vunpack.c.l.b16 %v237
    %v646 = vunpack.c.h.b16 %v237
    %v647 = vunpack.c.l.b16 %v238
    %v648 = vunpack.c.h.b16 %v238
    %v649 = vunpack.c.l.b16 %v239
    %v650 = vunpack.c.h.b16 %v239
    %v651 = vunpack.c.l.b16 %v240
    %v652 = vunpack.c.h.b16 %v240
    %v653 = vunpack.c.l.b16 %v241
    %v654 = vunpack.c.h.b16 %v241
    %v655 = vunpack.c.l.b16 %v242
    %v656 = vunpack.c.h.b16 %v242
    %v657 = vunpack.c.l.b16 %v243
    %v658 = vunpack.c.h.b16 %v243
    %v659 = vunpack.c.l.b16 %v244
    %v660 = vunpack.c.h.b16 %v244
    %v661 = vunpack.c.l.b16 %v245
    %v662 = vunpack.c.h.b16 %v245
    %v663 = vunpack.c.l.b16 %v246
    %v664 = vunpack.c.h.b16 %v246
    %v665 = vunpack.c.l.b16 %v247
    %v666 = vunpack.c.h.b16 %v247
    %v667 = vunpack.c.l.b16 %v248
    %v668 = vunpack.c.h.b16 %v248
    %v669 = vunpack.c.l.b16 %v249
    %v670 = vunpack.c.h.b16 %v249
    %v671 = vunpack.c.l.b16 %v250
    %v672 = vunpack.c.h.b16 %v250
    %v673 = vunpack.c.l.b16 %v251
    %v674 = vunpack.c.h.b16 %v251
    %v675 = vunpack.c.l.b16 %v252
    %v676 = vunpack.c.h.b16 %v252
    %v677 = vunpack.c.l.b16 %v253
    %v678 = vunpack.c.h.b16 %v253
    %v679 = vunpack.c.l.b16 %v254
    %v680 = vunpack.c.h.b16 %v254
    %v681 = vunpack.c.l.b16 %v255
    %v682 = vunpack.c.h.b16 %v255
    %v683 = vunpack.c.l.b16 %v256
    %v684 = vunpack.c.h.b16 %v256
    %v685 = vunpack.c.l.b16 %v257
    %v686 = vunpack.c.h.b16 %v257
    %v687 = vunpack.c.l.b16 %v258
    %v688 = vunpack.c.h.b16 %v258
    %v689 = vunpack.c.l.b16 %v259
    %v690 = vunpack.c.h.b16 %v259
    %v691 = vunpack.c.l.b16 %v260
    %v692 = vunpack.c.h.b16 %v260
    %v693 = vunpack.c.l.b16 %v261
    %v694 = vunpack.c.h.b16 %v261
    %v695 = vpack.c.b16 %v447, %v439
    %v696 = vpack.c.b16 %v448, %v440
    %v697 = vpack.c.b16 %v449, %v441
    %v698 = vpack.c.b16 %v450, %v442
    %v699 = vpack.c.b16 %v451, %v443
    %v700 = vpack.c.b16 %v452, %v444
    %v701 = vpack.c.b16 %v453, %v445
    %v702 = vpack.c.b16 %v454, %v446
    %v703 = vpack.c.b16 %v463, %v455
    %v704 = vpack.c.b16 %v464, %v456
    %v705 = vpack.c.b16 %v465, %v457
    %v706 = vpack.c.b16 %v466, %v458
    %v707 = vpack.c.b16 %v467, %v459
    %v708 = vpack.c.b16 %v468, %v460
    %v709 = vpack.c.b16 %v469, %v461
    %v710 = vpack.c.b16 %v470, %v462
    %v711 = vpack.c.b16 %v479, %v471
    %v712 = vpack.c.b16 %v480, %v472
    %v713 = vpack.c.b16 %v481, %v473
    %v714 = vpack.c.b16 %v482, %v474
    %v715 = vpack.c.b16 %v483, %v475
    %v716 = vpack.c.b16 %v484, %v476
    %v717 = vpack.c.b16 %v485, %v477
    %v718 = vpack.c.b16 %v486, %v478
    %v719 = vpack.c.b16 %v495, %v487
    %v720 = vpack.c.b16 %v496, %v488
    %v721 = vpack.c.b16 %v497, %v489
    %v722 = vpack.c.b16 %v498, %v490
    %v723 = vpack.c.b16 %v499, %v491
    %v724 = vpack.c.b16 %v500, %v492
    %v725 = vpack.c.b16 %v501, %v493
    %v726 = vpack.c.b16 %v502, %v494
    %v727 = vpack.c.b16 %v511, %v503
    %v728 = vpack.c.b16 %v512, %v504
    %v729 = vpack.c.b16 %v513, %v505
    %v730 = vpack.c.b16 %v514, %v506
    %v731 = vpack.c.b16 %v515, %v507
    %v732 = vpack.c.b16 %v516, %v508
    %v733 = vpack.c.b16 %v517, %v509
    %v734 = vpack.c.b16 %v518, %v510
    %v735 = vpack.c.b16 %v527, %v519
    %v736 = vpack.c.b16 %v528, %v520
    %v737 = vpack.c.b16 %v529, %v521
    %v738 = vpack.c.b16 %v530, %v522
    %v739 = vpack.c.b16 %v531, %v523
    %v740 = vpack.c.b16 %v532, %v524
    %v741 = vpack.c.b16 %v533, %v525
    %v742 = vpack.c.b16 %v534, %v526
    %v743 = vpack.c.b16 %v543, %v535
    %v744 = vpack.c.b16 %v544, %v536
    %v745 = vpack.c.b16 %v545, %v537
    %v746 = vpack.c.b16 %v546, %v538
    %v747 = vpack.c.b16 %v547, %v539
    %v748 = vpack.c.b16 %v548, %v540
    %v749 = vpack.c.b16 %v549, %v541
    %v750 = vpack.c.b16 %v550, %v542
    %v751 = vpack.c.b16 %v559, %v551
    %v752 = vpack.c.b16 %v560, %v552
    %v753 = vpack.c.b16 %v561, %v553
    %v754 = vpack.c.b16 %v562, %v554
    %v755 = vpack.c.b16 %v563, %v555
    %v756 = vpack.c.b16 %v564, %v556
    %v757 = vpack.c.b16 %v565, %v557
    %v758 = vpack.c.b16 %v566, %v558
    %v759 = vpack.c.b16 %v575, %v567
    %v760 = vpack.c.b16 %v576, %v568
    %v761 = vpack.c.b16 %v577, %v569
    %v762 = vpack.c.b16 %v578, %v570
    %v763 = vpack.c.b16 %v579, %v571
    %v764 = vpack.c.b16 %v580, %v572
    %v765 = vpack.c.b16 %v581, %v573
    %v766 = vpack.c.b16 %v582, %v574
    %v767 = vpack.c.b16 %v591, %v583
    %v768 = vpack.c.b16 %v592, %v584
    %v769 = vpack.c.b16 %v593, %v585
    %v770 = vpack.c.b16 %v594, %v586
    %v771 = vpack.c.b16 %v595, %v587
    %v772 = vpack.c.b16 %v596, %v588
    %v773 = vpack.c.b16 %v597, %v589
    %v774 = vpack.c.b16 %v598, %v590
    %v775 = vpack.c.b16 %v607, %v599
    %v776 = vpack.c.b16 %v608, %v600
    %v777 = vpack.c.b16 %v609, %v601
    %v778 = vpack.c.b16 %v610, %v602
    %v779 = vpack.c.b16 %v611, %v603
    %v780 = vpack.c.b16 %v612, %v604
    %v781 = vpack.c.b16 %v613, %v605
    %v782 = vpack.c.b16 %v614, %v606
    %v783 = vpack.c.b16 %v623, %v615
    %v784 = vpack.c.b16 %v624, %v616
    %v785 = vpack.c.b16 %v625, %v617
    %v786 = vpack.c.b16 %v626, %v618
    %v787 = vpack.c.b16 %v627, %v619
    %v788 = vpack.c.b16 %v628, %v620
    %v789 = vpack.c.b16 %v629, %v621
    %v790 = vpack.c.b16 %v630, %v622
    %v791 = vpack.c.b16 %v639, %v631
    %v792 = vpack.c.b16 %v640, %v632
    %v793 = vpack.c.b16 %v641, %v633
    %v794 = vpack.c.b16 %v642, %v634
    %v795 = vpack.c.b16 %v643, %v635
    %v796 = vpack.c.b16 %v644, %v636
    %v797 = vpack.c.b16 %v645, %v637
    %v798 = vpack.c.b16 %v646, %v638
    %v799 = vpack.c.b16 %v655, %v647
    %v800 = vpack.c.b16 %v656, %v648
    %v801 = vpack.c.b16 %v657, %v649
    %v802 = vpack.c.b16 %v658, %v650
    %v803 = vpack.c.b16 %v659, %v651
    %v804 = vpack.c.b16 %v660, %v652
    %v805 = vpack.c.b16 %v661, %v653
    %v806 = vpack.c.b16 %v662, %v654
    %v807 = vpack.c.b16 %v671, %v663
    %v808 = vpack.c.b16 %v672, %v664
    %v809 = vpack.c.b16 %v673, %v665
    %v810 = vpack.c.b16 %v674, %v666
    %v811 = vpack.c.b16 %v675, %v667
    %v812 = vpack.c.b16 %v676, %v668
    %v813 = vpack.c.b16 %v677, %v669
    %v814 = vpack.c.b16 %v678, %v670
    %v815 = vpack.c.b16 %v687, %v679
    %v816 = vpack.c.b16 %v688, %v680
    %v817 = vpack.c.b16 %v689, %v681
    %v818 = vpack.c.b16 %v690, %v682
    %v819 = vpack.c.b16 %v691, %v683
    %v820 = vpack.c.b16 %v692, %v684
    %v821 = vpack.c.b16 %v693, %v685
    %v822 = vpack.c.b16 %v694, %v686
    %951 = vmatprep.subr.bf16.mxu0 %v696
    %952 = vmatpush1.bf16.msra.mxu0 %v695
    %953 = vmatprep.subr.bf16.mxu0 %v704
    %954 = vmatpush1.bf16.msra.mxu0 %v703
    %955 = vmatprep.subr.bf16.mxu0 %v712
    %956 = vmatpush1.bf16.msra.mxu0 %v711
    %957 = vmatprep.subr.bf16.mxu0 %v720
    %958 = vmatpush1.bf16.msra.mxu0 %v719
    %959 = vmatprep.subr.bf16.mxu0 %v728
    %960 = vmatpush1.bf16.msra.mxu0 %v727
    %961 = vmatprep.subr.bf16.mxu0 %v736
    %962 = vmatpush1.bf16.msra.mxu0 %v735
    %963 = vmatprep.subr.bf16.mxu0 %v744
    %964 = vmatpush1.bf16.msra.mxu0 %v743
    %965 = vmatprep.subr.bf16.mxu0 %v752
    %966 = vmatpush1.bf16.msra.mxu0 %v751
    %967 = vmatprep.subr.bf16.mxu0 %v760
    %968 = vmatpush1.bf16.msra.mxu0 %v759
    %969 = vmatprep.subr.bf16.mxu0 %v768
    %970 = vmatpush1.bf16.msra.mxu0 %v767
    %971 = vmatprep.subr.bf16.mxu0 %v776
    %972 = vmatpush1.bf16.msra.mxu0 %v775
    %973 = vmatprep.subr.bf16.mxu0 %v784
    %974 = vmatpush1.bf16.msra.mxu0 %v783
    %975 = vmatprep.subr.bf16.mxu0 %v792
    %976 = vmatpush1.bf16.msra.mxu0 %v791
    %977 = vmatprep.subr.bf16.mxu0 %v800
    %978 = vmatpush1.bf16.msra.mxu0 %v799
    %979 = vmatprep.subr.bf16.mxu0 %v808
    %980 = vmatpush1.bf16.msra.mxu0 %v807
    %981 = vmatprep.subr.bf16.mxu0 %v816
    %982 = vmatpush1.bf16.msra.mxu0 %v815
    %983 = vmatprep.mubr.bf16.mxu0 %v308
    %984 = vmatmul.mubr.bf16.gmra.mrb[0].mxu0 %v307
    %v985 = vpop.f32.mrb[0].mxu0
    %v986 = vadd.f32 %v267, %v985
    %v987 = vpop.f32.mrb[0].mxu0
    %v988 = vadd.f32 %v271, %v987
    %v989 = vpop.f32.mrb[0].mxu0
    %v990 = vpop.f32.mrb[0].mxu0
    %991 = vdwg.mxu0
    %992 = vmatprep.subr.bf16.mxu0 %v698
    %993 = vmatpush1.bf16.msra.mxu0 %v697
    %994 = vmatprep.subr.bf16.mxu0 %v706
    %995 = vmatpush1.bf16.msra.mxu0 %v705
    %996 = vmatprep.subr.bf16.mxu0 %v714
    %997 = vmatpush1.bf16.msra.mxu0 %v713
    %998 = vmatprep.subr.bf16.mxu0 %v722
    %999 = vmatpush1.bf16.msra.mxu0 %v721
    %1000 = vmatprep.subr.bf16.mxu0 %v730
    %1001 = vmatpush1.bf16.msra.mxu0 %v729
    %1002 = vmatprep.subr.bf16.mxu0 %v738
    %1003 = vmatpush1.bf16.msra.mxu0 %v737
    %1004 = vmatprep.subr.bf16.mxu0 %v746
    %1005 = vmatpush1.bf16.msra.mxu0 %v745
    %1006 = vmatprep.subr.bf16.mxu0 %v754
    %1007 = vmatpush1.bf16.msra.mxu0 %v753
    %1008 = vmatprep.subr.bf16.mxu0 %v762
    %1009 = vmatpush1.bf16.msra.mxu0 %v761
    %1010 = vmatprep.subr.bf16.mxu0 %v770
    %1011 = vmatpush1.bf16.msra.mxu0 %v769
    %1012 = vmatprep.subr.bf16.mxu0 %v778
    %1013 = vmatpush1.bf16.msra.mxu0 %v777
    %1014 = vmatprep.subr.bf16.mxu0 %v786
    %1015 = vmatpush1.bf16.msra.mxu0 %v785
    %1016 = vmatprep.subr.bf16.mxu0 %v794
    %1017 = vmatpush1.bf16.msra.mxu0 %v793
    %1018 = vmatprep.subr.bf16.mxu0 %v802
    %1019 = vmatpush1.bf16.msra.mxu0 %v801
    %1020 = vmatprep.subr.bf16.mxu0 %v810
    %1021 = vmatpush1.bf16.msra.mxu0 %v809
    %1022 = vmatprep.subr.bf16.mxu0 %v818
    %1023 = vmatpush1.bf16.msra.mxu0 %v817
    %1024 = vmatprep.mubr.bf16.mxu0 %v308
    %1025 = vmatmul.mubr.bf16.gmra.mrb[0].mxu0 %v307
    %v1026 = vpop.f32.mrb[0].mxu0
    %v1027 = vadd.f32 %v275, %v1026
    %v1028 = vpop.f32.mrb[0].mxu0
    %v1029 = vadd.f32 %v279, %v1028
    %v1030 = vpop.f32.mrb[0].mxu0
    %v1031 = vpop.f32.mrb[0].mxu0
    %1032 = vdwg.mxu0
    %1033 = vmatprep.subr.bf16.mxu0 %v700
    %1034 = vmatpush1.bf16.msra.mxu0 %v699
    %1035 = vmatprep.subr.bf16.mxu0 %v708
    %1036 = vmatpush1.bf16.msra.mxu0 %v707
    %1037 = vmatprep.subr.bf16.mxu0 %v716
    %1038 = vmatpush1.bf16.msra.mxu0 %v715
    %1039 = vmatprep.subr.bf16.mxu0 %v724
    %1040 = vmatpush1.bf16.msra.mxu0 %v723
    %1041 = vmatprep.subr.bf16.mxu0 %v732
    %1042 = vmatpush1.bf16.msra.mxu0 %v731
    %1043 = vmatprep.subr.bf16.mxu0 %v740
    %1044 = vmatpush1.bf16.msra.mxu0 %v739
    %1045 = vmatprep.subr.bf16.mxu0 %v748
    %1046 = vmatpush1.bf16.msra.mxu0 %v747
    %1047 = vmatprep.subr.bf16.mxu0 %v756
    %1048 = vmatpush1.bf16.msra.mxu0 %v755
    %1049 = vmatprep.subr.bf16.mxu0 %v764
    %1050 = vmatpush1.bf16.msra.mxu0 %v763
    %1051 = vmatprep.subr.bf16.mxu0 %v772
    %1052 = vmatpush1.bf16.msra.mxu0 %v771
    %1053 = vmatprep.subr.bf16.mxu0 %v780
    %1054 = vmatpush1.bf16.msra.mxu0 %v779
    %1055 = vmatprep.subr.bf16.mxu0 %v788
    %1056 = vmatpush1.bf16.msra.mxu0 %v787
    %1057 = vmatprep.subr.bf16.mxu0 %v796
    %1058 = vmatpush1.bf16.msra.mxu0 %v795
    %1059 = vmatprep.subr.bf16.mxu0 %v804
    %1060 = vmatpush1.bf16.msra.mxu0 %v803
    %1061 = vmatprep.subr.bf16.mxu0 %v812
    %1062 = vmatpush1.bf16.msra.mxu0 %v811
    %1063 = vmatprep.subr.bf16.mxu0 %v820
    %1064 = vmatpush1.bf16.msra.mxu0 %v819
    %1065 = vmatprep.mubr.bf16.mxu0 %v308
    %1066 = vmatmul.mubr.bf16.gmra.mrb[0].mxu0 %v307
    %v1067 = vpop.f32.mrb[0].mxu0
    %v1068 = vadd.f32 %v283, %v1067
    %v1069 = vpop.f32.mrb[0].mxu0
    %v1070 = vadd.f32 %v287, %v1069
    %v1071 = vpop.f32.mrb[0].mxu0
    %v1072 = vpop.f32.mrb[0].mxu0
    %1073 = vdwg.mxu0
    %1074 = vmatprep.subr.bf16.mxu0 %v702
    %1075 = vmatpush1.bf16.msra.mxu0 %v701
    %1076 = vmatprep.subr.bf16.mxu0 %v710
    %1077 = vmatpush1.bf16.msra.mxu0 %v709
    %1078 = vmatprep.subr.bf16.mxu0 %v718
    %1079 = vmatpush1.bf16.msra.mxu0 %v717
    %1080 = vmatprep.subr.bf16.mxu0 %v726
    %1081 = vmatpush1.bf16.msra.mxu0 %v725
    %1082 = vmatprep.subr.bf16.mxu0 %v734
    %1083 = vmatpush1.bf16.msra.mxu0 %v733
    %1084 = vmatprep.subr.bf16.mxu0 %v742
    %1085 = vmatpush1.bf16.msra.mxu0 %v741
    %1086 = vmatprep.subr.bf16.mxu0 %v750
    %1087 = vmatpush1.bf16.msra.mxu0 %v749
    %1088 = vmatprep.subr.bf16.mxu0 %v758
    %1089 = vmatpush1.bf16.msra.mxu0 %v757
    %1090 = vmatprep.subr.bf16.mxu0 %v766
    %1091 = vmatpush1.bf16.msra.mxu0 %v765
    %1092 = vmatprep.subr.bf16.mxu0 %v774
    %1093 = vmatpush1.bf16.msra.mxu0 %v773
    %1094 = vmatprep.subr.bf16.mxu0 %v782
    %1095 = vmatpush1.bf16.msra.mxu0 %v781
    %1096 = vmatprep.subr.bf16.mxu0 %v790
    %1097 = vmatpush1.bf16.msra.mxu0 %v789
    %1098 = vmatprep.subr.bf16.mxu0 %v798
    %1099 = vmatpush1.bf16.msra.mxu0 %v797
    %1100 = vmatprep.subr.bf16.mxu0 %v806
    %1101 = vmatpush1.bf16.msra.mxu0 %v805
    %1102 = vmatprep.subr.bf16.mxu0 %v814
    %1103 = vmatpush1.bf16.msra.mxu0 %v813
    %1104 = vmatprep.subr.bf16.mxu0 %v822
    %1105 = vmatpush1.bf16.msra.mxu0 %v821
    %1106 = vmatprep.mubr.bf16.mxu0 %v308
    %1107 = vmatmul.mubr.bf16.gmra.mrb[0].mxu0 %v307
    %v1108 = vpop.f32.mrb[0].mxu0
    %v1109 = vadd.f32 %v291, %v1108
    %v1110 = vpop.f32.mrb[0].mxu0
    %v1111 = vadd.f32 %v295, %v1110
    %v1112 = vpop.f32.mrb[0].mxu0
    %v1113 = vpop.f32.mrb[0].mxu0
    %1114 = vdwg.mxu0
    %v1115 = vmax.f32 %v986, 0.0
    %v1116 = vmax.f32 %v988, 0.0
    %v1117 = vmax.f32 %v1027, 0.0
    %v1118 = vmax.f32 %v1029, 0.0
    %v1119 = vmax.f32 %v1068, 0.0
    %v1120 = vmax.f32 %v1070, 0.0
    %v1121 = vmax.f32 %v1109, 0.0
    %v1122 = vmax.f32 %v1111, 0.0
    %v1123 = vpack.c.bf16 %v1115, %v1115
    %v1124 = vpack.c.bf16 %v1116, %v1116
    %v1125 = vpack.c.bf16 %v1117, %v1117
    %v1126 = vpack.c.bf16 %v1118, %v1118
    %v1127 = vpack.c.bf16 %v1119, %v1119
    %v1128 = vpack.c.bf16 %v1120, %v1120
    %v1129 = vpack.c.bf16 %v1121, %v1121
    %v1130 = vpack.c.bf16 %v1122, %v1122
    %v1131 = vld [vmem:[#allocation8] sm:$0xff]
    %v1132 = vld [vmem:[#allocation8 + $0x8] sm:$0xff]
    %v1133 = vld [vmem:[#allocation8 + $0x10] sm:$0xff]
    %v1134 = vld [vmem:[#allocation8 + $0x18] sm:$0xff]
    %v1135 = vld [vmem:[#allocation8 + $0x20] sm:$0xff]
    %v1136 = vld [vmem:[#allocation8 + $0x28] sm:$0xff]
    %v1137 = vld [vmem:[#allocation8 + $0x30] sm:$0xff]
    %v1138 = vld [vmem:[#allocation8 + $0x38] sm:$0xff]
    %v1139 = vld [vmem:[#allocation8 + $0x40] sm:$0xff]
    %v1140 = vld [vmem:[#allocation8 + $0x48] sm:$0xff]
    %v1141 = vld [vmem:[#allocation8 + $0x50] sm:$0xff]
    %v1142 = vld [vmem:[#allocation8 + $0x58] sm:$0xff]
    %v1143 = vld [vmem:[#allocation8 + $0x60] sm:$0xff]
    %v1144 = vld [vmem:[#allocation8 + $0x68] sm:$0xff]
    %v1145 = vld [vmem:[#allocation8 + $0x70] sm:$0xff]
    %v1146 = vld [vmem:[#allocation8 + $0x78] sm:$0xff]
    %v1147 = vld [vmem:[#allocation8 + $0x80] sm:$0xff]
    %v1148 = vld [vmem:[#allocation8 + $0x88] sm:$0xff]
    %v1149 = vld [vmem:[#allocation8 + $0x90] sm:$0xff]
    %v1150 = vld [vmem:[#allocation8 + $0x98] sm:$0xff]
    %v1151 = vld [vmem:[#allocation8 + $0xa0] sm:$0xff]
    %v1152 = vld [vmem:[#allocation8 + $0xa8] sm:$0xff]
    %v1153 = vld [vmem:[#allocation8 + $0xb0] sm:$0xff]
    %v1154 = vld [vmem:[#allocation8 + $0xb8] sm:$0xff]
    %v1155 = vld [vmem:[#allocation8 + $0xc0] sm:$0xff]
    %v1156 = vld [vmem:[#allocation8 + $0xc8] sm:$0xff]
    %v1157 = vld [vmem:[#allocation8 + $0xd0] sm:$0xff]
    %v1158 = vld [vmem:[#allocation8 + $0xd8] sm:$0xff]
    %v1159 = vld [vmem:[#allocation8 + $0xe0] sm:$0xff]
    %v1160 = vld [vmem:[#allocation8 + $0xe8] sm:$0xff]
    %v1161 = vld [vmem:[#allocation8 + $0xf0] sm:$0xff]
    %v1162 = vld [vmem:[#allocation8 + $0xf8] sm:$0xff]
    %v1163 = vld [vmem:[#allocation8 + $0x100] sm:$0xff]
    %v1164 = vld [vmem:[#allocation8 + $0x108] sm:$0xff]
    %v1165 = vld [vmem:[#allocation8 + $0x110] sm:$0xff]
    %v1166 = vld [vmem:[#allocation8 + $0x118] sm:$0xff]
    %v1167 = vld [vmem:[#allocation8 + $0x120] sm:$0xff]
    %v1168 = vld [vmem:[#allocation8 + $0x128] sm:$0xff]
    %v1169 = vld [vmem:[#allocation8 + $0x130] sm:$0xff]
    %v1170 = vld [vmem:[#allocation8 + $0x138] sm:$0xff]
    %v1171 = vld [vmem:[#allocation8 + $0x140] sm:$0xff]
    %v1172 = vld [vmem:[#allocation8 + $0x148] sm:$0xff]
    %v1173 = vld [vmem:[#allocation8 + $0x150] sm:$0xff]
    %v1174 = vld [vmem:[#allocation8 + $0x158] sm:$0xff]
    %v1175 = vld [vmem:[#allocation8 + $0x160] sm:$0xff]
    %v1176 = vld [vmem:[#allocation8 + $0x168] sm:$0xff]
    %v1177 = vld [vmem:[#allocation8 + $0x170] sm:$0xff]
    %v1178 = vld [vmem:[#allocation8 + $0x178] sm:$0xff]
    %v1179 = vld [vmem:[#allocation8 + $0x180] sm:$0xff]
    %v1180 = vld [vmem:[#allocation8 + $0x188] sm:$0xff]
    %v1181 = vld [vmem:[#allocation8 + $0x190] sm:$0xff]
    %v1182 = vld [vmem:[#allocation8 + $0x198] sm:$0xff]
    %v1183 = vld [vmem:[#allocation8 + $0x1a0] sm:$0xff]
    %v1184 = vld [vmem:[#allocation8 + $0x1a8] sm:$0xff]
    %v1185 = vld [vmem:[#allocation8 + $0x1b0] sm:$0xff]
    %v1186 = vld [vmem:[#allocation8 + $0x1b8] sm:$0xff]
    %v1187 = vld [vmem:[#allocation8 + $0x1c0] sm:$0xff]
    %v1188 = vld [vmem:[#allocation8 + $0x1c8] sm:$0xff]
    %v1189 = vld [vmem:[#allocation8 + $0x1d0] sm:$0xff]
    %v1190 = vld [vmem:[#allocation8 + $0x1d8] sm:$0xff]
    %v1191 = vld [vmem:[#allocation8 + $0x1e0] sm:$0xff]
    %v1192 = vld [vmem:[#allocation8 + $0x1e8] sm:$0xff]
    %v1193 = vld [vmem:[#allocation8 + $0x1f0] sm:$0xff]
    %v1194 = vld [vmem:[#allocation8 + $0x1f8] sm:$0xff]
    %v1195 = vld [vmem:[#allocation8 + $0x200] sm:$0xff]
    %v1196 = vld [vmem:[#allocation8 + $0x208] sm:$0xff]
    %v1197 = vld [vmem:[#allocation8 + $0x210] sm:$0xff]
    %v1198 = vld [vmem:[#allocation8 + $0x218] sm:$0xff]
    %v1199 = vld [vmem:[#allocation8 + $0x220] sm:$0xff]
    %v1200 = vld [vmem:[#allocation8 + $0x228] sm:$0xff]
    %v1201 = vld [vmem:[#allocation8 + $0x230] sm:$0xff]
    %v1202 = vld [vmem:[#allocation8 + $0x238] sm:$0xff]
    %v1203 = vld [vmem:[#allocation8 + $0x240] sm:$0xff]
    %v1204 = vld [vmem:[#allocation8 + $0x248] sm:$0xff]
    %v1205 = vld [vmem:[#allocation8 + $0x250] sm:$0xff]
    %v1206 = vld [vmem:[#allocation8 + $0x258] sm:$0xff]
    %v1207 = vld [vmem:[#allocation8 + $0x260] sm:$0xff]
    %v1208 = vld [vmem:[#allocation8 + $0x268] sm:$0xff]
    %v1209 = vld [vmem:[#allocation8 + $0x270] sm:$0xff]
    %v1210 = vld [vmem:[#allocation8 + $0x278] sm:$0xff]
    %v1211 = vld [vmem:[#allocation8 + $0x280] sm:$0xff]
    %v1212 = vld [vmem:[#allocation8 + $0x288] sm:$0xff]
    %v1213 = vld [vmem:[#allocation8 + $0x290] sm:$0xff]
    %v1214 = vld [vmem:[#allocation8 + $0x298] sm:$0xff]
    %v1215 = vld [vmem:[#allocation8 + $0x2a0] sm:$0xff]
    %v1216 = vld [vmem:[#allocation8 + $0x2a8] sm:$0xff]
    %v1217 = vld [vmem:[#allocation8 + $0x2b0] sm:$0xff]
    %v1218 = vld [vmem:[#allocation8 + $0x2b8] sm:$0xff]
    %v1219 = vld [vmem:[#allocation8 + $0x2c0] sm:$0xff]
    %v1220 = vld [vmem:[#allocation8 + $0x2c8] sm:$0xff]
    %v1221 = vld [vmem:[#allocation8 + $0x2d0] sm:$0xff]
    %v1222 = vld [vmem:[#allocation8 + $0x2d8] sm:$0xff]
    %v1223 = vld [vmem:[#allocation8 + $0x2e0] sm:$0xff]
    %v1224 = vld [vmem:[#allocation8 + $0x2e8] sm:$0xff]
    %v1225 = vld [vmem:[#allocation8 + $0x2f0] sm:$0xff]
    %v1226 = vld [vmem:[#allocation8 + $0x2f8] sm:$0xff]
    %v1227 = vld [vmem:[#allocation8 + $0x300] sm:$0xff]
    %v1228 = vld [vmem:[#allocation8 + $0x308] sm:$0xff]
    %v1229 = vld [vmem:[#allocation8 + $0x310] sm:$0xff]
    %v1230 = vld [vmem:[#allocation8 + $0x318] sm:$0xff]
    %v1231 = vld [vmem:[#allocation8 + $0x320] sm:$0xff]
    %v1232 = vld [vmem:[#allocation8 + $0x328] sm:$0xff]
    %v1233 = vld [vmem:[#allocation8 + $0x330] sm:$0xff]
    %v1234 = vld [vmem:[#allocation8 + $0x338] sm:$0xff]
    %v1235 = vld [vmem:[#allocation8 + $0x340] sm:$0xff]
    %v1236 = vld [vmem:[#allocation8 + $0x348] sm:$0xff]
    %v1237 = vld [vmem:[#allocation8 + $0x350] sm:$0xff]
    %v1238 = vld [vmem:[#allocation8 + $0x358] sm:$0xff]
    %v1239 = vld [vmem:[#allocation8 + $0x360] sm:$0xff]
    %v1240 = vld [vmem:[#allocation8 + $0x368] sm:$0xff]
    %v1241 = vld [vmem:[#allocation8 + $0x370] sm:$0xff]
    %v1242 = vld [vmem:[#allocation8 + $0x378] sm:$0xff]
    %v1243 = vld [vmem:[#allocation8 + $0x380] sm:$0xff]
    %v1244 = vld [vmem:[#allocation8 + $0x388] sm:$0xff]
    %v1245 = vld [vmem:[#allocation8 + $0x390] sm:$0xff]
    %v1246 = vld [vmem:[#allocation8 + $0x398] sm:$0xff]
    %v1247 = vld [vmem:[#allocation8 + $0x3a0] sm:$0xff]
    %v1248 = vld [vmem:[#allocation8 + $0x3a8] sm:$0xff]
    %v1249 = vld [vmem:[#allocation8 + $0x3b0] sm:$0xff]
    %v1250 = vld [vmem:[#allocation8 + $0x3b8] sm:$0xff]
    %v1251 = vld [vmem:[#allocation8 + $0x3c0] sm:$0xff]
    %v1252 = vld [vmem:[#allocation8 + $0x3c8] sm:$0xff]
    %v1253 = vld [vmem:[#allocation8 + $0x3d0] sm:$0xff]
    %v1254 = vld [vmem:[#allocation8 + $0x3d8] sm:$0xff]
    %v1255 = vld [vmem:[#allocation8 + $0x3e0] sm:$0xff]
    %v1256 = vld [vmem:[#allocation8 + $0x3e8] sm:$0xff]
    %v1257 = vld [vmem:[#allocation8 + $0x3f0] sm:$0xff]
    %v1258 = vld [vmem:[#allocation8 + $0x3f8] sm:$0xff]
    %v1259 = vld [vmem:[#allocation8 + $0x400] sm:$0xff]
    %v1260 = vld [vmem:[#allocation8 + $0x408] sm:$0xff]
    %v1261 = vld [vmem:[#allocation8 + $0x410] sm:$0xff]
    %v1262 = vld [vmem:[#allocation8 + $0x418] sm:$0xff]
    %v1263 = vld [vmem:[#allocation8 + $0x420] sm:$0xff]
    %v1264 = vld [vmem:[#allocation8 + $0x428] sm:$0xff]
    %v1265 = vld [vmem:[#allocation8 + $0x430] sm:$0xff]
    %v1266 = vld [vmem:[#allocation8 + $0x438] sm:$0xff]
    %v1267 = vld [vmem:[#allocation8 + $0x440] sm:$0xff]
    %v1268 = vld [vmem:[#allocation8 + $0x448] sm:$0xff]
    %v1269 = vld [vmem:[#allocation8 + $0x450] sm:$0xff]
    %v1270 = vld [vmem:[#allocation8 + $0x458] sm:$0xff]
    %v1271 = vld [vmem:[#allocation8 + $0x460] sm:$0xff]
    %v1272 = vld [vmem:[#allocation8 + $0x468] sm:$0xff]
    %v1273 = vld [vmem:[#allocation8 + $0x470] sm:$0xff]
    %v1274 = vld [vmem:[#allocation8 + $0x478] sm:$0xff]
    %v1275 = vld [vmem:[#allocation8 + $0x480] sm:$0xff]
    %v1276 = vld [vmem:[#allocation8 + $0x488] sm:$0xff]
    %v1277 = vld [vmem:[#allocation8 + $0x490] sm:$0xff]
    %v1278 = vld [vmem:[#allocation8 + $0x498] sm:$0xff]
    %v1279 = vld [vmem:[#allocation8 + $0x4a0] sm:$0xff]
    %v1280 = vld [vmem:[#allocation8 + $0x4a8] sm:$0xff]
    %v1281 = vld [vmem:[#allocation8 + $0x4b0] sm:$0xff]
    %v1282 = vld [vmem:[#allocation8 + $0x4b8] sm:$0xff]
    %v1283 = vld [vmem:[#allocation8 + $0x4c0] sm:$0xff]
    %v1284 = vld [vmem:[#allocation8 + $0x4c8] sm:$0xff]
    %v1285 = vld [vmem:[#allocation8 + $0x4d0] sm:$0xff]
    %v1286 = vld [vmem:[#allocation8 + $0x4d8] sm:$0xff]
    %v1287 = vld [vmem:[#allocation8 + $0x4e0] sm:$0xff]
    %v1288 = vld [vmem:[#allocation8 + $0x4e8] sm:$0xff]
    %v1289 = vld [vmem:[#allocation8 + $0x4f0] sm:$0xff]
    %v1290 = vld [vmem:[#allocation8 + $0x4f8] sm:$0xff]
    %v1291 = vld [vmem:[#allocation8 + $0x500] sm:$0xff]
    %v1292 = vld [vmem:[#allocation8 + $0x508] sm:$0xff]
    %v1293 = vld [vmem:[#allocation8 + $0x510] sm:$0xff]
    %v1294 = vld [vmem:[#allocation8 + $0x518] sm:$0xff]
    %v1295 = vld [vmem:[#allocation8 + $0x520] sm:$0xff]
    %v1296 = vld [vmem:[#allocation8 + $0x528] sm:$0xff]
    %v1297 = vld [vmem:[#allocation8 + $0x530] sm:$0xff]
    %v1298 = vld [vmem:[#allocation8 + $0x538] sm:$0xff]
    %v1299 = vld [vmem:[#allocation8 + $0x540] sm:$0xff]
    %v1300 = vld [vmem:[#allocation8 + $0x548] sm:$0xff]
    %v1301 = vld [vmem:[#allocation8 + $0x550] sm:$0xff]
    %v1302 = vld [vmem:[#allocation8 + $0x558] sm:$0xff]
    %v1303 = vld [vmem:[#allocation8 + $0x560] sm:$0xff]
    %v1304 = vld [vmem:[#allocation8 + $0x568] sm:$0xff]
    %v1305 = vld [vmem:[#allocation8 + $0x570] sm:$0xff]
    %v1306 = vld [vmem:[#allocation8 + $0x578] sm:$0xff]
    %v1307 = vld [vmem:[#allocation8 + $0x580] sm:$0xff]
    %v1308 = vld [vmem:[#allocation8 + $0x588] sm:$0xff]
    %v1309 = vld [vmem:[#allocation8 + $0x590] sm:$0xff]
    %v1310 = vld [vmem:[#allocation8 + $0x598] sm:$0xff]
    %v1311 = vld [vmem:[#allocation8 + $0x5a0] sm:$0xff]
    %v1312 = vld [vmem:[#allocation8 + $0x5a8] sm:$0xff]
    %v1313 = vld [vmem:[#allocation8 + $0x5b0] sm:$0xff]
    %v1314 = vld [vmem:[#allocation8 + $0x5b8] sm:$0xff]
    %v1315 = vld [vmem:[#allocation8 + $0x5c0] sm:$0xff]
    %v1316 = vld [vmem:[#allocation8 + $0x5c8] sm:$0xff]
    %v1317 = vld [vmem:[#allocation8 + $0x5d0] sm:$0xff]
    %v1318 = vld [vmem:[#allocation8 + $0x5d8] sm:$0xff]
    %v1319 = vld [vmem:[#allocation8 + $0x5e0] sm:$0xff]
    %v1320 = vld [vmem:[#allocation8 + $0x5e8] sm:$0xff]
    %v1321 = vld [vmem:[#allocation8 + $0x5f0] sm:$0xff]
    %v1322 = vld [vmem:[#allocation8 + $0x5f8] sm:$0xff]
    %v1323 = vld [vmem:[#allocation8 + $0x600] sm:$0xff]
    %v1324 = vld [vmem:[#allocation8 + $0x608] sm:$0xff]
    %v1325 = vld [vmem:[#allocation8 + $0x610] sm:$0xff]
    %v1326 = vld [vmem:[#allocation8 + $0x618] sm:$0xff]
    %v1327 = vld [vmem:[#allocation8 + $0x620] sm:$0xff]
    %v1328 = vld [vmem:[#allocation8 + $0x628] sm:$0xff]
    %v1329 = vld [vmem:[#allocation8 + $0x630] sm:$0xff]
    %v1330 = vld [vmem:[#allocation8 + $0x638] sm:$0xff]
    %v1331 = vld [vmem:[#allocation8 + $0x640] sm:$0xff]
    %v1332 = vld [vmem:[#allocation8 + $0x648] sm:$0xff]
    %v1333 = vld [vmem:[#allocation8 + $0x650] sm:$0xff]
    %v1334 = vld [vmem:[#allocation8 + $0x658] sm:$0xff]
    %v1335 = vld [vmem:[#allocation8 + $0x660] sm:$0xff]
    %v1336 = vld [vmem:[#allocation8 + $0x668] sm:$0xff]
    %v1337 = vld [vmem:[#allocation8 + $0x670] sm:$0xff]
    %v1338 = vld [vmem:[#allocation8 + $0x678] sm:$0xff]
    %v1339 = vld [vmem:[#allocation8 + $0x680] sm:$0xff]
    %v1340 = vld [vmem:[#allocation8 + $0x688] sm:$0xff]
    %v1341 = vld [vmem:[#allocation8 + $0x690] sm:$0xff]
    %v1342 = vld [vmem:[#allocation8 + $0x698] sm:$0xff]
    %v1343 = vld [vmem:[#allocation8 + $0x6a0] sm:$0xff]
    %v1344 = vld [vmem:[#allocation8 + $0x6a8] sm:$0xff]
    %v1345 = vld [vmem:[#allocation8 + $0x6b0] sm:$0xff]
    %v1346 = vld [vmem:[#allocation8 + $0x6b8] sm:$0xff]
    %v1347 = vld [vmem:[#allocation8 + $0x6c0] sm:$0xff]
    %v1348 = vld [vmem:[#allocation8 + $0x6c8] sm:$0xff]
    %v1349 = vld [vmem:[#allocation8 + $0x6d0] sm:$0xff]
    %v1350 = vld [vmem:[#allocation8 + $0x6d8] sm:$0xff]
    %v1351 = vld [vmem:[#allocation8 + $0x6e0] sm:$0xff]
    %v1352 = vld [vmem:[#allocation8 + $0x6e8] sm:$0xff]
    %v1353 = vld [vmem:[#allocation8 + $0x6f0] sm:$0xff]
    %v1354 = vld [vmem:[#allocation8 + $0x6f8] sm:$0xff]
    %v1355 = vld [vmem:[#allocation8 + $0x700] sm:$0xff]
    %v1356 = vld [vmem:[#allocation8 + $0x708] sm:$0xff]
    %v1357 = vld [vmem:[#allocation8 + $0x710] sm:$0xff]
    %v1358 = vld [vmem:[#allocation8 + $0x718] sm:$0xff]
    %v1359 = vld [vmem:[#allocation8 + $0x720] sm:$0xff]
    %v1360 = vld [vmem:[#allocation8 + $0x728] sm:$0xff]
    %v1361 = vld [vmem:[#allocation8 + $0x730] sm:$0xff]
    %v1362 = vld [vmem:[#allocation8 + $0x738] sm:$0xff]
    %v1363 = vld [vmem:[#allocation8 + $0x740] sm:$0xff]
    %v1364 = vld [vmem:[#allocation8 + $0x748] sm:$0xff]
    %v1365 = vld [vmem:[#allocation8 + $0x750] sm:$0xff]
    %v1366 = vld [vmem:[#allocation8 + $0x758] sm:$0xff]
    %v1367 = vld [vmem:[#allocation8 + $0x760] sm:$0xff]
    %v1368 = vld [vmem:[#allocation8 + $0x768] sm:$0xff]
    %v1369 = vld [vmem:[#allocation8 + $0x770] sm:$0xff]
    %v1370 = vld [vmem:[#allocation8 + $0x778] sm:$0xff]
    %v1371 = vld [vmem:[#allocation8 + $0x780] sm:$0xff]
    %v1372 = vld [vmem:[#allocation8 + $0x788] sm:$0xff]
    %v1373 = vld [vmem:[#allocation8 + $0x790] sm:$0xff]
    %v1374 = vld [vmem:[#allocation8 + $0x798] sm:$0xff]
    %v1375 = vld [vmem:[#allocation8 + $0x7a0] sm:$0xff]
    %v1376 = vld [vmem:[#allocation8 + $0x7a8] sm:$0xff]
    %v1377 = vld [vmem:[#allocation8 + $0x7b0] sm:$0xff]
    %v1378 = vld [vmem:[#allocation8 + $0x7b8] sm:$0xff]
    %v1379 = vld [vmem:[#allocation8 + $0x7c0] sm:$0xff]
    %v1380 = vld [vmem:[#allocation8 + $0x7c8] sm:$0xff]
    %v1381 = vld [vmem:[#allocation8 + $0x7d0] sm:$0xff]
    %v1382 = vld [vmem:[#allocation8 + $0x7d8] sm:$0xff]
    %v1383 = vld [vmem:[#allocation8 + $0x7e0] sm:$0xff]
    %v1384 = vld [vmem:[#allocation8 + $0x7e8] sm:$0xff]
    %v1385 = vld [vmem:[#allocation8 + $0x7f0] sm:$0xff]
    %v1386 = vld [vmem:[#allocation8 + $0x7f8] sm:$0xff]
    %v1387 = vld [vmem:[#allocation8 + $0x800] sm:$0xff]
    %v1388 = vld [vmem:[#allocation8 + $0x808] sm:$0xff]
    %v1389 = vld [vmem:[#allocation8 + $0x810] sm:$0xff]
    %v1390 = vld [vmem:[#allocation8 + $0x818] sm:$0xff]
    %v1391 = vld [vmem:[#allocation8 + $0x820] sm:$0xff]
    %v1392 = vld [vmem:[#allocation8 + $0x828] sm:$0xff]
    %v1393 = vld [vmem:[#allocation8 + $0x830] sm:$0xff]
    %v1394 = vld [vmem:[#allocation8 + $0x838] sm:$0xff]
    %v1395 = vld [vmem:[#allocation8 + $0x840] sm:$0xff]
    %v1396 = vld [vmem:[#allocation8 + $0x848] sm:$0xff]
    %v1397 = vld [vmem:[#allocation8 + $0x850] sm:$0xff]
    %v1398 = vld [vmem:[#allocation8 + $0x858] sm:$0xff]
    %v1399 = vld [vmem:[#allocation8 + $0x860] sm:$0xff]
    %v1400 = vld [vmem:[#allocation8 + $0x868] sm:$0xff]
    %v1401 = vld [vmem:[#allocation8 + $0x870] sm:$0xff]
    %v1402 = vld [vmem:[#allocation8 + $0x878] sm:$0xff]
    %v1403 = vld [vmem:[#allocation8 + $0x880] sm:$0xff]
    %v1404 = vld [vmem:[#allocation8 + $0x888] sm:$0xff]
    %v1405 = vld [vmem:[#allocation8 + $0x890] sm:$0xff]
    %v1406 = vld [vmem:[#allocation8 + $0x898] sm:$0xff]
    %v1407 = vld [vmem:[#allocation8 + $0x8a0] sm:$0xff]
    %v1408 = vld [vmem:[#allocation8 + $0x8a8] sm:$0xff]
    %v1409 = vld [vmem:[#allocation8 + $0x8b0] sm:$0xff]
    %v1410 = vld [vmem:[#allocation8 + $0x8b8] sm:$0xff]
    %v1411 = vld [vmem:[#allocation8 + $0x8c0] sm:$0xff]
    %v1412 = vld [vmem:[#allocation8 + $0x8c8] sm:$0xff]
    %v1413 = vld [vmem:[#allocation8 + $0x8d0] sm:$0xff]
    %v1414 = vld [vmem:[#allocation8 + $0x8d8] sm:$0xff]
    %v1415 = vld [vmem:[#allocation8 + $0x8e0] sm:$0xff]
    %v1416 = vld [vmem:[#allocation8 + $0x8e8] sm:$0xff]
    %v1417 = vld [vmem:[#allocation8 + $0x8f0] sm:$0xff]
    %v1418 = vld [vmem:[#allocation8 + $0x8f8] sm:$0xff]
    %v1419 = vld [vmem:[#allocation8 + $0x900] sm:$0xff]
    %v1420 = vld [vmem:[#allocation8 + $0x908] sm:$0xff]
    %v1421 = vld [vmem:[#allocation8 + $0x910] sm:$0xff]
    %v1422 = vld [vmem:[#allocation8 + $0x918] sm:$0xff]
    %v1423 = vld [vmem:[#allocation8 + $0x920] sm:$0xff]
    %v1424 = vld [vmem:[#allocation8 + $0x928] sm:$0xff]
    %v1425 = vld [vmem:[#allocation8 + $0x930] sm:$0xff]
    %v1426 = vld [vmem:[#allocation8 + $0x938] sm:$0xff]
    %v1427 = vld [vmem:[#allocation8 + $0x940] sm:$0xff]
    %v1428 = vld [vmem:[#allocation8 + $0x948] sm:$0xff]
    %v1429 = vld [vmem:[#allocation8 + $0x950] sm:$0xff]
    %v1430 = vld [vmem:[#allocation8 + $0x958] sm:$0xff]
    %v1431 = vld [vmem:[#allocation8 + $0x960] sm:$0xff]
    %v1432 = vld [vmem:[#allocation8 + $0x968] sm:$0xff]
    %v1433 = vld [vmem:[#allocation8 + $0x970] sm:$0xff]
    %v1434 = vld [vmem:[#allocation8 + $0x978] sm:$0xff]
    %v1435 = vld [vmem:[#allocation8 + $0x980] sm:$0xff]
    %v1436 = vld [vmem:[#allocation8 + $0x988] sm:$0xff]
    %v1437 = vld [vmem:[#allocation8 + $0x990] sm:$0xff]
    %v1438 = vld [vmem:[#allocation8 + $0x998] sm:$0xff]
    %v1439 = vld [vmem:[#allocation8 + $0x9a0] sm:$0xff]
    %v1440 = vld [vmem:[#allocation8 + $0x9a8] sm:$0xff]
    %v1441 = vld [vmem:[#allocation8 + $0x9b0] sm:$0xff]
    %v1442 = vld [vmem:[#allocation8 + $0x9b8] sm:$0xff]
    %v1443 = vld [vmem:[#allocation8 + $0x9c0] sm:$0xff]
    %v1444 = vld [vmem:[#allocation8 + $0x9c8] sm:$0xff]
    %v1445 = vld [vmem:[#allocation8 + $0x9d0] sm:$0xff]
    %v1446 = vld [vmem:[#allocation8 + $0x9d8] sm:$0xff]
    %v1447 = vld [vmem:[#allocation8 + $0x9e0] sm:$0xff]
    %v1448 = vld [vmem:[#allocation8 + $0x9e8] sm:$0xff]
    %v1449 = vld [vmem:[#allocation8 + $0x9f0] sm:$0xff]
    %v1450 = vld [vmem:[#allocation8 + $0x9f8] sm:$0xff]
    %v1451 = vld [vmem:[#allocation8 + $0xa00] sm:$0xff]
    %v1452 = vld [vmem:[#allocation8 + $0xa08] sm:$0xff]
    %v1453 = vld [vmem:[#allocation8 + $0xa10] sm:$0xff]
    %v1454 = vld [vmem:[#allocation8 + $0xa18] sm:$0xff]
    %v1455 = vld [vmem:[#allocation8 + $0xa20] sm:$0xff]
    %v1456 = vld [vmem:[#allocation8 + $0xa28] sm:$0xff]
    %v1457 = vld [vmem:[#allocation8 + $0xa30] sm:$0xff]
    %v1458 = vld [vmem:[#allocation8 + $0xa38] sm:$0xff]
    %v1459 = vld [vmem:[#allocation8 + $0xa40] sm:$0xff]
    %v1460 = vld [vmem:[#allocation8 + $0xa48] sm:$0xff]
    %v1461 = vld [vmem:[#allocation8 + $0xa50] sm:$0xff]
    %v1462 = vld [vmem:[#allocation8 + $0xa58] sm:$0xff]
    %v1463 = vld [vmem:[#allocation8 + $0xa60] sm:$0xff]
    %v1464 = vld [vmem:[#allocation8 + $0xa68] sm:$0xff]
    %v1465 = vld [vmem:[#allocation8 + $0xa70] sm:$0xff]
    %v1466 = vld [vmem:[#allocation8 + $0xa78] sm:$0xff]
    %v1467 = vld [vmem:[#allocation8 + $0xa80] sm:$0xff]
    %v1468 = vld [vmem:[#allocation8 + $0xa88] sm:$0xff]
    %v1469 = vld [vmem:[#allocation8 + $0xa90] sm:$0xff]
    %v1470 = vld [vmem:[#allocation8 + $0xa98] sm:$0xff]
    %v1471 = vld [vmem:[#allocation8 + $0xaa0] sm:$0xff]
    %v1472 = vld [vmem:[#allocation8 + $0xaa8] sm:$0xff]
    %v1473 = vld [vmem:[#allocation8 + $0xab0] sm:$0xff]
    %v1474 = vld [vmem:[#allocation8 + $0xab8] sm:$0xff]
    %v1475 = vld [vmem:[#allocation8 + $0xac0] sm:$0xff]
    %v1476 = vld [vmem:[#allocation8 + $0xac8] sm:$0xff]
    %v1477 = vld [vmem:[#allocation8 + $0xad0] sm:$0xff]
    %v1478 = vld [vmem:[#allocation8 + $0xad8] sm:$0xff]
    %v1479 = vld [vmem:[#allocation8 + $0xae0] sm:$0xff]
    %v1480 = vld [vmem:[#allocation8 + $0xae8] sm:$0xff]
    %v1481 = vld [vmem:[#allocation8 + $0xaf0] sm:$0xff]
    %v1482 = vld [vmem:[#allocation8 + $0xaf8] sm:$0xff]
    %v1483 = vld [vmem:[#allocation8 + $0xb00] sm:$0xff]
    %v1484 = vld [vmem:[#allocation8 + $0xb08] sm:$0xff]
    %v1485 = vld [vmem:[#allocation8 + $0xb10] sm:$0xff]
    %v1486 = vld [vmem:[#allocation8 + $0xb18] sm:$0xff]
    %v1487 = vld [vmem:[#allocation8 + $0xb20] sm:$0xff]
    %v1488 = vld [vmem:[#allocation8 + $0xb28] sm:$0xff]
    %v1489 = vld [vmem:[#allocation8 + $0xb30] sm:$0xff]
    %v1490 = vld [vmem:[#allocation8 + $0xb38] sm:$0xff]
    %v1491 = vld [vmem:[#allocation8 + $0xb40] sm:$0xff]
    %v1492 = vld [vmem:[#allocation8 + $0xb48] sm:$0xff]
    %v1493 = vld [vmem:[#allocation8 + $0xb50] sm:$0xff]
    %v1494 = vld [vmem:[#allocation8 + $0xb58] sm:$0xff]
    %v1495 = vld [vmem:[#allocation8 + $0xb60] sm:$0xff]
    %v1496 = vld [vmem:[#allocation8 + $0xb68] sm:$0xff]
    %v1497 = vld [vmem:[#allocation8 + $0xb70] sm:$0xff]
    %v1498 = vld [vmem:[#allocation8 + $0xb78] sm:$0xff]
    %v1499 = vld [vmem:[#allocation8 + $0xb80] sm:$0xff]
    %v1500 = vld [vmem:[#allocation8 + $0xb88] sm:$0xff]
    %v1501 = vld [vmem:[#allocation8 + $0xb90] sm:$0xff]
    %v1502 = vld [vmem:[#allocation8 + $0xb98] sm:$0xff]
    %v1503 = vld [vmem:[#allocation8 + $0xba0] sm:$0xff]
    %v1504 = vld [vmem:[#allocation8 + $0xba8] sm:$0xff]
    %v1505 = vld [vmem:[#allocation8 + $0xbb0] sm:$0xff]
    %v1506 = vld [vmem:[#allocation8 + $0xbb8] sm:$0xff]
    %v1507 = vld [vmem:[#allocation8 + $0xbc0] sm:$0xff]
    %v1508 = vld [vmem:[#allocation8 + $0xbc8] sm:$0xff]
    %v1509 = vld [vmem:[#allocation8 + $0xbd0] sm:$0xff]
    %v1510 = vld [vmem:[#allocation8 + $0xbd8] sm:$0xff]
    %v1511 = vld [vmem:[#allocation8 + $0xbe0] sm:$0xff]
    %v1512 = vld [vmem:[#allocation8 + $0xbe8] sm:$0xff]
    %v1513 = vld [vmem:[#allocation8 + $0xbf0] sm:$0xff]
    %v1514 = vld [vmem:[#allocation8 + $0xbf8] sm:$0xff]
    %v1515 = vld [vmem:[#allocation8 + $0xc00] sm:$0xff]
    %v1516 = vld [vmem:[#allocation8 + $0xc08] sm:$0xff]
    %v1517 = vld [vmem:[#allocation8 + $0xc10] sm:$0xff]
    %v1518 = vld [vmem:[#allocation8 + $0xc18] sm:$0xff]
    %v1519 = vld [vmem:[#allocation8 + $0xc20] sm:$0xff]
    %v1520 = vld [vmem:[#allocation8 + $0xc28] sm:$0xff]
    %v1521 = vld [vmem:[#allocation8 + $0xc30] sm:$0xff]
    %v1522 = vld [vmem:[#allocation8 + $0xc38] sm:$0xff]
    %v1523 = vld [vmem:[#allocation8 + $0xc40] sm:$0xff]
    %v1524 = vld [vmem:[#allocation8 + $0xc48] sm:$0xff]
    %v1525 = vld [vmem:[#allocation8 + $0xc50] sm:$0xff]
    %v1526 = vld [vmem:[#allocation8 + $0xc58] sm:$0xff]
    %v1527 = vld [vmem:[#allocation8 + $0xc60] sm:$0xff]
    %v1528 = vld [vmem:[#allocation8 + $0xc68] sm:$0xff]
    %v1529 = vld [vmem:[#allocation8 + $0xc70] sm:$0xff]
    %v1530 = vld [vmem:[#allocation8 + $0xc78] sm:$0xff]
    %v1531 = vld [vmem:[#allocation8 + $0xc80] sm:$0xff]
    %v1532 = vld [vmem:[#allocation8 + $0xc88] sm:$0xff]
    %v1533 = vld [vmem:[#allocation8 + $0xc90] sm:$0xff]
    %v1534 = vld [vmem:[#allocation8 + $0xc98] sm:$0xff]
    %v1535 = vld [vmem:[#allocation8 + $0xca0] sm:$0xff]
    %v1536 = vld [vmem:[#allocation8 + $0xca8] sm:$0xff]
    %v1537 = vld [vmem:[#allocation8 + $0xcb0] sm:$0xff]
    %v1538 = vld [vmem:[#allocation8 + $0xcb8] sm:$0xff]
    %v1539 = vld [vmem:[#allocation8 + $0xcc0] sm:$0xff]
    %v1540 = vld [vmem:[#allocation8 + $0xcc8] sm:$0xff]
    %v1541 = vld [vmem:[#allocation8 + $0xcd0] sm:$0xff]
    %v1542 = vld [vmem:[#allocation8 + $0xcd8] sm:$0xff]
    %v1543 = vld [vmem:[#allocation8 + $0xce0] sm:$0xff]
    %v1544 = vld [vmem:[#allocation8 + $0xce8] sm:$0xff]
    %v1545 = vld [vmem:[#allocation8 + $0xcf0] sm:$0xff]
    %v1546 = vld [vmem:[#allocation8 + $0xcf8] sm:$0xff]
    %v1547 = vld [vmem:[#allocation8 + $0xd00] sm:$0xff]
    %v1548 = vld [vmem:[#allocation8 + $0xd08] sm:$0xff]
    %v1549 = vld [vmem:[#allocation8 + $0xd10] sm:$0xff]
    %v1550 = vld [vmem:[#allocation8 + $0xd18] sm:$0xff]
    %v1551 = vld [vmem:[#allocation8 + $0xd20] sm:$0xff]
    %v1552 = vld [vmem:[#allocation8 + $0xd28] sm:$0xff]
    %v1553 = vld [vmem:[#allocation8 + $0xd30] sm:$0xff]
    %v1554 = vld [vmem:[#allocation8 + $0xd38] sm:$0xff]
    %v1555 = vld [vmem:[#allocation8 + $0xd40] sm:$0xff]
    %v1556 = vld [vmem:[#allocation8 + $0xd48] sm:$0xff]
    %v1557 = vld [vmem:[#allocation8 + $0xd50] sm:$0xff]
    %v1558 = vld [vmem:[#allocation8 + $0xd58] sm:$0xff]
    %v1559 = vld [vmem:[#allocation8 + $0xd60] sm:$0xff]
    %v1560 = vld [vmem:[#allocation8 + $0xd68] sm:$0xff]
    %v1561 = vld [vmem:[#allocation8 + $0xd70] sm:$0xff]
    %v1562 = vld [vmem:[#allocation8 + $0xd78] sm:$0xff]
    %v1563 = vld [vmem:[#allocation8 + $0xd80] sm:$0xff]
    %v1564 = vld [vmem:[#allocation8 + $0xd88] sm:$0xff]
    %v1565 = vld [vmem:[#allocation8 + $0xd90] sm:$0xff]
    %v1566 = vld [vmem:[#allocation8 + $0xd98] sm:$0xff]
    %v1567 = vld [vmem:[#allocation8 + $0xda0] sm:$0xff]
    %v1568 = vld [vmem:[#allocation8 + $0xda8] sm:$0xff]
    %v1569 = vld [vmem:[#allocation8 + $0xdb0] sm:$0xff]
    %v1570 = vld [vmem:[#allocation8 + $0xdb8] sm:$0xff]
    %v1571 = vld [vmem:[#allocation8 + $0xdc0] sm:$0xff]
    %v1572 = vld [vmem:[#allocation8 + $0xdc8] sm:$0xff]
    %v1573 = vld [vmem:[#allocation8 + $0xdd0] sm:$0xff]
    %v1574 = vld [vmem:[#allocation8 + $0xdd8] sm:$0xff]
    %v1575 = vld [vmem:[#allocation8 + $0xde0] sm:$0xff]
    %v1576 = vld [vmem:[#allocation8 + $0xde8] sm:$0xff]
    %v1577 = vld [vmem:[#allocation8 + $0xdf0] sm:$0xff]
    %v1578 = vld [vmem:[#allocation8 + $0xdf8] sm:$0xff]
    %v1579 = vld [vmem:[#allocation8 + $0xe00] sm:$0xff]
    %v1580 = vld [vmem:[#allocation8 + $0xe08] sm:$0xff]
    %v1581 = vld [vmem:[#allocation8 + $0xe10] sm:$0xff]
    %v1582 = vld [vmem:[#allocation8 + $0xe18] sm:$0xff]
    %v1583 = vld [vmem:[#allocation8 + $0xe20] sm:$0xff]
    %v1584 = vld [vmem:[#allocation8 + $0xe28] sm:$0xff]
    %v1585 = vld [vmem:[#allocation8 + $0xe30] sm:$0xff]
    %v1586 = vld [vmem:[#allocation8 + $0xe38] sm:$0xff]
    %v1587 = vld [vmem:[#allocation8 + $0xe40] sm:$0xff]
    %v1588 = vld [vmem:[#allocation8 + $0xe48] sm:$0xff]
    %v1589 = vld [vmem:[#allocation8 + $0xe50] sm:$0xff]
    %v1590 = vld [vmem:[#allocation8 + $0xe58] sm:$0xff]
    %v1591 = vld [vmem:[#allocation8 + $0xe60] sm:$0xff]
    %v1592 = vld [vmem:[#allocation8 + $0xe68] sm:$0xff]
    %v1593 = vld [vmem:[#allocation8 + $0xe70] sm:$0xff]
    %v1594 = vld [vmem:[#allocation8 + $0xe78] sm:$0xff]
    %v1595 = vld [vmem:[#allocation8 + $0xe80] sm:$0xff]
    %v1596 = vld [vmem:[#allocation8 + $0xe88] sm:$0xff]
    %v1597 = vld [vmem:[#allocation8 + $0xe90] sm:$0xff]
    %v1598 = vld [vmem:[#allocation8 + $0xe98] sm:$0xff]
    %v1599 = vld [vmem:[#allocation8 + $0xea0] sm:$0xff]
    %v1600 = vld [vmem:[#allocation8 + $0xea8] sm:$0xff]
    %v1601 = vld [vmem:[#allocation8 + $0xeb0] sm:$0xff]
    %v1602 = vld [vmem:[#allocation8 + $0xeb8] sm:$0xff]
    %v1603 = vld [vmem:[#allocation8 + $0xec0] sm:$0xff]
    %v1604 = vld [vmem:[#allocation8 + $0xec8] sm:$0xff]
    %v1605 = vld [vmem:[#allocation8 + $0xed0] sm:$0xff]
    %v1606 = vld [vmem:[#allocation8 + $0xed8] sm:$0xff]
    %v1607 = vld [vmem:[#allocation8 + $0xee0] sm:$0xff]
    %v1608 = vld [vmem:[#allocation8 + $0xee8] sm:$0xff]
    %v1609 = vld [vmem:[#allocation8 + $0xef0] sm:$0xff]
    %v1610 = vld [vmem:[#allocation8 + $0xef8] sm:$0xff]
    %v1611 = vld [vmem:[#allocation8 + $0xf00] sm:$0xff]
    %v1612 = vld [vmem:[#allocation8 + $0xf08] sm:$0xff]
    %v1613 = vld [vmem:[#allocation8 + $0xf10] sm:$0xff]
    %v1614 = vld [vmem:[#allocation8 + $0xf18] sm:$0xff]
    %v1615 = vld [vmem:[#allocation8 + $0xf20] sm:$0xff]
    %v1616 = vld [vmem:[#allocation8 + $0xf28] sm:$0xff]
    %v1617 = vld [vmem:[#allocation8 + $0xf30] sm:$0xff]
    %v1618 = vld [vmem:[#allocation8 + $0xf38] sm:$0xff]
    %v1619 = vld [vmem:[#allocation8 + $0xf40] sm:$0xff]
    %v1620 = vld [vmem:[#allocation8 + $0xf48] sm:$0xff]
    %v1621 = vld [vmem:[#allocation8 + $0xf50] sm:$0xff]
    %v1622 = vld [vmem:[#allocation8 + $0xf58] sm:$0xff]
    %v1623 = vld [vmem:[#allocation8 + $0xf60] sm:$0xff]
    %v1624 = vld [vmem:[#allocation8 + $0xf68] sm:$0xff]
    %v1625 = vld [vmem:[#allocation8 + $0xf70] sm:$0xff]
    %v1626 = vld [vmem:[#allocation8 + $0xf78] sm:$0xff]
    %v1627 = vld [vmem:[#allocation8 + $0xf80] sm:$0xff]
    %v1628 = vld [vmem:[#allocation8 + $0xf88] sm:$0xff]
    %v1629 = vld [vmem:[#allocation8 + $0xf90] sm:$0xff]
    %v1630 = vld [vmem:[#allocation8 + $0xf98] sm:$0xff]
    %v1631 = vld [vmem:[#allocation8 + $0xfa0] sm:$0xff]
    %v1632 = vld [vmem:[#allocation8 + $0xfa8] sm:$0xff]
    %v1633 = vld [vmem:[#allocation8 + $0xfb0] sm:$0xff]
    %v1634 = vld [vmem:[#allocation8 + $0xfb8] sm:$0xff]
    %v1635 = vld [vmem:[#allocation8 + $0xfc0] sm:$0xff]
    %v1636 = vld [vmem:[#allocation8 + $0xfc8] sm:$0xff]
    %v1637 = vld [vmem:[#allocation8 + $0xfd0] sm:$0xff]
    %v1638 = vld [vmem:[#allocation8 + $0xfd8] sm:$0xff]
    %v1639 = vld [vmem:[#allocation8 + $0xfe0] sm:$0xff]
    %v1640 = vld [vmem:[#allocation8 + $0xfe8] sm:$0xff]
    %v1641 = vld [vmem:[#allocation8 + $0xff0] sm:$0xff]
    %v1642 = vld [vmem:[#allocation8 + $0xff8] sm:$0xff]
    %v1643 = vld [vmem:[#allocation10] sm:$0xff]
    %v1645 = vlaneseq
    %v1646 = vshrl.u32 %v1645, 7
    %v1647 = vsub.s32 0, %v1646
    %v1648 = vrot.slane %v1643, %v1647
    %v1649 = vlaneseq
    %v1650 = vshrl.u32 %v1649, 7
    %v1651 = vsub.s32 1, %v1650
    %v1652 = vrot.slane %v1643, %v1651
    %v1653 = vlaneseq
    %v1654 = vshrl.u32 %v1653, 7
    %v1655 = vsub.s32 2, %v1654
    %v1656 = vrot.slane %v1643, %v1655
    %v1657 = vlaneseq
    %v1658 = vshrl.u32 %v1657, 7
    %v1659 = vsub.s32 3, %v1658
    %v1660 = vrot.slane %v1643, %v1659
    %v1661 = vlaneseq
    %v1662 = vshrl.u32 %v1661, 7
    %v1663 = vsub.s32 4, %v1662
    %v1664 = vrot.slane %v1643, %v1663
    %v1665 = vlaneseq
    %v1666 = vshrl.u32 %v1665, 7
    %v1667 = vsub.s32 5, %v1666
    %v1668 = vrot.slane %v1643, %v1667
    %v1669 = vlaneseq
    %v1670 = vshrl.u32 %v1669, 7
    %v1671 = vsub.s32 6, %v1670
    %v1672 = vrot.slane %v1643, %v1671
    %v1673 = vlaneseq
    %v1674 = vshrl.u32 %v1673, 7
    %v1675 = vsub.s32 7, %v1674
    %v1676 = vrot.slane %v1643, %v1675
    %v2197 = vunpack.c.l.b16 %v1131
    %v2198 = vunpack.c.h.b16 %v1131
    %v2199 = vunpack.c.l.b16 %v1132
    %v2200 = vunpack.c.h.b16 %v1132
    %v2201 = vunpack.c.l.b16 %v1133
    %v2202 = vunpack.c.h.b16 %v1133
    %v2203 = vunpack.c.l.b16 %v1134
    %v2204 = vunpack.c.h.b16 %v1134
    %v2205 = vunpack.c.l.b16 %v1135
    %v2206 = vunpack.c.h.b16 %v1135
    %v2207 = vunpack.c.l.b16 %v1136
    %v2208 = vunpack.c.h.b16 %v1136
    %v2209 = vunpack.c.l.b16 %v1137
    %v2210 = vunpack.c.h.b16 %v1137
    %v2211 = vunpack.c.l.b16 %v1138
    %v2212 = vunpack.c.h.b16 %v1138
    %v2213 = vunpack.c.l.b16 %v1139
    %v2214 = vunpack.c.h.b16 %v1139
    %v2215 = vunpack.c.l.b16 %v1140
    %v2216 = vunpack.c.h.b16 %v1140
    %v2217 = vunpack.c.l.b16 %v1141
    %v2218 = vunpack.c.h.b16 %v1141
    %v2219 = vunpack.c.l.b16 %v1142
    %v2220 = vunpack.c.h.b16 %v1142
    %v2221 = vunpack.c.l.b16 %v1143
    %v2222 = vunpack.c.h.b16 %v1143
    %v2223 = vunpack.c.l.b16 %v1144
    %v2224 = vunpack.c.h.b16 %v1144
    %v2225 = vunpack.c.l.b16 %v1145
    %v2226 = vunpack.c.h.b16 %v1145
    %v2227 = vunpack.c.l.b16 %v1146
    %v2228 = vunpack.c.h.b16 %v1146
    %v2229 = vunpack.c.l.b16 %v1147
    %v2230 = vunpack.c.h.b16 %v1147
    %v2231 = vunpack.c.l.b16 %v1148
    %v2232 = vunpack.c.h.b16 %v1148
    %v2233 = vunpack.c.l.b16 %v1149
    %v2234 = vunpack.c.h.b16 %v1149
    %v2235 = vunpack.c.l.b16 %v1150
    %v2236 = vunpack.c.h.b16 %v1150
    %v2237 = vunpack.c.l.b16 %v1151
    %v2238 = vunpack.c.h.b16 %v1151
    %v2239 = vunpack.c.l.b16 %v1152
    %v2240 = vunpack.c.h.b16 %v1152
    %v2241 = vunpack.c.l.b16 %v1153
    %v2242 = vunpack.c.h.b16 %v1153
    %v2243 = vunpack.c.l.b16 %v1154
    %v2244 = vunpack.c.h.b16 %v1154
    %v2245 = vunpack.c.l.b16 %v1155
    %v2246 = vunpack.c.h.b16 %v1155
    %v2247 = vunpack.c.l.b16 %v1156
    %v2248 = vunpack.c.h.b16 %v1156
    %v2249 = vunpack.c.l.b16 %v1157
    %v2250 = vunpack.c.h.b16 %v1157
    %v2251 = vunpack.c.l.b16 %v1158
    %v2252 = vunpack.c.h.b16 %v1158
    %v2253 = vunpack.c.l.b16 %v1159
    %v2254 = vunpack.c.h.b16 %v1159
    %v2255 = vunpack.c.l.b16 %v1160
    %v2256 = vunpack.c.h.b16 %v1160
    %v2257 = vunpack.c.l.b16 %v1161
    %v2258 = vunpack.c.h.b16 %v1161
    %v2259 = vunpack.c.l.b16 %v1162
    %v2260 = vunpack.c.h.b16 %v1162
    %v2261 = vunpack.c.l.b16 %v1163
    %v2262 = vunpack.c.h.b16 %v1163
    %v2263 = vunpack.c.l.b16 %v1164
    %v2264 = vunpack.c.h.b16 %v1164
    %v2265 = vunpack.c.l.b16 %v1165
    %v2266 = vunpack.c.h.b16 %v1165
    %v2267 = vunpack.c.l.b16 %v1166
    %v2268 = vunpack.c.h.b16 %v1166
    %v2269 = vunpack.c.l.b16 %v1167
    %v2270 = vunpack.c.h.b16 %v1167
    %v2271 = vunpack.c.l.b16 %v1168
    %v2272 = vunpack.c.h.b16 %v1168
    %v2273 = vunpack.c.l.b16 %v1169
    %v2274 = vunpack.c.h.b16 %v1169
    %v2275 = vunpack.c.l.b16 %v1170
    %v2276 = vunpack.c.h.b16 %v1170
    %v2277 = vunpack.c.l.b16 %v1171
    %v2278 = vunpack.c.h.b16 %v1171
    %v2279 = vunpack.c.l.b16 %v1172
    %v2280 = vunpack.c.h.b16 %v1172
    %v2281 = vunpack.c.l.b16 %v1173
    %v2282 = vunpack.c.h.b16 %v1173
    %v2283 = vunpack.c.l.b16 %v1174
    %v2284 = vunpack.c.h.b16 %v1174
    %v2285 = vunpack.c.l.b16 %v1175
    %v2286 = vunpack.c.h.b16 %v1175
    %v2287 = vunpack.c.l.b16 %v1176
    %v2288 = vunpack.c.h.b16 %v1176
    %v2289 = vunpack.c.l.b16 %v1177
    %v2290 = vunpack.c.h.b16 %v1177
    %v2291 = vunpack.c.l.b16 %v1178
    %v2292 = vunpack.c.h.b16 %v1178
    %v2293 = vunpack.c.l.b16 %v1179
    %v2294 = vunpack.c.h.b16 %v1179
    %v2295 = vunpack.c.l.b16 %v1180
    %v2296 = vunpack.c.h.b16 %v1180
    %v2297 = vunpack.c.l.b16 %v1181
    %v2298 = vunpack.c.h.b16 %v1181
    %v2299 = vunpack.c.l.b16 %v1182
    %v2300 = vunpack.c.h.b16 %v1182
    %v2301 = vunpack.c.l.b16 %v1183
    %v2302 = vunpack.c.h.b16 %v1183
    %v2303 = vunpack.c.l.b16 %v1184
    %v2304 = vunpack.c.h.b16 %v1184
    %v2305 = vunpack.c.l.b16 %v1185
    %v2306 = vunpack.c.h.b16 %v1185
    %v2307 = vunpack.c.l.b16 %v1186
    %v2308 = vunpack.c.h.b16 %v1186
    %v2309 = vunpack.c.l.b16 %v1187
    %v2310 = vunpack.c.h.b16 %v1187
    %v2311 = vunpack.c.l.b16 %v1188
    %v2312 = vunpack.c.h.b16 %v1188
    %v2313 = vunpack.c.l.b16 %v1189
    %v2314 = vunpack.c.h.b16 %v1189
    %v2315 = vunpack.c.l.b16 %v1190
    %v2316 = vunpack.c.h.b16 %v1190
    %v2317 = vunpack.c.l.b16 %v1191
    %v2318 = vunpack.c.h.b16 %v1191
    %v2319 = vunpack.c.l.b16 %v1192
    %v2320 = vunpack.c.h.b16 %v1192
    %v2321 = vunpack.c.l.b16 %v1193
    %v2322 = vunpack.c.h.b16 %v1193
    %v2323 = vunpack.c.l.b16 %v1194
    %v2324 = vunpack.c.h.b16 %v1194
    %v2325 = vunpack.c.l.b16 %v1195
    %v2326 = vunpack.c.h.b16 %v1195
    %v2327 = vunpack.c.l.b16 %v1196
    %v2328 = vunpack.c.h.b16 %v1196
    %v2329 = vunpack.c.l.b16 %v1197
    %v2330 = vunpack.c.h.b16 %v1197
    %v2331 = vunpack.c.l.b16 %v1198
    %v2332 = vunpack.c.h.b16 %v1198
    %v2333 = vunpack.c.l.b16 %v1199
    %v2334 = vunpack.c.h.b16 %v1199
    %v2335 = vunpack.c.l.b16 %v1200
    %v2336 = vunpack.c.h.b16 %v1200
    %v2337 = vunpack.c.l.b16 %v1201
    %v2338 = vunpack.c.h.b16 %v1201
    %v2339 = vunpack.c.l.b16 %v1202
    %v2340 = vunpack.c.h.b16 %v1202
    %v2341 = vunpack.c.l.b16 %v1203
    %v2342 = vunpack.c.h.b16 %v1203
    %v2343 = vunpack.c.l.b16 %v1204
    %v2344 = vunpack.c.h.b16 %v1204
    %v2345 = vunpack.c.l.b16 %v1205
    %v2346 = vunpack.c.h.b16 %v1205
    %v2347 = vunpack.c.l.b16 %v1206
    %v2348 = vunpack.c.h.b16 %v1206
    %v2349 = vunpack.c.l.b16 %v1207
    %v2350 = vunpack.c.h.b16 %v1207
    %v2351 = vunpack.c.l.b16 %v1208
    %v2352 = vunpack.c.h.b16 %v1208
    %v2353 = vunpack.c.l.b16 %v1209
    %v2354 = vunpack.c.h.b16 %v1209
    %v2355 = vunpack.c.l.b16 %v1210
    %v2356 = vunpack.c.h.b16 %v1210
    %v2357 = vunpack.c.l.b16 %v1211
    %v2358 = vunpack.c.h.b16 %v1211
    %v2359 = vunpack.c.l.b16 %v1212
    %v2360 = vunpack.c.h.b16 %v1212
    %v2361 = vunpack.c.l.b16 %v1213
    %v2362 = vunpack.c.h.b16 %v1213
    %v2363 = vunpack.c.l.b16 %v1214
    %v2364 = vunpack.c.h.b16 %v1214
    %v2365 = vunpack.c.l.b16 %v1215
    %v2366 = vunpack.c.h.b16 %v1215
    %v2367 = vunpack.c.l.b16 %v1216
    %v2368 = vunpack.c.h.b16 %v1216
    %v2369 = vunpack.c.l.b16 %v1217
    %v2370 = vunpack.c.h.b16 %v1217
    %v2371 = vunpack.c.l.b16 %v1218
    %v2372 = vunpack.c.h.b16 %v1218
    %v2373 = vunpack.c.l.b16 %v1219
    %v2374 = vunpack.c.h.b16 %v1219
    %v2375 = vunpack.c.l.b16 %v1220
    %v2376 = vunpack.c.h.b16 %v1220
    %v2377 = vunpack.c.l.b16 %v1221
    %v2378 = vunpack.c.h.b16 %v1221
    %v2379 = vunpack.c.l.b16 %v1222
    %v2380 = vunpack.c.h.b16 %v1222
    %v2381 = vunpack.c.l.b16 %v1223
    %v2382 = vunpack.c.h.b16 %v1223
    %v2383 = vunpack.c.l.b16 %v1224
    %v2384 = vunpack.c.h.b16 %v1224
    %v2385 = vunpack.c.l.b16 %v1225
    %v2386 = vunpack.c.h.b16 %v1225
    %v2387 = vunpack.c.l.b16 %v1226
    %v2388 = vunpack.c.h.b16 %v1226
    %v2389 = vunpack.c.l.b16 %v1227
    %v2390 = vunpack.c.h.b16 %v1227
    %v2391 = vunpack.c.l.b16 %v1228
    %v2392 = vunpack.c.h.b16 %v1228
    %v2393 = vunpack.c.l.b16 %v1229
    %v2394 = vunpack.c.h.b16 %v1229
    %v2395 = vunpack.c.l.b16 %v1230
    %v2396 = vunpack.c.h.b16 %v1230
    %v2397 = vunpack.c.l.b16 %v1231
    %v2398 = vunpack.c.h.b16 %v1231
    %v2399 = vunpack.c.l.b16 %v1232
    %v2400 = vunpack.c.h.b16 %v1232
    %v2401 = vunpack.c.l.b16 %v1233
    %v2402 = vunpack.c.h.b16 %v1233
    %v2403 = vunpack.c.l.b16 %v1234
    %v2404 = vunpack.c.h.b16 %v1234
    %v2405 = vunpack.c.l.b16 %v1235
    %v2406 = vunpack.c.h.b16 %v1235
    %v2407 = vunpack.c.l.b16 %v1236
    %v2408 = vunpack.c.h.b16 %v1236
    %v2409 = vunpack.c.l.b16 %v1237
    %v2410 = vunpack.c.h.b16 %v1237
    %v2411 = vunpack.c.l.b16 %v1238
    %v2412 = vunpack.c.h.b16 %v1238
    %v2413 = vunpack.c.l.b16 %v1239
    %v2414 = vunpack.c.h.b16 %v1239
    %v2415 = vunpack.c.l.b16 %v1240
    %v2416 = vunpack.c.h.b16 %v1240
    %v2417 = vunpack.c.l.b16 %v1241
    %v2418 = vunpack.c.h.b16 %v1241
    %v2419 = vunpack.c.l.b16 %v1242
    %v2420 = vunpack.c.h.b16 %v1242
    %v2421 = vunpack.c.l.b16 %v1243
    %v2422 = vunpack.c.h.b16 %v1243
    %v2423 = vunpack.c.l.b16 %v1244
    %v2424 = vunpack.c.h.b16 %v1244
    %v2425 = vunpack.c.l.b16 %v1245
    %v2426 = vunpack.c.h.b16 %v1245
    %v2427 = vunpack.c.l.b16 %v1246
    %v2428 = vunpack.c.h.b16 %v1246
    %v2429 = vunpack.c.l.b16 %v1247
    %v2430 = vunpack.c.h.b16 %v1247
    %v2431 = vunpack.c.l.b16 %v1248
    %v2432 = vunpack.c.h.b16 %v1248
    %v2433 = vunpack.c.l.b16 %v1249
    %v2434 = vunpack.c.h.b16 %v1249
    %v2435 = vunpack.c.l.b16 %v1250
    %v2436 = vunpack.c.h.b16 %v1250
    %v2437 = vunpack.c.l.b16 %v1251
    %v2438 = vunpack.c.h.b16 %v1251
    %v2439 = vunpack.c.l.b16 %v1252
    %v2440 = vunpack.c.h.b16 %v1252
    %v2441 = vunpack.c.l.b16 %v1253
    %v2442 = vunpack.c.h.b16 %v1253
    %v2443 = vunpack.c.l.b16 %v1254
    %v2444 = vunpack.c.h.b16 %v1254
    %v2445 = vunpack.c.l.b16 %v1255
    %v2446 = vunpack.c.h.b16 %v1255
    %v2447 = vunpack.c.l.b16 %v1256
    %v2448 = vunpack.c.h.b16 %v1256
    %v2449 = vunpack.c.l.b16 %v1257
    %v2450 = vunpack.c.h.b16 %v1257
    %v2451 = vunpack.c.l.b16 %v1258
    %v2452 = vunpack.c.h.b16 %v1258
    %v2453 = vunpack.c.l.b16 %v1259
    %v2454 = vunpack.c.h.b16 %v1259
    %v2455 = vunpack.c.l.b16 %v1260
    %v2456 = vunpack.c.h.b16 %v1260
    %v2457 = vunpack.c.l.b16 %v1261
    %v2458 = vunpack.c.h.b16 %v1261
    %v2459 = vunpack.c.l.b16 %v1262
    %v2460 = vunpack.c.h.b16 %v1262
    %v2461 = vunpack.c.l.b16 %v1263
    %v2462 = vunpack.c.h.b16 %v1263
    %v2463 = vunpack.c.l.b16 %v1264
    %v2464 = vunpack.c.h.b16 %v1264
    %v2465 = vunpack.c.l.b16 %v1265
    %v2466 = vunpack.c.h.b16 %v1265
    %v2467 = vunpack.c.l.b16 %v1266
    %v2468 = vunpack.c.h.b16 %v1266
    %v2469 = vunpack.c.l.b16 %v1267
    %v2470 = vunpack.c.h.b16 %v1267
    %v2471 = vunpack.c.l.b16 %v1268
    %v2472 = vunpack.c.h.b16 %v1268
    %v2473 = vunpack.c.l.b16 %v1269
    %v2474 = vunpack.c.h.b16 %v1269
    %v2475 = vunpack.c.l.b16 %v1270
    %v2476 = vunpack.c.h.b16 %v1270
    %v2477 = vunpack.c.l.b16 %v1271
    %v2478 = vunpack.c.h.b16 %v1271
    %v2479 = vunpack.c.l.b16 %v1272
    %v2480 = vunpack.c.h.b16 %v1272
    %v2481 = vunpack.c.l.b16 %v1273
    %v2482 = vunpack.c.h.b16 %v1273
    %v2483 = vunpack.c.l.b16 %v1274
    %v2484 = vunpack.c.h.b16 %v1274
    %v2485 = vunpack.c.l.b16 %v1275
    %v2486 = vunpack.c.h.b16 %v1275
    %v2487 = vunpack.c.l.b16 %v1276
    %v2488 = vunpack.c.h.b16 %v1276
    %v2489 = vunpack.c.l.b16 %v1277
    %v2490 = vunpack.c.h.b16 %v1277
    %v2491 = vunpack.c.l.b16 %v1278
    %v2492 = vunpack.c.h.b16 %v1278
    %v2493 = vunpack.c.l.b16 %v1279
    %v2494 = vunpack.c.h.b16 %v1279
    %v2495 = vunpack.c.l.b16 %v1280
    %v2496 = vunpack.c.h.b16 %v1280
    %v2497 = vunpack.c.l.b16 %v1281
    %v2498 = vunpack.c.h.b16 %v1281
    %v2499 = vunpack.c.l.b16 %v1282
    %v2500 = vunpack.c.h.b16 %v1282
    %v2501 = vunpack.c.l.b16 %v1283
    %v2502 = vunpack.c.h.b16 %v1283
    %v2503 = vunpack.c.l.b16 %v1284
    %v2504 = vunpack.c.h.b16 %v1284
    %v2505 = vunpack.c.l.b16 %v1285
    %v2506 = vunpack.c.h.b16 %v1285
    %v2507 = vunpack.c.l.b16 %v1286
    %v2508 = vunpack.c.h.b16 %v1286
    %v2509 = vunpack.c.l.b16 %v1287
    %v2510 = vunpack.c.h.b16 %v1287
    %v2511 = vunpack.c.l.b16 %v1288
    %v2512 = vunpack.c.h.b16 %v1288
    %v2513 = vunpack.c.l.b16 %v1289
    %v2514 = vunpack.c.h.b16 %v1289
    %v2515 = vunpack.c.l.b16 %v1290
    %v2516 = vunpack.c.h.b16 %v1290
    %v2517 = vunpack.c.l.b16 %v1291
    %v2518 = vunpack.c.h.b16 %v1291
    %v2519 = vunpack.c.l.b16 %v1292
    %v2520 = vunpack.c.h.b16 %v1292
    %v2521 = vunpack.c.l.b16 %v1293
    %v2522 = vunpack.c.h.b16 %v1293
    %v2523 = vunpack.c.l.b16 %v1294
    %v2524 = vunpack.c.h.b16 %v1294
    %v2525 = vunpack.c.l.b16 %v1295
    %v2526 = vunpack.c.h.b16 %v1295
    %v2527 = vunpack.c.l.b16 %v1296
    %v2528 = vunpack.c.h.b16 %v1296
    %v2529 = vunpack.c.l.b16 %v1297
    %v2530 = vunpack.c.h.b16 %v1297
    %v2531 = vunpack.c.l.b16 %v1298
    %v2532 = vunpack.c.h.b16 %v1298
    %v2533 = vunpack.c.l.b16 %v1299
    %v2534 = vunpack.c.h.b16 %v1299
    %v2535 = vunpack.c.l.b16 %v1300
    %v2536 = vunpack.c.h.b16 %v1300
    %v2537 = vunpack.c.l.b16 %v1301
    %v2538 = vunpack.c.h.b16 %v1301
    %v2539 = vunpack.c.l.b16 %v1302
    %v2540 = vunpack.c.h.b16 %v1302
    %v2541 = vunpack.c.l.b16 %v1303
    %v2542 = vunpack.c.h.b16 %v1303
    %v2543 = vunpack.c.l.b16 %v1304
    %v2544 = vunpack.c.h.b16 %v1304
    %v2545 = vunpack.c.l.b16 %v1305
    %v2546 = vunpack.c.h.b16 %v1305
    %v2547 = vunpack.c.l.b16 %v1306
    %v2548 = vunpack.c.h.b16 %v1306
    %v2549 = vunpack.c.l.b16 %v1307
    %v2550 = vunpack.c.h.b16 %v1307
    %v2551 = vunpack.c.l.b16 %v1308
    %v2552 = vunpack.c.h.b16 %v1308
    %v2553 = vunpack.c.l.b16 %v1309
    %v2554 = vunpack.c.h.b16 %v1309
    %v2555 = vunpack.c.l.b16 %v1310
    %v2556 = vunpack.c.h.b16 %v1310
    %v2557 = vunpack.c.l.b16 %v1311
    %v2558 = vunpack.c.h.b16 %v1311
    %v2559 = vunpack.c.l.b16 %v1312
    %v2560 = vunpack.c.h.b16 %v1312
    %v2561 = vunpack.c.l.b16 %v1313
    %v2562 = vunpack.c.h.b16 %v1313
    %v2563 = vunpack.c.l.b16 %v1314
    %v2564 = vunpack.c.h.b16 %v1314
    %v2565 = vunpack.c.l.b16 %v1315
    %v2566 = vunpack.c.h.b16 %v1315
    %v2567 = vunpack.c.l.b16 %v1316
    %v2568 = vunpack.c.h.b16 %v1316
    %v2569 = vunpack.c.l.b16 %v1317
    %v2570 = vunpack.c.h.b16 %v1317
    %v2571 = vunpack.c.l.b16 %v1318
    %v2572 = vunpack.c.h.b16 %v1318
    %v2573 = vunpack.c.l.b16 %v1319
    %v2574 = vunpack.c.h.b16 %v1319
    %v2575 = vunpack.c.l.b16 %v1320
    %v2576 = vunpack.c.h.b16 %v1320
    %v2577 = vunpack.c.l.b16 %v1321
    %v2578 = vunpack.c.h.b16 %v1321
    %v2579 = vunpack.c.l.b16 %v1322
    %v2580 = vunpack.c.h.b16 %v1322
    %v2581 = vunpack.c.l.b16 %v1323
    %v2582 = vunpack.c.h.b16 %v1323
    %v2583 = vunpack.c.l.b16 %v1324
    %v2584 = vunpack.c.h.b16 %v1324
    %v2585 = vunpack.c.l.b16 %v1325
    %v2586 = vunpack.c.h.b16 %v1325
    %v2587 = vunpack.c.l.b16 %v1326
    %v2588 = vunpack.c.h.b16 %v1326
    %v2589 = vunpack.c.l.b16 %v1327
    %v2590 = vunpack.c.h.b16 %v1327
    %v2591 = vunpack.c.l.b16 %v1328
    %v2592 = vunpack.c.h.b16 %v1328
    %v2593 = vunpack.c.l.b16 %v1329
    %v2594 = vunpack.c.h.b16 %v1329
    %v2595 = vunpack.c.l.b16 %v1330
    %v2596 = vunpack.c.h.b16 %v1330
    %v2597 = vunpack.c.l.b16 %v1331
    %v2598 = vunpack.c.h.b16 %v1331
    %v2599 = vunpack.c.l.b16 %v1332
    %v2600 = vunpack.c.h.b16 %v1332
    %v2601 = vunpack.c.l.b16 %v1333
    %v2602 = vunpack.c.h.b16 %v1333
    %v2603 = vunpack.c.l.b16 %v1334
    %v2604 = vunpack.c.h.b16 %v1334
    %v2605 = vunpack.c.l.b16 %v1335
    %v2606 = vunpack.c.h.b16 %v1335
    %v2607 = vunpack.c.l.b16 %v1336
    %v2608 = vunpack.c.h.b16 %v1336
    %v2609 = vunpack.c.l.b16 %v1337
    %v2610 = vunpack.c.h.b16 %v1337
    %v2611 = vunpack.c.l.b16 %v1338
    %v2612 = vunpack.c.h.b16 %v1338
    %v2613 = vunpack.c.l.b16 %v1339
    %v2614 = vunpack.c.h.b16 %v1339
    %v2615 = vunpack.c.l.b16 %v1340
    %v2616 = vunpack.c.h.b16 %v1340
    %v2617 = vunpack.c.l.b16 %v1341
    %v2618 = vunpack.c.h.b16 %v1341
    %v2619 = vunpack.c.l.b16 %v1342
    %v2620 = vunpack.c.h.b16 %v1342
    %v2621 = vunpack.c.l.b16 %v1343
    %v2622 = vunpack.c.h.b16 %v1343
    %v2623 = vunpack.c.l.b16 %v1344
    %v2624 = vunpack.c.h.b16 %v1344
    %v2625 = vunpack.c.l.b16 %v1345
    %v2626 = vunpack.c.h.b16 %v1345
    %v2627 = vunpack.c.l.b16 %v1346
    %v2628 = vunpack.c.h.b16 %v1346
    %v2629 = vunpack.c.l.b16 %v1347
    %v2630 = vunpack.c.h.b16 %v1347
    %v2631 = vunpack.c.l.b16 %v1348
    %v2632 = vunpack.c.h.b16 %v1348
    %v2633 = vunpack.c.l.b16 %v1349
    %v2634 = vunpack.c.h.b16 %v1349
    %v2635 = vunpack.c.l.b16 %v1350
    %v2636 = vunpack.c.h.b16 %v1350
    %v2637 = vunpack.c.l.b16 %v1351
    %v2638 = vunpack.c.h.b16 %v1351
    %v2639 = vunpack.c.l.b16 %v1352
    %v2640 = vunpack.c.h.b16 %v1352
    %v2641 = vunpack.c.l.b16 %v1353
    %v2642 = vunpack.c.h.b16 %v1353
    %v2643 = vunpack.c.l.b16 %v1354
    %v2644 = vunpack.c.h.b16 %v1354
    %v2645 = vunpack.c.l.b16 %v1355
    %v2646 = vunpack.c.h.b16 %v1355
    %v2647 = vunpack.c.l.b16 %v1356
    %v2648 = vunpack.c.h.b16 %v1356
    %v2649 = vunpack.c.l.b16 %v1357
    %v2650 = vunpack.c.h.b16 %v1357
    %v2651 = vunpack.c.l.b16 %v1358
    %v2652 = vunpack.c.h.b16 %v1358
    %v2653 = vunpack.c.l.b16 %v1359
    %v2654 = vunpack.c.h.b16 %v1359
    %v2655 = vunpack.c.l.b16 %v1360
    %v2656 = vunpack.c.h.b16 %v1360
    %v2657 = vunpack.c.l.b16 %v1361
    %v2658 = vunpack.c.h.b16 %v1361
    %v2659 = vunpack.c.l.b16 %v1362
    %v2660 = vunpack.c.h.b16 %v1362
    %v2661 = vunpack.c.l.b16 %v1363
    %v2662 = vunpack.c.h.b16 %v1363
    %v2663 = vunpack.c.l.b16 %v1364
    %v2664 = vunpack.c.h.b16 %v1364
    %v2665 = vunpack.c.l.b16 %v1365
    %v2666 = vunpack.c.h.b16 %v1365
    %v2667 = vunpack.c.l.b16 %v1366
    %v2668 = vunpack.c.h.b16 %v1366
    %v2669 = vunpack.c.l.b16 %v1367
    %v2670 = vunpack.c.h.b16 %v1367
    %v2671 = vunpack.c.l.b16 %v1368
    %v2672 = vunpack.c.h.b16 %v1368
    %v2673 = vunpack.c.l.b16 %v1369
    %v2674 = vunpack.c.h.b16 %v1369
    %v2675 = vunpack.c.l.b16 %v1370
    %v2676 = vunpack.c.h.b16 %v1370
    %v2677 = vunpack.c.l.b16 %v1371
    %v2678 = vunpack.c.h.b16 %v1371
    %v2679 = vunpack.c.l.b16 %v1372
    %v2680 = vunpack.c.h.b16 %v1372
    %v2681 = vunpack.c.l.b16 %v1373
    %v2682 = vunpack.c.h.b16 %v1373
    %v2683 = vunpack.c.l.b16 %v1374
    %v2684 = vunpack.c.h.b16 %v1374
    %v2685 = vunpack.c.l.b16 %v1375
    %v2686 = vunpack.c.h.b16 %v1375
    %v2687 = vunpack.c.l.b16 %v1376
    %v2688 = vunpack.c.h.b16 %v1376
    %v2689 = vunpack.c.l.b16 %v1377
    %v2690 = vunpack.c.h.b16 %v1377
    %v2691 = vunpack.c.l.b16 %v1378
    %v2692 = vunpack.c.h.b16 %v1378
    %v2693 = vunpack.c.l.b16 %v1379
    %v2694 = vunpack.c.h.b16 %v1379
    %v2695 = vunpack.c.l.b16 %v1380
    %v2696 = vunpack.c.h.b16 %v1380
    %v2697 = vunpack.c.l.b16 %v1381
    %v2698 = vunpack.c.h.b16 %v1381
    %v2699 = vunpack.c.l.b16 %v1382
    %v2700 = vunpack.c.h.b16 %v1382
    %v2701 = vunpack.c.l.b16 %v1383
    %v2702 = vunpack.c.h.b16 %v1383
    %v2703 = vunpack.c.l.b16 %v1384
    %v2704 = vunpack.c.h.b16 %v1384
    %v2705 = vunpack.c.l.b16 %v1385
    %v2706 = vunpack.c.h.b16 %v1385
    %v2707 = vunpack.c.l.b16 %v1386
    %v2708 = vunpack.c.h.b16 %v1386
    %v2709 = vunpack.c.l.b16 %v1387
    %v2710 = vunpack.c.h.b16 %v1387
    %v2711 = vunpack.c.l.b16 %v1388
    %v2712 = vunpack.c.h.b16 %v1388
    %v2713 = vunpack.c.l.b16 %v1389
    %v2714 = vunpack.c.h.b16 %v1389
    %v2715 = vunpack.c.l.b16 %v1390
    %v2716 = vunpack.c.h.b16 %v1390
    %v2717 = vunpack.c.l.b16 %v1391
    %v2718 = vunpack.c.h.b16 %v1391
    %v2719 = vunpack.c.l.b16 %v1392
    %v2720 = vunpack.c.h.b16 %v1392
    %v2721 = vunpack.c.l.b16 %v1393
    %v2722 = vunpack.c.h.b16 %v1393
    %v2723 = vunpack.c.l.b16 %v1394
    %v2724 = vunpack.c.h.b16 %v1394
    %v2725 = vunpack.c.l.b16 %v1395
    %v2726 = vunpack.c.h.b16 %v1395
    %v2727 = vunpack.c.l.b16 %v1396
    %v2728 = vunpack.c.h.b16 %v1396
    %v2729 = vunpack.c.l.b16 %v1397
    %v2730 = vunpack.c.h.b16 %v1397
    %v2731 = vunpack.c.l.b16 %v1398
    %v2732 = vunpack.c.h.b16 %v1398
    %v2733 = vunpack.c.l.b16 %v1399
    %v2734 = vunpack.c.h.b16 %v1399
    %v2735 = vunpack.c.l.b16 %v1400
    %v2736 = vunpack.c.h.b16 %v1400
    %v2737 = vunpack.c.l.b16 %v1401
    %v2738 = vunpack.c.h.b16 %v1401
    %v2739 = vunpack.c.l.b16 %v1402
    %v2740 = vunpack.c.h.b16 %v1402
    %v2741 = vunpack.c.l.b16 %v1403
    %v2742 = vunpack.c.h.b16 %v1403
    %v2743 = vunpack.c.l.b16 %v1404
    %v2744 = vunpack.c.h.b16 %v1404
    %v2745 = vunpack.c.l.b16 %v1405
    %v2746 = vunpack.c.h.b16 %v1405
    %v2747 = vunpack.c.l.b16 %v1406
    %v2748 = vunpack.c.h.b16 %v1406
    %v2749 = vunpack.c.l.b16 %v1407
    %v2750 = vunpack.c.h.b16 %v1407
    %v2751 = vunpack.c.l.b16 %v1408
    %v2752 = vunpack.c.h.b16 %v1408
    %v2753 = vunpack.c.l.b16 %v1409
    %v2754 = vunpack.c.h.b16 %v1409
    %v2755 = vunpack.c.l.b16 %v1410
    %v2756 = vunpack.c.h.b16 %v1410
    %v2757 = vunpack.c.l.b16 %v1411
    %v2758 = vunpack.c.h.b16 %v1411
    %v2759 = vunpack.c.l.b16 %v1412
    %v2760 = vunpack.c.h.b16 %v1412
    %v2761 = vunpack.c.l.b16 %v1413
    %v2762 = vunpack.c.h.b16 %v1413
    %v2763 = vunpack.c.l.b16 %v1414
    %v2764 = vunpack.c.h.b16 %v1414
    %v2765 = vunpack.c.l.b16 %v1415
    %v2766 = vunpack.c.h.b16 %v1415
    %v2767 = vunpack.c.l.b16 %v1416
    %v2768 = vunpack.c.h.b16 %v1416
    %v2769 = vunpack.c.l.b16 %v1417
    %v2770 = vunpack.c.h.b16 %v1417
    %v2771 = vunpack.c.l.b16 %v1418
    %v2772 = vunpack.c.h.b16 %v1418
    %v2773 = vunpack.c.l.b16 %v1419
    %v2774 = vunpack.c.h.b16 %v1419
    %v2775 = vunpack.c.l.b16 %v1420
    %v2776 = vunpack.c.h.b16 %v1420
    %v2777 = vunpack.c.l.b16 %v1421
    %v2778 = vunpack.c.h.b16 %v1421
    %v2779 = vunpack.c.l.b16 %v1422
    %v2780 = vunpack.c.h.b16 %v1422
    %v2781 = vunpack.c.l.b16 %v1423
    %v2782 = vunpack.c.h.b16 %v1423
    %v2783 = vunpack.c.l.b16 %v1424
    %v2784 = vunpack.c.h.b16 %v1424
    %v2785 = vunpack.c.l.b16 %v1425
    %v2786 = vunpack.c.h.b16 %v1425
    %v2787 = vunpack.c.l.b16 %v1426
    %v2788 = vunpack.c.h.b16 %v1426
    %v2789 = vunpack.c.l.b16 %v1427
    %v2790 = vunpack.c.h.b16 %v1427
    %v2791 = vunpack.c.l.b16 %v1428
    %v2792 = vunpack.c.h.b16 %v1428
    %v2793 = vunpack.c.l.b16 %v1429
    %v2794 = vunpack.c.h.b16 %v1429
    %v2795 = vunpack.c.l.b16 %v1430
    %v2796 = vunpack.c.h.b16 %v1430
    %v2797 = vunpack.c.l.b16 %v1431
    %v2798 = vunpack.c.h.b16 %v1431
    %v2799 = vunpack.c.l.b16 %v1432
    %v2800 = vunpack.c.h.b16 %v1432
    %v2801 = vunpack.c.l.b16 %v1433
    %v2802 = vunpack.c.h.b16 %v1433
    %v2803 = vunpack.c.l.b16 %v1434
    %v2804 = vunpack.c.h.b16 %v1434
    %v2805 = vunpack.c.l.b16 %v1435
    %v2806 = vunpack.c.h.b16 %v1435
    %v2807 = vunpack.c.l.b16 %v1436
    %v2808 = vunpack.c.h.b16 %v1436
    %v2809 = vunpack.c.l.b16 %v1437
    %v2810 = vunpack.c.h.b16 %v1437
    %v2811 = vunpack.c.l.b16 %v1438
    %v2812 = vunpack.c.h.b16 %v1438
    %v2813 = vunpack.c.l.b16 %v1439
    %v2814 = vunpack.c.h.b16 %v1439
    %v2815 = vunpack.c.l.b16 %v1440
    %v2816 = vunpack.c.h.b16 %v1440
    %v2817 = vunpack.c.l.b16 %v1441
    %v2818 = vunpack.c.h.b16 %v1441
    %v2819 = vunpack.c.l.b16 %v1442
    %v2820 = vunpack.c.h.b16 %v1442
    %v2821 = vunpack.c.l.b16 %v1443
    %v2822 = vunpack.c.h.b16 %v1443
    %v2823 = vunpack.c.l.b16 %v1444
    %v2824 = vunpack.c.h.b16 %v1444
    %v2825 = vunpack.c.l.b16 %v1445
    %v2826 = vunpack.c.h.b16 %v1445
    %v2827 = vunpack.c.l.b16 %v1446
    %v2828 = vunpack.c.h.b16 %v1446
    %v2829 = vunpack.c.l.b16 %v1447
    %v2830 = vunpack.c.h.b16 %v1447
    %v2831 = vunpack.c.l.b16 %v1448
    %v2832 = vunpack.c.h.b16 %v1448
    %v2833 = vunpack.c.l.b16 %v1449
    %v2834 = vunpack.c.h.b16 %v1449
    %v2835 = vunpack.c.l.b16 %v1450
    %v2836 = vunpack.c.h.b16 %v1450
    %v2837 = vunpack.c.l.b16 %v1451
    %v2838 = vunpack.c.h.b16 %v1451
    %v2839 = vunpack.c.l.b16 %v1452
    %v2840 = vunpack.c.h.b16 %v1452
    %v2841 = vunpack.c.l.b16 %v1453
    %v2842 = vunpack.c.h.b16 %v1453
    %v2843 = vunpack.c.l.b16 %v1454
    %v2844 = vunpack.c.h.b16 %v1454
    %v2845 = vunpack.c.l.b16 %v1455
    %v2846 = vunpack.c.h.b16 %v1455
    %v2847 = vunpack.c.l.b16 %v1456
    %v2848 = vunpack.c.h.b16 %v1456
    %v2849 = vunpack.c.l.b16 %v1457
    %v2850 = vunpack.c.h.b16 %v1457
    %v2851 = vunpack.c.l.b16 %v1458
    %v2852 = vunpack.c.h.b16 %v1458
    %v2853 = vunpack.c.l.b16 %v1459
    %v2854 = vunpack.c.h.b16 %v1459
    %v2855 = vunpack.c.l.b16 %v1460
    %v2856 = vunpack.c.h.b16 %v1460
    %v2857 = vunpack.c.l.b16 %v1461
    %v2858 = vunpack.c.h.b16 %v1461
    %v2859 = vunpack.c.l.b16 %v1462
    %v2860 = vunpack.c.h.b16 %v1462
    %v2861 = vunpack.c.l.b16 %v1463
    %v2862 = vunpack.c.h.b16 %v1463
    %v2863 = vunpack.c.l.b16 %v1464
    %v2864 = vunpack.c.h.b16 %v1464
    %v2865 = vunpack.c.l.b16 %v1465
    %v2866 = vunpack.c.h.b16 %v1465
    %v2867 = vunpack.c.l.b16 %v1466
    %v2868 = vunpack.c.h.b16 %v1466
    %v2869 = vunpack.c.l.b16 %v1467
    %v2870 = vunpack.c.h.b16 %v1467
    %v2871 = vunpack.c.l.b16 %v1468
    %v2872 = vunpack.c.h.b16 %v1468
    %v2873 = vunpack.c.l.b16 %v1469
    %v2874 = vunpack.c.h.b16 %v1469
    %v2875 = vunpack.c.l.b16 %v1470
    %v2876 = vunpack.c.h.b16 %v1470
    %v2877 = vunpack.c.l.b16 %v1471
    %v2878 = vunpack.c.h.b16 %v1471
    %v2879 = vunpack.c.l.b16 %v1472
    %v2880 = vunpack.c.h.b16 %v1472
    %v2881 = vunpack.c.l.b16 %v1473
    %v2882 = vunpack.c.h.b16 %v1473
    %v2883 = vunpack.c.l.b16 %v1474
    %v2884 = vunpack.c.h.b16 %v1474
    %v2885 = vunpack.c.l.b16 %v1475
    %v2886 = vunpack.c.h.b16 %v1475
    %v2887 = vunpack.c.l.b16 %v1476
    %v2888 = vunpack.c.h.b16 %v1476
    %v2889 = vunpack.c.l.b16 %v1477
    %v2890 = vunpack.c.h.b16 %v1477
    %v2891 = vunpack.c.l.b16 %v1478
    %v2892 = vunpack.c.h.b16 %v1478
    %v2893 = vunpack.c.l.b16 %v1479
    %v2894 = vunpack.c.h.b16 %v1479
    %v2895 = vunpack.c.l.b16 %v1480
    %v2896 = vunpack.c.h.b16 %v1480
    %v2897 = vunpack.c.l.b16 %v1481
    %v2898 = vunpack.c.h.b16 %v1481
    %v2899 = vunpack.c.l.b16 %v1482
    %v2900 = vunpack.c.h.b16 %v1482
    %v2901 = vunpack.c.l.b16 %v1483
    %v2902 = vunpack.c.h.b16 %v1483
    %v2903 = vunpack.c.l.b16 %v1484
    %v2904 = vunpack.c.h.b16 %v1484
    %v2905 = vunpack.c.l.b16 %v1485
    %v2906 = vunpack.c.h.b16 %v1485
    %v2907 = vunpack.c.l.b16 %v1486
    %v2908 = vunpack.c.h.b16 %v1486
    %v2909 = vunpack.c.l.b16 %v1487
    %v2910 = vunpack.c.h.b16 %v1487
    %v2911 = vunpack.c.l.b16 %v1488
    %v2912 = vunpack.c.h.b16 %v1488
    %v2913 = vunpack.c.l.b16 %v1489
    %v2914 = vunpack.c.h.b16 %v1489
    %v2915 = vunpack.c.l.b16 %v1490
    %v2916 = vunpack.c.h.b16 %v1490
    %v2917 = vunpack.c.l.b16 %v1491
    %v2918 = vunpack.c.h.b16 %v1491
    %v2919 = vunpack.c.l.b16 %v1492
    %v2920 = vunpack.c.h.b16 %v1492
    %v2921 = vunpack.c.l.b16 %v1493
    %v2922 = vunpack.c.h.b16 %v1493
    %v2923 = vunpack.c.l.b16 %v1494
    %v2924 = vunpack.c.h.b16 %v1494
    %v2925 = vunpack.c.l.b16 %v1495
    %v2926 = vunpack.c.h.b16 %v1495
    %v2927 = vunpack.c.l.b16 %v1496
    %v2928 = vunpack.c.h.b16 %v1496
    %v2929 = vunpack.c.l.b16 %v1497
    %v2930 = vunpack.c.h.b16 %v1497
    %v2931 = vunpack.c.l.b16 %v1498
    %v2932 = vunpack.c.h.b16 %v1498
    %v2933 = vunpack.c.l.b16 %v1499
    %v2934 = vunpack.c.h.b16 %v1499
    %v2935 = vunpack.c.l.b16 %v1500
    %v2936 = vunpack.c.h.b16 %v1500
    %v2937 = vunpack.c.l.b16 %v1501
    %v2938 = vunpack.c.h.b16 %v1501
    %v2939 = vunpack.c.l.b16 %v1502
    %v2940 = vunpack.c.h.b16 %v1502
    %v2941 = vunpack.c.l.b16 %v1503
    %v2942 = vunpack.c.h.b16 %v1503
    %v2943 = vunpack.c.l.b16 %v1504
    %v2944 = vunpack.c.h.b16 %v1504
    %v2945 = vunpack.c.l.b16 %v1505
    %v2946 = vunpack.c.h.b16 %v1505
    %v2947 = vunpack.c.l.b16 %v1506
    %v2948 = vunpack.c.h.b16 %v1506
    %v2949 = vunpack.c.l.b16 %v1507
    %v2950 = vunpack.c.h.b16 %v1507
    %v2951 = vunpack.c.l.b16 %v1508
    %v2952 = vunpack.c.h.b16 %v1508
    %v2953 = vunpack.c.l.b16 %v1509
    %v2954 = vunpack.c.h.b16 %v1509
    %v2955 = vunpack.c.l.b16 %v1510
    %v2956 = vunpack.c.h.b16 %v1510
    %v2957 = vunpack.c.l.b16 %v1511
    %v2958 = vunpack.c.h.b16 %v1511
    %v2959 = vunpack.c.l.b16 %v1512
    %v2960 = vunpack.c.h.b16 %v1512
    %v2961 = vunpack.c.l.b16 %v1513
    %v2962 = vunpack.c.h.b16 %v1513
    %v2963 = vunpack.c.l.b16 %v1514
    %v2964 = vunpack.c.h.b16 %v1514
    %v2965 = vunpack.c.l.b16 %v1515
    %v2966 = vunpack.c.h.b16 %v1515
    %v2967 = vunpack.c.l.b16 %v1516
    %v2968 = vunpack.c.h.b16 %v1516
    %v2969 = vunpack.c.l.b16 %v1517
    %v2970 = vunpack.c.h.b16 %v1517
    %v2971 = vunpack.c.l.b16 %v1518
    %v2972 = vunpack.c.h.b16 %v1518
    %v2973 = vunpack.c.l.b16 %v1519
    %v2974 = vunpack.c.h.b16 %v1519
    %v2975 = vunpack.c.l.b16 %v1520
    %v2976 = vunpack.c.h.b16 %v1520
    %v2977 = vunpack.c.l.b16 %v1521
    %v2978 = vunpack.c.h.b16 %v1521
    %v2979 = vunpack.c.l.b16 %v1522
    %v2980 = vunpack.c.h.b16 %v1522
    %v2981 = vunpack.c.l.b16 %v1523
    %v2982 = vunpack.c.h.b16 %v1523
    %v2983 = vunpack.c.l.b16 %v1524
    %v2984 = vunpack.c.h.b16 %v1524
    %v2985 = vunpack.c.l.b16 %v1525
    %v2986 = vunpack.c.h.b16 %v1525
    %v2987 = vunpack.c.l.b16 %v1526
    %v2988 = vunpack.c.h.b16 %v1526
    %v2989 = vunpack.c.l.b16 %v1527
    %v2990 = vunpack.c.h.b16 %v1527
    %v2991 = vunpack.c.l.b16 %v1528
    %v2992 = vunpack.c.h.b16 %v1528
    %v2993 = vunpack.c.l.b16 %v1529
    %v2994 = vunpack.c.h.b16 %v1529
    %v2995 = vunpack.c.l.b16 %v1530
    %v2996 = vunpack.c.h.b16 %v1530
    %v2997 = vunpack.c.l.b16 %v1531
    %v2998 = vunpack.c.h.b16 %v1531
    %v2999 = vunpack.c.l.b16 %v1532
    %v3000 = vunpack.c.h.b16 %v1532
    %v3001 = vunpack.c.l.b16 %v1533
    %v3002 = vunpack.c.h.b16 %v1533
    %v3003 = vunpack.c.l.b16 %v1534
    %v3004 = vunpack.c.h.b16 %v1534
    %v3005 = vunpack.c.l.b16 %v1535
    %v3006 = vunpack.c.h.b16 %v1535
    %v3007 = vunpack.c.l.b16 %v1536
    %v3008 = vunpack.c.h.b16 %v1536
    %v3009 = vunpack.c.l.b16 %v1537
    %v3010 = vunpack.c.h.b16 %v1537
    %v3011 = vunpack.c.l.b16 %v1538
    %v3012 = vunpack.c.h.b16 %v1538
    %v3013 = vunpack.c.l.b16 %v1539
    %v3014 = vunpack.c.h.b16 %v1539
    %v3015 = vunpack.c.l.b16 %v1540
    %v3016 = vunpack.c.h.b16 %v1540
    %v3017 = vunpack.c.l.b16 %v1541
    %v3018 = vunpack.c.h.b16 %v1541
    %v3019 = vunpack.c.l.b16 %v1542
    %v3020 = vunpack.c.h.b16 %v1542
    %v3021 = vunpack.c.l.b16 %v1543
    %v3022 = vunpack.c.h.b16 %v1543
    %v3023 = vunpack.c.l.b16 %v1544
    %v3024 = vunpack.c.h.b16 %v1544
    %v3025 = vunpack.c.l.b16 %v1545
    %v3026 = vunpack.c.h.b16 %v1545
    %v3027 = vunpack.c.l.b16 %v1546
    %v3028 = vunpack.c.h.b16 %v1546
    %v3029 = vunpack.c.l.b16 %v1547
    %v3030 = vunpack.c.h.b16 %v1547
    %v3031 = vunpack.c.l.b16 %v1548
    %v3032 = vunpack.c.h.b16 %v1548
    %v3033 = vunpack.c.l.b16 %v1549
    %v3034 = vunpack.c.h.b16 %v1549
    %v3035 = vunpack.c.l.b16 %v1550
    %v3036 = vunpack.c.h.b16 %v1550
    %v3037 = vunpack.c.l.b16 %v1551
    %v3038 = vunpack.c.h.b16 %v1551
    %v3039 = vunpack.c.l.b16 %v1552
    %v3040 = vunpack.c.h.b16 %v1552
    %v3041 = vunpack.c.l.b16 %v1553
    %v3042 = vunpack.c.h.b16 %v1553
    %v3043 = vunpack.c.l.b16 %v1554
    %v3044 = vunpack.c.h.b16 %v1554
    %v3045 = vunpack.c.l.b16 %v1555
    %v3046 = vunpack.c.h.b16 %v1555
    %v3047 = vunpack.c.l.b16 %v1556
    %v3048 = vunpack.c.h.b16 %v1556
    %v3049 = vunpack.c.l.b16 %v1557
    %v3050 = vunpack.c.h.b16 %v1557
    %v3051 = vunpack.c.l.b16 %v1558
    %v3052 = vunpack.c.h.b16 %v1558
    %v3053 = vunpack.c.l.b16 %v1559
    %v3054 = vunpack.c.h.b16 %v1559
    %v3055 = vunpack.c.l.b16 %v1560
    %v3056 = vunpack.c.h.b16 %v1560
    %v3057 = vunpack.c.l.b16 %v1561
    %v3058 = vunpack.c.h.b16 %v1561
    %v3059 = vunpack.c.l.b16 %v1562
    %v3060 = vunpack.c.h.b16 %v1562
    %v3061 = vunpack.c.l.b16 %v1563
    %v3062 = vunpack.c.h.b16 %v1563
    %v3063 = vunpack.c.l.b16 %v1564
    %v3064 = vunpack.c.h.b16 %v1564
    %v3065 = vunpack.c.l.b16 %v1565
    %v3066 = vunpack.c.h.b16 %v1565
    %v3067 = vunpack.c.l.b16 %v1566
    %v3068 = vunpack.c.h.b16 %v1566
    %v3069 = vunpack.c.l.b16 %v1567
    %v3070 = vunpack.c.h.b16 %v1567
    %v3071 = vunpack.c.l.b16 %v1568
    %v3072 = vunpack.c.h.b16 %v1568
    %v3073 = vunpack.c.l.b16 %v1569
    %v3074 = vunpack.c.h.b16 %v1569
    %v3075 = vunpack.c.l.b16 %v1570
    %v3076 = vunpack.c.h.b16 %v1570
    %v3077 = vunpack.c.l.b16 %v1571
    %v3078 = vunpack.c.h.b16 %v1571
    %v3079 = vunpack.c.l.b16 %v1572
    %v3080 = vunpack.c.h.b16 %v1572
    %v3081 = vunpack.c.l.b16 %v1573
    %v3082 = vunpack.c.h.b16 %v1573
    %v3083 = vunpack.c.l.b16 %v1574
    %v3084 = vunpack.c.h.b16 %v1574
    %v3085 = vunpack.c.l.b16 %v1575
    %v3086 = vunpack.c.h.b16 %v1575
    %v3087 = vunpack.c.l.b16 %v1576
    %v3088 = vunpack.c.h.b16 %v1576
    %v3089 = vunpack.c.l.b16 %v1577
    %v3090 = vunpack.c.h.b16 %v1577
    %v3091 = vunpack.c.l.b16 %v1578
    %v3092 = vunpack.c.h.b16 %v1578
    %v3093 = vunpack.c.l.b16 %v1579
    %v3094 = vunpack.c.h.b16 %v1579
    %v3095 = vunpack.c.l.b16 %v1580
    %v3096 = vunpack.c.h.b16 %v1580
    %v3097 = vunpack.c.l.b16 %v1581
    %v3098 = vunpack.c.h.b16 %v1581
    %v3099 = vunpack.c.l.b16 %v1582
    %v3100 = vunpack.c.h.b16 %v1582
    %v3101 = vunpack.c.l.b16 %v1583
    %v3102 = vunpack.c.h.b16 %v1583
    %v3103 = vunpack.c.l.b16 %v1584
    %v3104 = vunpack.c.h.b16 %v1584
    %v3105 = vunpack.c.l.b16 %v1585
    %v3106 = vunpack.c.h.b16 %v1585
    %v3107 = vunpack.c.l.b16 %v1586
    %v3108 = vunpack.c.h.b16 %v1586
    %v3109 = vunpack.c.l.b16 %v1587
    %v3110 = vunpack.c.h.b16 %v1587
    %v3111 = vunpack.c.l.b16 %v1588
    %v3112 = vunpack.c.h.b16 %v1588
    %v3113 = vunpack.c.l.b16 %v1589
    %v3114 = vunpack.c.h.b16 %v1589
    %v3115 = vunpack.c.l.b16 %v1590
    %v3116 = vunpack.c.h.b16 %v1590
    %v3117 = vunpack.c.l.b16 %v1591
    %v3118 = vunpack.c.h.b16 %v1591
    %v3119 = vunpack.c.l.b16 %v1592
    %v3120 = vunpack.c.h.b16 %v1592
    %v3121 = vunpack.c.l.b16 %v1593
    %v3122 = vunpack.c.h.b16 %v1593
    %v3123 = vunpack.c.l.b16 %v1594
    %v3124 = vunpack.c.h.b16 %v1594
    %v3125 = vunpack.c.l.b16 %v1595
    %v3126 = vunpack.c.h.b16 %v1595
    %v3127 = vunpack.c.l.b16 %v1596
    %v3128 = vunpack.c.h.b16 %v1596
    %v3129 = vunpack.c.l.b16 %v1597
    %v3130 = vunpack.c.h.b16 %v1597
    %v3131 = vunpack.c.l.b16 %v1598
    %v3132 = vunpack.c.h.b16 %v1598
    %v3133 = vunpack.c.l.b16 %v1599
    %v3134 = vunpack.c.h.b16 %v1599
    %v3135 = vunpack.c.l.b16 %v1600
    %v3136 = vunpack.c.h.b16 %v1600
    %v3137 = vunpack.c.l.b16 %v1601
    %v3138 = vunpack.c.h.b16 %v1601
    %v3139 = vunpack.c.l.b16 %v1602
    %v3140 = vunpack.c.h.b16 %v1602
    %v3141 = vunpack.c.l.b16 %v1603
    %v3142 = vunpack.c.h.b16 %v1603
    %v3143 = vunpack.c.l.b16 %v1604
    %v3144 = vunpack.c.h.b16 %v1604
    %v3145 = vunpack.c.l.b16 %v1605
    %v3146 = vunpack.c.h.b16 %v1605
    %v3147 = vunpack.c.l.b16 %v1606
    %v3148 = vunpack.c.h.b16 %v1606
    %v3149 = vunpack.c.l.b16 %v1607
    %v3150 = vunpack.c.h.b16 %v1607
    %v3151 = vunpack.c.l.b16 %v1608
    %v3152 = vunpack.c.h.b16 %v1608
    %v3153 = vunpack.c.l.b16 %v1609
    %v3154 = vunpack.c.h.b16 %v1609
    %v3155 = vunpack.c.l.b16 %v1610
    %v3156 = vunpack.c.h.b16 %v1610
    %v3157 = vunpack.c.l.b16 %v1611
    %v3158 = vunpack.c.h.b16 %v1611
    %v3159 = vunpack.c.l.b16 %v1612
    %v3160 = vunpack.c.h.b16 %v1612
    %v3161 = vunpack.c.l.b16 %v1613
    %v3162 = vunpack.c.h.b16 %v1613
    %v3163 = vunpack.c.l.b16 %v1614
    %v3164 = vunpack.c.h.b16 %v1614
    %v3165 = vunpack.c.l.b16 %v1615
    %v3166 = vunpack.c.h.b16 %v1615
    %v3167 = vunpack.c.l.b16 %v1616
    %v3168 = vunpack.c.h.b16 %v1616
    %v3169 = vunpack.c.l.b16 %v1617
    %v3170 = vunpack.c.h.b16 %v1617
    %v3171 = vunpack.c.l.b16 %v1618
    %v3172 = vunpack.c.h.b16 %v1618
    %v3173 = vunpack.c.l.b16 %v1619
    %v3174 = vunpack.c.h.b16 %v1619
    %v3175 = vunpack.c.l.b16 %v1620
    %v3176 = vunpack.c.h.b16 %v1620
    %v3177 = vunpack.c.l.b16 %v1621
    %v3178 = vunpack.c.h.b16 %v1621
    %v3179 = vunpack.c.l.b16 %v1622
    %v3180 = vunpack.c.h.b16 %v1622
    %v3181 = vunpack.c.l.b16 %v1623
    %v3182 = vunpack.c.h.b16 %v1623
    %v3183 = vunpack.c.l.b16 %v1624
    %v3184 = vunpack.c.h.b16 %v1624
    %v3185 = vunpack.c.l.b16 %v1625
    %v3186 = vunpack.c.h.b16 %v1625
    %v3187 = vunpack.c.l.b16 %v1626
    %v3188 = vunpack.c.h.b16 %v1626
    %v3189 = vunpack.c.l.b16 %v1627
    %v3190 = vunpack.c.h.b16 %v1627
    %v3191 = vunpack.c.l.b16 %v1628
    %v3192 = vunpack.c.h.b16 %v1628
    %v3193 = vunpack.c.l.b16 %v1629
    %v3194 = vunpack.c.h.b16 %v1629
    %v3195 = vunpack.c.l.b16 %v1630
    %v3196 = vunpack.c.h.b16 %v1630
    %v3197 = vunpack.c.l.b16 %v1631
    %v3198 = vunpack.c.h.b16 %v1631
    %v3199 = vunpack.c.l.b16 %v1632
    %v3200 = vunpack.c.h.b16 %v1632
    %v3201 = vunpack.c.l.b16 %v1633
    %v3202 = vunpack.c.h.b16 %v1633
    %v3203 = vunpack.c.l.b16 %v1634
    %v3204 = vunpack.c.h.b16 %v1634
    %v3205 = vunpack.c.l.b16 %v1635
    %v3206 = vunpack.c.h.b16 %v1635
    %v3207 = vunpack.c.l.b16 %v1636
    %v3208 = vunpack.c.h.b16 %v1636
    %v3209 = vunpack.c.l.b16 %v1637
    %v3210 = vunpack.c.h.b16 %v1637
    %v3211 = vunpack.c.l.b16 %v1638
    %v3212 = vunpack.c.h.b16 %v1638
    %v3213 = vunpack.c.l.b16 %v1639
    %v3214 = vunpack.c.h.b16 %v1639
    %v3215 = vunpack.c.l.b16 %v1640
    %v3216 = vunpack.c.h.b16 %v1640
    %v3217 = vunpack.c.l.b16 %v1641
    %v3218 = vunpack.c.h.b16 %v1641
    %v3219 = vunpack.c.l.b16 %v1642
    %v3220 = vunpack.c.h.b16 %v1642
    %v3221 = vpack.c.b16 %v2205, %v2197
    %v3222 = vpack.c.b16 %v2206, %v2198
    %v3223 = vpack.c.b16 %v2207, %v2199
    %v3224 = vpack.c.b16 %v2208, %v2200
    %v3225 = vpack.c.b16 %v2209, %v2201
    %v3226 = vpack.c.b16 %v2210, %v2202
    %v3227 = vpack.c.b16 %v2211, %v2203
    %v3228 = vpack.c.b16 %v2212, %v2204
    %v3229 = vpack.c.b16 %v2221, %v2213
    %v3230 = vpack.c.b16 %v2222, %v2214
    %v3231 = vpack.c.b16 %v2223, %v2215
    %v3232 = vpack.c.b16 %v2224, %v2216
    %v3233 = vpack.c.b16 %v2225, %v2217
    %v3234 = vpack.c.b16 %v2226, %v2218
    %v3235 = vpack.c.b16 %v2227, %v2219
    %v3236 = vpack.c.b16 %v2228, %v2220
    %v3237 = vpack.c.b16 %v2237, %v2229
    %v3238 = vpack.c.b16 %v2238, %v2230
    %v3239 = vpack.c.b16 %v2239, %v2231
    %v3240 = vpack.c.b16 %v2240, %v2232
    %v3241 = vpack.c.b16 %v2241, %v2233
    %v3242 = vpack.c.b16 %v2242, %v2234
    %v3243 = vpack.c.b16 %v2243, %v2235
    %v3244 = vpack.c.b16 %v2244, %v2236
    %v3245 = vpack.c.b16 %v2253, %v2245
    %v3246 = vpack.c.b16 %v2254, %v2246
    %v3247 = vpack.c.b16 %v2255, %v2247
    %v3248 = vpack.c.b16 %v2256, %v2248
    %v3249 = vpack.c.b16 %v2257, %v2249
    %v3250 = vpack.c.b16 %v2258, %v2250
    %v3251 = vpack.c.b16 %v2259, %v2251
    %v3252 = vpack.c.b16 %v2260, %v2252
    %v3253 = vpack.c.b16 %v2269, %v2261
    %v3254 = vpack.c.b16 %v2270, %v2262
    %v3255 = vpack.c.b16 %v2271, %v2263
    %v3256 = vpack.c.b16 %v2272, %v2264
    %v3257 = vpack.c.b16 %v2273, %v2265
    %v3258 = vpack.c.b16 %v2274, %v2266
    %v3259 = vpack.c.b16 %v2275, %v2267
    %v3260 = vpack.c.b16 %v2276, %v2268
    %v3261 = vpack.c.b16 %v2285, %v2277
    %v3262 = vpack.c.b16 %v2286, %v2278
    %v3263 = vpack.c.b16 %v2287, %v2279
    %v3264 = vpack.c.b16 %v2288, %v2280
    %v3265 = vpack.c.b16 %v2289, %v2281
    %v3266 = vpack.c.b16 %v2290, %v2282
    %v3267 = vpack.c.b16 %v2291, %v2283
    %v3268 = vpack.c.b16 %v2292, %v2284
    %v3269 = vpack.c.b16 %v2301, %v2293
    %v3270 = vpack.c.b16 %v2302, %v2294
    %v3271 = vpack.c.b16 %v2303, %v2295
    %v3272 = vpack.c.b16 %v2304, %v2296
    %v3273 = vpack.c.b16 %v2305, %v2297
    %v3274 = vpack.c.b16 %v2306, %v2298
    %v3275 = vpack.c.b16 %v2307, %v2299
    %v3276 = vpack.c.b16 %v2308, %v2300
    %v3277 = vpack.c.b16 %v2317, %v2309
    %v3278 = vpack.c.b16 %v2318, %v2310
    %v3279 = vpack.c.b16 %v2319, %v2311
    %v3280 = vpack.c.b16 %v2320, %v2312
    %v3281 = vpack.c.b16 %v2321, %v2313
    %v3282 = vpack.c.b16 %v2322, %v2314
    %v3283 = vpack.c.b16 %v2323, %v2315
    %v3284 = vpack.c.b16 %v2324, %v2316
    %v3285 = vpack.c.b16 %v2333, %v2325
    %v3286 = vpack.c.b16 %v2334, %v2326
    %v3287 = vpack.c.b16 %v2335, %v2327
    %v3288 = vpack.c.b16 %v2336, %v2328
    %v3289 = vpack.c.b16 %v2337, %v2329
    %v3290 = vpack.c.b16 %v2338, %v2330
    %v3291 = vpack.c.b16 %v2339, %v2331
    %v3292 = vpack.c.b16 %v2340, %v2332
    %v3293 = vpack.c.b16 %v2349, %v2341
    %v3294 = vpack.c.b16 %v2350, %v2342
    %v3295 = vpack.c.b16 %v2351, %v2343
    %v3296 = vpack.c.b16 %v2352, %v2344
    %v3297 = vpack.c.b16 %v2353, %v2345
    %v3298 = vpack.c.b16 %v2354, %v2346
    %v3299 = vpack.c.b16 %v2355, %v2347
    %v3300 = vpack.c.b16 %v2356, %v2348
    %v3301 = vpack.c.b16 %v2365, %v2357
    %v3302 = vpack.c.b16 %v2366, %v2358
    %v3303 = vpack.c.b16 %v2367, %v2359
    %v3304 = vpack.c.b16 %v2368, %v2360
    %v3305 = vpack.c.b16 %v2369, %v2361
    %v3306 = vpack.c.b16 %v2370, %v2362
    %v3307 = vpack.c.b16 %v2371, %v2363
    %v3308 = vpack.c.b16 %v2372, %v2364
    %v3309 = vpack.c.b16 %v2381, %v2373
    %v3310 = vpack.c.b16 %v2382, %v2374
    %v3311 = vpack.c.b16 %v2383, %v2375
    %v3312 = vpack.c.b16 %v2384, %v2376
    %v3313 = vpack.c.b16 %v2385, %v2377
    %v3314 = vpack.c.b16 %v2386, %v2378
    %v3315 = vpack.c.b16 %v2387, %v2379
    %v3316 = vpack.c.b16 %v2388, %v2380
    %v3317 = vpack.c.b16 %v2397, %v2389
    %v3318 = vpack.c.b16 %v2398, %v2390
    %v3319 = vpack.c.b16 %v2399, %v2391
    %v3320 = vpack.c.b16 %v2400, %v2392
    %v3321 = vpack.c.b16 %v2401, %v2393
    %v3322 = vpack.c.b16 %v2402, %v2394
    %v3323 = vpack.c.b16 %v2403, %v2395
    %v3324 = vpack.c.b16 %v2404, %v2396
    %v3325 = vpack.c.b16 %v2413, %v2405
    %v3326 = vpack.c.b16 %v2414, %v2406
    %v3327 = vpack.c.b16 %v2415, %v2407
    %v3328 = vpack.c.b16 %v2416, %v2408
    %v3329 = vpack.c.b16 %v2417, %v2409
    %v3330 = vpack.c.b16 %v2418, %v2410
    %v3331 = vpack.c.b16 %v2419, %v2411
    %v3332 = vpack.c.b16 %v2420, %v2412
    %v3333 = vpack.c.b16 %v2429, %v2421
    %v3334 = vpack.c.b16 %v2430, %v2422
    %v3335 = vpack.c.b16 %v2431, %v2423
    %v3336 = vpack.c.b16 %v2432, %v2424
    %v3337 = vpack.c.b16 %v2433, %v2425
    %v3338 = vpack.c.b16 %v2434, %v2426
    %v3339 = vpack.c.b16 %v2435, %v2427
    %v3340 = vpack.c.b16 %v2436, %v2428
    %v3341 = vpack.c.b16 %v2445, %v2437
    %v3342 = vpack.c.b16 %v2446, %v2438
    %v3343 = vpack.c.b16 %v2447, %v2439
    %v3344 = vpack.c.b16 %v2448, %v2440
    %v3345 = vpack.c.b16 %v2449, %v2441
    %v3346 = vpack.c.b16 %v2450, %v2442
    %v3347 = vpack.c.b16 %v2451, %v2443
    %v3348 = vpack.c.b16 %v2452, %v2444
    %v3349 = vpack.c.b16 %v2461, %v2453
    %v3350 = vpack.c.b16 %v2462, %v2454
    %v3351 = vpack.c.b16 %v2463, %v2455
    %v3352 = vpack.c.b16 %v2464, %v2456
    %v3353 = vpack.c.b16 %v2465, %v2457
    %v3354 = vpack.c.b16 %v2466, %v2458
    %v3355 = vpack.c.b16 %v2467, %v2459
    %v3356 = vpack.c.b16 %v2468, %v2460
    %v3357 = vpack.c.b16 %v2477, %v2469
    %v3358 = vpack.c.b16 %v2478, %v2470
    %v3359 = vpack.c.b16 %v2479, %v2471
    %v3360 = vpack.c.b16 %v2480, %v2472
    %v3361 = vpack.c.b16 %v2481, %v2473
    %v3362 = vpack.c.b16 %v2482, %v2474
    %v3363 = vpack.c.b16 %v2483, %v2475
    %v3364 = vpack.c.b16 %v2484, %v2476
    %v3365 = vpack.c.b16 %v2493, %v2485
    %v3366 = vpack.c.b16 %v2494, %v2486
    %v3367 = vpack.c.b16 %v2495, %v2487
    %v3368 = vpack.c.b16 %v2496, %v2488
    %v3369 = vpack.c.b16 %v2497, %v2489
    %v3370 = vpack.c.b16 %v2498, %v2490
    %v3371 = vpack.c.b16 %v2499, %v2491
    %v3372 = vpack.c.b16 %v2500, %v2492
    %v3373 = vpack.c.b16 %v2509, %v2501
    %v3374 = vpack.c.b16 %v2510, %v2502
    %v3375 = vpack.c.b16 %v2511, %v2503
    %v3376 = vpack.c.b16 %v2512, %v2504
    %v3377 = vpack.c.b16 %v2513, %v2505
    %v3378 = vpack.c.b16 %v2514, %v2506
    %v3379 = vpack.c.b16 %v2515, %v2507
    %v3380 = vpack.c.b16 %v2516, %v2508
    %v3381 = vpack.c.b16 %v2525, %v2517
    %v3382 = vpack.c.b16 %v2526, %v2518
    %v3383 = vpack.c.b16 %v2527, %v2519
    %v3384 = vpack.c.b16 %v2528, %v2520
    %v3385 = vpack.c.b16 %v2529, %v2521
    %v3386 = vpack.c.b16 %v2530, %v2522
    %v3387 = vpack.c.b16 %v2531, %v2523
    %v3388 = vpack.c.b16 %v2532, %v2524
    %v3389 = vpack.c.b16 %v2541, %v2533
    %v3390 = vpack.c.b16 %v2542, %v2534
    %v3391 = vpack.c.b16 %v2543, %v2535
    %v3392 = vpack.c.b16 %v2544, %v2536
    %v3393 = vpack.c.b16 %v2545, %v2537
    %v3394 = vpack.c.b16 %v2546, %v2538
    %v3395 = vpack.c.b16 %v2547, %v2539
    %v3396 = vpack.c.b16 %v2548, %v2540
    %v3397 = vpack.c.b16 %v2557, %v2549
    %v3398 = vpack.c.b16 %v2558, %v2550
    %v3399 = vpack.c.b16 %v2559, %v2551
    %v3400 = vpack.c.b16 %v2560, %v2552
    %v3401 = vpack.c.b16 %v2561, %v2553
    %v3402 = vpack.c.b16 %v2562, %v2554
    %v3403 = vpack.c.b16 %v2563, %v2555
    %v3404 = vpack.c.b16 %v2564, %v2556
    %v3405 = vpack.c.b16 %v2573, %v2565
    %v3406 = vpack.c.b16 %v2574, %v2566
    %v3407 = vpack.c.b16 %v2575, %v2567
    %v3408 = vpack.c.b16 %v2576, %v2568
    %v3409 = vpack.c.b16 %v2577, %v2569
    %v3410 = vpack.c.b16 %v2578, %v2570
    %v3411 = vpack.c.b16 %v2579, %v2571
    %v3412 = vpack.c.b16 %v2580, %v2572
    %v3413 = vpack.c.b16 %v2589, %v2581
    %v3414 = vpack.c.b16 %v2590, %v2582
    %v3415 = vpack.c.b16 %v2591, %v2583
    %v3416 = vpack.c.b16 %v2592, %v2584
    %v3417 = vpack.c.b16 %v2593, %v2585
    %v3418 = vpack.c.b16 %v2594, %v2586
    %v3419 = vpack.c.b16 %v2595, %v2587
    %v3420 = vpack.c.b16 %v2596, %v2588
    %v3421 = vpack.c.b16 %v2605, %v2597
    %v3422 = vpack.c.b16 %v2606, %v2598
    %v3423 = vpack.c.b16 %v2607, %v2599
    %v3424 = vpack.c.b16 %v2608, %v2600
    %v3425 = vpack.c.b16 %v2609, %v2601
    %v3426 = vpack.c.b16 %v2610, %v2602
    %v3427 = vpack.c.b16 %v2611, %v2603
    %v3428 = vpack.c.b16 %v2612, %v2604
    %v3429 = vpack.c.b16 %v2621, %v2613
    %v3430 = vpack.c.b16 %v2622, %v2614
    %v3431 = vpack.c.b16 %v2623, %v2615
    %v3432 = vpack.c.b16 %v2624, %v2616
    %v3433 = vpack.c.b16 %v2625, %v2617
    %v3434 = vpack.c.b16 %v2626, %v2618
    %v3435 = vpack.c.b16 %v2627, %v2619
    %v3436 = vpack.c.b16 %v2628, %v2620
    %v3437 = vpack.c.b16 %v2637, %v2629
    %v3438 = vpack.c.b16 %v2638, %v2630
    %v3439 = vpack.c.b16 %v2639, %v2631
    %v3440 = vpack.c.b16 %v2640, %v2632
    %v3441 = vpack.c.b16 %v2641, %v2633
    %v3442 = vpack.c.b16 %v2642, %v2634
    %v3443 = vpack.c.b16 %v2643, %v2635
    %v3444 = vpack.c.b16 %v2644, %v2636
    %v3445 = vpack.c.b16 %v2653, %v2645
    %v3446 = vpack.c.b16 %v2654, %v2646
    %v3447 = vpack.c.b16 %v2655, %v2647
    %v3448 = vpack.c.b16 %v2656, %v2648
    %v3449 = vpack.c.b16 %v2657, %v2649
    %v3450 = vpack.c.b16 %v2658, %v2650
    %v3451 = vpack.c.b16 %v2659, %v2651
    %v3452 = vpack.c.b16 %v2660, %v2652
    %v3453 = vpack.c.b16 %v2669, %v2661
    %v3454 = vpack.c.b16 %v2670, %v2662
    %v3455 = vpack.c.b16 %v2671, %v2663
    %v3456 = vpack.c.b16 %v2672, %v2664
    %v3457 = vpack.c.b16 %v2673, %v2665
    %v3458 = vpack.c.b16 %v2674, %v2666
    %v3459 = vpack.c.b16 %v2675, %v2667
    %v3460 = vpack.c.b16 %v2676, %v2668
    %v3461 = vpack.c.b16 %v2685, %v2677
    %v3462 = vpack.c.b16 %v2686, %v2678
    %v3463 = vpack.c.b16 %v2687, %v2679
    %v3464 = vpack.c.b16 %v2688, %v2680
    %v3465 = vpack.c.b16 %v2689, %v2681
    %v3466 = vpack.c.b16 %v2690, %v2682
    %v3467 = vpack.c.b16 %v2691, %v2683
    %v3468 = vpack.c.b16 %v2692, %v2684
    %v3469 = vpack.c.b16 %v2701, %v2693
    %v3470 = vpack.c.b16 %v2702, %v2694
    %v3471 = vpack.c.b16 %v2703, %v2695
    %v3472 = vpack.c.b16 %v2704, %v2696
    %v3473 = vpack.c.b16 %v2705, %v2697
    %v3474 = vpack.c.b16 %v2706, %v2698
    %v3475 = vpack.c.b16 %v2707, %v2699
    %v3476 = vpack.c.b16 %v2708, %v2700
    %v3477 = vpack.c.b16 %v2717, %v2709
    %v3478 = vpack.c.b16 %v2718, %v2710
    %v3479 = vpack.c.b16 %v2719, %v2711
    %v3480 = vpack.c.b16 %v2720, %v2712
    %v3481 = vpack.c.b16 %v2721, %v2713
    %v3482 = vpack.c.b16 %v2722, %v2714
    %v3483 = vpack.c.b16 %v2723, %v2715
    %v3484 = vpack.c.b16 %v2724, %v2716
    %v3485 = vpack.c.b16 %v2733, %v2725
    %v3486 = vpack.c.b16 %v2734, %v2726
    %v3487 = vpack.c.b16 %v2735, %v2727
    %v3488 = vpack.c.b16 %v2736, %v2728
    %v3489 = vpack.c.b16 %v2737, %v2729
    %v3490 = vpack.c.b16 %v2738, %v2730
    %v3491 = vpack.c.b16 %v2739, %v2731
    %v3492 = vpack.c.b16 %v2740, %v2732
    %v3493 = vpack.c.b16 %v2749, %v2741
    %v3494 = vpack.c.b16 %v2750, %v2742
    %v3495 = vpack.c.b16 %v2751, %v2743
    %v3496 = vpack.c.b16 %v2752, %v2744
    %v3497 = vpack.c.b16 %v2753, %v2745
    %v3498 = vpack.c.b16 %v2754, %v2746
    %v3499 = vpack.c.b16 %v2755, %v2747
    %v3500 = vpack.c.b16 %v2756, %v2748
    %v3501 = vpack.c.b16 %v2765, %v2757
    %v3502 = vpack.c.b16 %v2766, %v2758
    %v3503 = vpack.c.b16 %v2767, %v2759
    %v3504 = vpack.c.b16 %v2768, %v2760
    %v3505 = vpack.c.b16 %v2769, %v2761
    %v3506 = vpack.c.b16 %v2770, %v2762
    %v3507 = vpack.c.b16 %v2771, %v2763
    %v3508 = vpack.c.b16 %v2772, %v2764
    %v3509 = vpack.c.b16 %v2781, %v2773
    %v3510 = vpack.c.b16 %v2782, %v2774
    %v3511 = vpack.c.b16 %v2783, %v2775
    %v3512 = vpack.c.b16 %v2784, %v2776
    %v3513 = vpack.c.b16 %v2785, %v2777
    %v3514 = vpack.c.b16 %v2786, %v2778
    %v3515 = vpack.c.b16 %v2787, %v2779
    %v3516 = vpack.c.b16 %v2788, %v2780
    %v3517 = vpack.c.b16 %v2797, %v2789
    %v3518 = vpack.c.b16 %v2798, %v2790
    %v3519 = vpack.c.b16 %v2799, %v2791
    %v3520 = vpack.c.b16 %v2800, %v2792
    %v3521 = vpack.c.b16 %v2801, %v2793
    %v3522 = vpack.c.b16 %v2802, %v2794
    %v3523 = vpack.c.b16 %v2803, %v2795
    %v3524 = vpack.c.b16 %v2804, %v2796
    %v3525 = vpack.c.b16 %v2813, %v2805
    %v3526 = vpack.c.b16 %v2814, %v2806
    %v3527 = vpack.c.b16 %v2815, %v2807
    %v3528 = vpack.c.b16 %v2816, %v2808
    %v3529 = vpack.c.b16 %v2817, %v2809
    %v3530 = vpack.c.b16 %v2818, %v2810
    %v3531 = vpack.c.b16 %v2819, %v2811
    %v3532 = vpack.c.b16 %v2820, %v2812
    %v3533 = vpack.c.b16 %v2829, %v2821
    %v3534 = vpack.c.b16 %v2830, %v2822
    %v3535 = vpack.c.b16 %v2831, %v2823
    %v3536 = vpack.c.b16 %v2832, %v2824
    %v3537 = vpack.c.b16 %v2833, %v2825
    %v3538 = vpack.c.b16 %v2834, %v2826
    %v3539 = vpack.c.b16 %v2835, %v2827
    %v3540 = vpack.c.b16 %v2836, %v2828
    %v3541 = vpack.c.b16 %v2845, %v2837
    %v3542 = vpack.c.b16 %v2846, %v2838
    %v3543 = vpack.c.b16 %v2847, %v2839
    %v3544 = vpack.c.b16 %v2848, %v2840
    %v3545 = vpack.c.b16 %v2849, %v2841
    %v3546 = vpack.c.b16 %v2850, %v2842
    %v3547 = vpack.c.b16 %v2851, %v2843
    %v3548 = vpack.c.b16 %v2852, %v2844
    %v3549 = vpack.c.b16 %v2861, %v2853
    %v3550 = vpack.c.b16 %v2862, %v2854
    %v3551 = vpack.c.b16 %v2863, %v2855
    %v3552 = vpack.c.b16 %v2864, %v2856
    %v3553 = vpack.c.b16 %v2865, %v2857
    %v3554 = vpack.c.b16 %v2866, %v2858
    %v3555 = vpack.c.b16 %v2867, %v2859
    %v3556 = vpack.c.b16 %v2868, %v2860
    %v3557 = vpack.c.b16 %v2877, %v2869
    %v3558 = vpack.c.b16 %v2878, %v2870
    %v3559 = vpack.c.b16 %v2879, %v2871
    %v3560 = vpack.c.b16 %v2880, %v2872
    %v3561 = vpack.c.b16 %v2881, %v2873
    %v3562 = vpack.c.b16 %v2882, %v2874
    %v3563 = vpack.c.b16 %v2883, %v2875
    %v3564 = vpack.c.b16 %v2884, %v2876
    %v3565 = vpack.c.b16 %v2893, %v2885
    %v3566 = vpack.c.b16 %v2894, %v2886
    %v3567 = vpack.c.b16 %v2895, %v2887
    %v3568 = vpack.c.b16 %v2896, %v2888
    %v3569 = vpack.c.b16 %v2897, %v2889
    %v3570 = vpack.c.b16 %v2898, %v2890
    %v3571 = vpack.c.b16 %v2899, %v2891
    %v3572 = vpack.c.b16 %v2900, %v2892
    %v3573 = vpack.c.b16 %v2909, %v2901
    %v3574 = vpack.c.b16 %v2910, %v2902
    %v3575 = vpack.c.b16 %v2911, %v2903
    %v3576 = vpack.c.b16 %v2912, %v2904
    %v3577 = vpack.c.b16 %v2913, %v2905
    %v3578 = vpack.c.b16 %v2914, %v2906
    %v3579 = vpack.c.b16 %v2915, %v2907
    %v3580 = vpack.c.b16 %v2916, %v2908
    %v3581 = vpack.c.b16 %v2925, %v2917
    %v3582 = vpack.c.b16 %v2926, %v2918
    %v3583 = vpack.c.b16 %v2927, %v2919
    %v3584 = vpack.c.b16 %v2928, %v2920
    %v3585 = vpack.c.b16 %v2929, %v2921
    %v3586 = vpack.c.b16 %v2930, %v2922
    %v3587 = vpack.c.b16 %v2931, %v2923
    %v3588 = vpack.c.b16 %v2932, %v2924
    %v3589 = vpack.c.b16 %v2941, %v2933
    %v3590 = vpack.c.b16 %v2942, %v2934
    %v3591 = vpack.c.b16 %v2943, %v2935
    %v3592 = vpack.c.b16 %v2944, %v2936
    %v3593 = vpack.c.b16 %v2945, %v2937
    %v3594 = vpack.c.b16 %v2946, %v2938
    %v3595 = vpack.c.b16 %v2947, %v2939
    %v3596 = vpack.c.b16 %v2948, %v2940
    %v3597 = vpack.c.b16 %v2957, %v2949
    %v3598 = vpack.c.b16 %v2958, %v2950
    %v3599 = vpack.c.b16 %v2959, %v2951
    %v3600 = vpack.c.b16 %v2960, %v2952
    %v3601 = vpack.c.b16 %v2961, %v2953
    %v3602 = vpack.c.b16 %v2962, %v2954
    %v3603 = vpack.c.b16 %v2963, %v2955
    %v3604 = vpack.c.b16 %v2964, %v2956
    %v3605 = vpack.c.b16 %v2973, %v2965
    %v3606 = vpack.c.b16 %v2974, %v2966
    %v3607 = vpack.c.b16 %v2975, %v2967
    %v3608 = vpack.c.b16 %v2976, %v2968
    %v3609 = vpack.c.b16 %v2977, %v2969
    %v3610 = vpack.c.b16 %v2978, %v2970
    %v3611 = vpack.c.b16 %v2979, %v2971
    %v3612 = vpack.c.b16 %v2980, %v2972
    %v3613 = vpack.c.b16 %v2989, %v2981
    %v3614 = vpack.c.b16 %v2990, %v2982
    %v3615 = vpack.c.b16 %v2991, %v2983
    %v3616 = vpack.c.b16 %v2992, %v2984
    %v3617 = vpack.c.b16 %v2993, %v2985
    %v3618 = vpack.c.b16 %v2994, %v2986
    %v3619 = vpack.c.b16 %v2995, %v2987
    %v3620 = vpack.c.b16 %v2996, %v2988
    %v3621 = vpack.c.b16 %v3005, %v2997
    %v3622 = vpack.c.b16 %v3006, %v2998
    %v3623 = vpack.c.b16 %v3007, %v2999
    %v3624 = vpack.c.b16 %v3008, %v3000
    %v3625 = vpack.c.b16 %v3009, %v3001
    %v3626 = vpack.c.b16 %v3010, %v3002
    %v3627 = vpack.c.b16 %v3011, %v3003
    %v3628 = vpack.c.b16 %v3012, %v3004
    %v3629 = vpack.c.b16 %v3021, %v3013
    %v3630 = vpack.c.b16 %v3022, %v3014
    %v3631 = vpack.c.b16 %v3023, %v3015
    %v3632 = vpack.c.b16 %v3024, %v3016
    %v3633 = vpack.c.b16 %v3025, %v3017
    %v3634 = vpack.c.b16 %v3026, %v3018
    %v3635 = vpack.c.b16 %v3027, %v3019
    %v3636 = vpack.c.b16 %v3028, %v3020
    %v3637 = vpack.c.b16 %v3037, %v3029
    %v3638 = vpack.c.b16 %v3038, %v3030
    %v3639 = vpack.c.b16 %v3039, %v3031
    %v3640 = vpack.c.b16 %v3040, %v3032
    %v3641 = vpack.c.b16 %v3041, %v3033
    %v3642 = vpack.c.b16 %v3042, %v3034
    %v3643 = vpack.c.b16 %v3043, %v3035
    %v3644 = vpack.c.b16 %v3044, %v3036
    %v3645 = vpack.c.b16 %v3053, %v3045
    %v3646 = vpack.c.b16 %v3054, %v3046
    %v3647 = vpack.c.b16 %v3055, %v3047
    %v3648 = vpack.c.b16 %v3056, %v3048
    %v3649 = vpack.c.b16 %v3057, %v3049
    %v3650 = vpack.c.b16 %v3058, %v3050
    %v3651 = vpack.c.b16 %v3059, %v3051
    %v3652 = vpack.c.b16 %v3060, %v3052
    %v3653 = vpack.c.b16 %v3069, %v3061
    %v3654 = vpack.c.b16 %v3070, %v3062
    %v3655 = vpack.c.b16 %v3071, %v3063
    %v3656 = vpack.c.b16 %v3072, %v3064
    %v3657 = vpack.c.b16 %v3073, %v3065
    %v3658 = vpack.c.b16 %v3074, %v3066
    %v3659 = vpack.c.b16 %v3075, %v3067
    %v3660 = vpack.c.b16 %v3076, %v3068
    %v3661 = vpack.c.b16 %v3085, %v3077
    %v3662 = vpack.c.b16 %v3086, %v3078
    %v3663 = vpack.c.b16 %v3087, %v3079
    %v3664 = vpack.c.b16 %v3088, %v3080
    %v3665 = vpack.c.b16 %v3089, %v3081
    %v3666 = vpack.c.b16 %v3090, %v3082
    %v3667 = vpack.c.b16 %v3091, %v3083
    %v3668 = vpack.c.b16 %v3092, %v3084
    %v3669 = vpack.c.b16 %v3101, %v3093
    %v3670 = vpack.c.b16 %v3102, %v3094
    %v3671 = vpack.c.b16 %v3103, %v3095
    %v3672 = vpack.c.b16 %v3104, %v3096
    %v3673 = vpack.c.b16 %v3105, %v3097
    %v3674 = vpack.c.b16 %v3106, %v3098
    %v3675 = vpack.c.b16 %v3107, %v3099
    %v3676 = vpack.c.b16 %v3108, %v3100
    %v3677 = vpack.c.b16 %v3117, %v3109
    %v3678 = vpack.c.b16 %v3118, %v3110
    %v3679 = vpack.c.b16 %v3119, %v3111
    %v3680 = vpack.c.b16 %v3120, %v3112
    %v3681 = vpack.c.b16 %v3121, %v3113
    %v3682 = vpack.c.b16 %v3122, %v3114
    %v3683 = vpack.c.b16 %v3123, %v3115
    %v3684 = vpack.c.b16 %v3124, %v3116
    %v3685 = vpack.c.b16 %v3133, %v3125
    %v3686 = vpack.c.b16 %v3134, %v3126
    %v3687 = vpack.c.b16 %v3135, %v3127
    %v3688 = vpack.c.b16 %v3136, %v3128
    %v3689 = vpack.c.b16 %v3137, %v3129
    %v3690 = vpack.c.b16 %v3138, %v3130
    %v3691 = vpack.c.b16 %v3139, %v3131
    %v3692 = vpack.c.b16 %v3140, %v3132
    %v3693 = vpack.c.b16 %v3149, %v3141
    %v3694 = vpack.c.b16 %v3150, %v3142
    %v3695 = vpack.c.b16 %v3151, %v3143
    %v3696 = vpack.c.b16 %v3152, %v3144
    %v3697 = vpack.c.b16 %v3153, %v3145
    %v3698 = vpack.c.b16 %v3154, %v3146
    %v3699 = vpack.c.b16 %v3155, %v3147
    %v3700 = vpack.c.b16 %v3156, %v3148
    %v3701 = vpack.c.b16 %v3165, %v3157
    %v3702 = vpack.c.b16 %v3166, %v3158
    %v3703 = vpack.c.b16 %v3167, %v3159
    %v3704 = vpack.c.b16 %v3168, %v3160
    %v3705 = vpack.c.b16 %v3169, %v3161
    %v3706 = vpack.c.b16 %v3170, %v3162
    %v3707 = vpack.c.b16 %v3171, %v3163
    %v3708 = vpack.c.b16 %v3172, %v3164
    %v3709 = vpack.c.b16 %v3181, %v3173
    %v3710 = vpack.c.b16 %v3182, %v3174
    %v3711 = vpack.c.b16 %v3183, %v3175
    %v3712 = vpack.c.b16 %v3184, %v3176
    %v3713 = vpack.c.b16 %v3185, %v3177
    %v3714 = vpack.c.b16 %v3186, %v3178
    %v3715 = vpack.c.b16 %v3187, %v3179
    %v3716 = vpack.c.b16 %v3188, %v3180
    %v3717 = vpack.c.b16 %v3197, %v3189
    %v3718 = vpack.c.b16 %v3198, %v3190
    %v3719 = vpack.c.b16 %v3199, %v3191
    %v3720 = vpack.c.b16 %v3200, %v3192
    %v3721 = vpack.c.b16 %v3201, %v3193
    %v3722 = vpack.c.b16 %v3202, %v3194
    %v3723 = vpack.c.b16 %v3203, %v3195
    %v3724 = vpack.c.b16 %v3204, %v3196
    %v3725 = vpack.c.b16 %v3213, %v3205
    %v3726 = vpack.c.b16 %v3214, %v3206
    %v3727 = vpack.c.b16 %v3215, %v3207
    %v3728 = vpack.c.b16 %v3216, %v3208
    %v3729 = vpack.c.b16 %v3217, %v3209
    %v3730 = vpack.c.b16 %v3218, %v3210
    %v3731 = vpack.c.b16 %v3219, %v3211
    %v3732 = vpack.c.b16 %v3220, %v3212
    %4245 = vmatprep.subr.bf16.mxu0 %v3222
    %4246 = vmatpush1.bf16.msra.mxu0 %v3221
    %4247 = vmatprep.subr.bf16.mxu0 %v3230
    %4248 = vmatpush1.bf16.msra.mxu0 %v3229
    %4249 = vmatprep.subr.bf16.mxu0 %v3238
    %4250 = vmatpush1.bf16.msra.mxu0 %v3237
    %4251 = vmatprep.subr.bf16.mxu0 %v3246
    %4252 = vmatpush1.bf16.msra.mxu0 %v3245
    %4253 = vmatprep.subr.bf16.mxu0 %v3254
    %4254 = vmatpush1.bf16.msra.mxu0 %v3253
    %4255 = vmatprep.subr.bf16.mxu0 %v3262
    %4256 = vmatpush1.bf16.msra.mxu0 %v3261
    %4257 = vmatprep.subr.bf16.mxu0 %v3270
    %4258 = vmatpush1.bf16.msra.mxu0 %v3269
    %4259 = vmatprep.subr.bf16.mxu0 %v3278
    %4260 = vmatpush1.bf16.msra.mxu0 %v3277
    %4261 = vmatprep.subr.bf16.mxu0 %v3286
    %4262 = vmatpush1.bf16.msra.mxu0 %v3285
    %4263 = vmatprep.subr.bf16.mxu0 %v3294
    %4264 = vmatpush1.bf16.msra.mxu0 %v3293
    %4265 = vmatprep.subr.bf16.mxu0 %v3302
    %4266 = vmatpush1.bf16.msra.mxu0 %v3301
    %4267 = vmatprep.subr.bf16.mxu0 %v3310
    %4268 = vmatpush1.bf16.msra.mxu0 %v3309
    %4269 = vmatprep.subr.bf16.mxu0 %v3318
    %4270 = vmatpush1.bf16.msra.mxu0 %v3317
    %4271 = vmatprep.subr.bf16.mxu0 %v3326
    %4272 = vmatpush1.bf16.msra.mxu0 %v3325
    %4273 = vmatprep.subr.bf16.mxu0 %v3334
    %4274 = vmatpush1.bf16.msra.mxu0 %v3333
    %4275 = vmatprep.subr.bf16.mxu0 %v3342
    %4276 = vmatpush1.bf16.msra.mxu0 %v3341
    %4277 = vmatprep.mubr.bf16.mxu0 %v1124
    %4278 = vmatmul.mubr.bf16.gmra.mrb[0].mxu0 %v1123
    %v4279 = vpop.f32.mrb[0].mxu0
    %v4280 = vadd.f32 %v1648, %v4279
    %v4281 = vpop.f32.mrb[0].mxu0
    %v4282 = vadd.f32 %v1652, %v4281
    %v4283 = vpop.f32.mrb[0].mxu0
    %v4284 = vpop.f32.mrb[0].mxu0
    %4285 = vdwg.mxu0
    %4286 = vmatprep.subr.bf16.mxu0 %v3350
    %4287 = vmatpush1.bf16.msra.mxu0 %v3349
    %4288 = vmatprep.subr.bf16.mxu0 %v3358
    %4289 = vmatpush1.bf16.msra.mxu0 %v3357
    %4290 = vmatprep.subr.bf16.mxu0 %v3366
    %4291 = vmatpush1.bf16.msra.mxu0 %v3365
    %4292 = vmatprep.subr.bf16.mxu0 %v3374
    %4293 = vmatpush1.bf16.msra.mxu0 %v3373
    %4294 = vmatprep.subr.bf16.mxu0 %v3382
    %4295 = vmatpush1.bf16.msra.mxu0 %v3381
    %4296 = vmatprep.subr.bf16.mxu0 %v3390
    %4297 = vmatpush1.bf16.msra.mxu0 %v3389
    %4298 = vmatprep.subr.bf16.mxu0 %v3398
    %4299 = vmatpush1.bf16.msra.mxu0 %v3397
    %4300 = vmatprep.subr.bf16.mxu0 %v3406
    %4301 = vmatpush1.bf16.msra.mxu0 %v3405
    %4302 = vmatprep.subr.bf16.mxu0 %v3414
    %4303 = vmatpush1.bf16.msra.mxu0 %v3413
    %4304 = vmatprep.subr.bf16.mxu0 %v3422
    %4305 = vmatpush1.bf16.msra.mxu0 %v3421
    %4306 = vmatprep.subr.bf16.mxu0 %v3430
    %4307 = vmatpush1.bf16.msra.mxu0 %v3429
    %4308 = vmatprep.subr.bf16.mxu0 %v3438
    %4309 = vmatpush1.bf16.msra.mxu0 %v3437
    %4310 = vmatprep.subr.bf16.mxu0 %v3446
    %4311 = vmatpush1.bf16.msra.mxu0 %v3445
    %4312 = vmatprep.subr.bf16.mxu0 %v3454
    %4313 = vmatpush1.bf16.msra.mxu0 %v3453
    %4314 = vmatprep.subr.bf16.mxu0 %v3462
    %4315 = vmatpush1.bf16.msra.mxu0 %v3461
    %4316 = vmatprep.subr.bf16.mxu0 %v3470
    %4317 = vmatpush1.bf16.msra.mxu0 %v3469
    %4318 = vmatprep.mubr.bf16.mxu0 %v1126
    %4319 = vmatmul.mubr.bf16.gmra.mrb[0].mxu0 %v1125
    %v4320 = vpop.f32.mrb[0].mxu0
    %v4321 = vadd.f32 %v4280, %v4320
    %v4322 = vpop.f32.mrb[0].mxu0
    %v4323 = vadd.f32 %v4282, %v4322
    %v4324 = vpop.f32.mrb[0].mxu0
    %v4325 = vpop.f32.mrb[0].mxu0
    %4326 = vdwg.mxu0
    %4327 = vmatprep.subr.bf16.mxu0 %v3478
    %4328 = vmatpush1.bf16.msra.mxu0 %v3477
    %4329 = vmatprep.subr.bf16.mxu0 %v3486
    %4330 = vmatpush1.bf16.msra.mxu0 %v3485
    %4331 = vmatprep.subr.bf16.mxu0 %v3494
    %4332 = vmatpush1.bf16.msra.mxu0 %v3493
    %4333 = vmatprep.subr.bf16.mxu0 %v3502
    %4334 = vmatpush1.bf16.msra.mxu0 %v3501
    %4335 = vmatprep.subr.bf16.mxu0 %v3510
    %4336 = vmatpush1.bf16.msra.mxu0 %v3509
    %4337 = vmatprep.subr.bf16.mxu0 %v3518
    %4338 = vmatpush1.bf16.msra.mxu0 %v3517
    %4339 = vmatprep.subr.bf16.mxu0 %v3526
    %4340 = vmatpush1.bf16.msra.mxu0 %v3525
    %4341 = vmatprep.subr.bf16.mxu0 %v3534
    %4342 = vmatpush1.bf16.msra.mxu0 %v3533
    %4343 = vmatprep.subr.bf16.mxu0 %v3542
    %4344 = vmatpush1.bf16.msra.mxu0 %v3541
    %4345 = vmatprep.subr.bf16.mxu0 %v3550
    %4346 = vmatpush1.bf16.msra.mxu0 %v3549
    %4347 = vmatprep.subr.bf16.mxu0 %v3558
    %4348 = vmatpush1.bf16.msra.mxu0 %v3557
    %4349 = vmatprep.subr.bf16.mxu0 %v3566
    %4350 = vmatpush1.bf16.msra.mxu0 %v3565
    %4351 = vmatprep.subr.bf16.mxu0 %v3574
    %4352 = vmatpush1.bf16.msra.mxu0 %v3573
    %4353 = vmatprep.subr.bf16.mxu0 %v3582
    %4354 = vmatpush1.bf16.msra.mxu0 %v3581
    %4355 = vmatprep.subr.bf16.mxu0 %v3590
    %4356 = vmatpush1.bf16.msra.mxu0 %v3589
    %4357 = vmatprep.subr.bf16.mxu0 %v3598
    %4358 = vmatpush1.bf16.msra.mxu0 %v3597
    %4359 = vmatprep.mubr.bf16.mxu0 %v1128
    %4360 = vmatmul.mubr.bf16.gmra.mrb[0].mxu0 %v1127
    %v4361 = vpop.f32.mrb[0].mxu0
    %v4362 = vadd.f32 %v4321, %v4361
    %v4363 = vpop.f32.mrb[0].mxu0
    %v4364 = vadd.f32 %v4323, %v4363
    %v4365 = vpop.f32.mrb[0].mxu0
    %v4366 = vpop.f32.mrb[0].mxu0
    %4367 = vdwg.mxu0
    %4368 = vmatprep.subr.bf16.mxu0 %v3606
    %4369 = vmatpush1.bf16.msra.mxu0 %v3605
    %4370 = vmatprep.subr.bf16.mxu0 %v3614
    %4371 = vmatpush1.bf16.msra.mxu0 %v3613
    %4372 = vmatprep.subr.bf16.mxu0 %v3622
    %4373 = vmatpush1.bf16.msra.mxu0 %v3621
    %4374 = vmatprep.subr.bf16.mxu0 %v3630
    %4375 = vmatpush1.bf16.msra.mxu0 %v3629
    %4376 = vmatprep.subr.bf16.mxu0 %v3638
    %4377 = vmatpush1.bf16.msra.mxu0 %v3637
    %4378 = vmatprep.subr.bf16.mxu0 %v3646
    %4379 = vmatpush1.bf16.msra.mxu0 %v3645
    %4380 = vmatprep.subr.bf16.mxu0 %v3654
    %4381 = vmatpush1.bf16.msra.mxu0 %v3653
    %4382 = vmatprep.subr.bf16.mxu0 %v3662
    %4383 = vmatpush1.bf16.msra.mxu0 %v3661
    %4384 = vmatprep.subr.bf16.mxu0 %v3670
    %4385 = vmatpush1.bf16.msra.mxu0 %v3669
    %4386 = vmatprep.subr.bf16.mxu0 %v3678
    %4387 = vmatpush1.bf16.msra.mxu0 %v3677
    %4388 = vmatprep.subr.bf16.mxu0 %v3686
    %4389 = vmatpush1.bf16.msra.mxu0 %v3685
    %4390 = vmatprep.subr.bf16.mxu0 %v3694
    %4391 = vmatpush1.bf16.msra.mxu0 %v3693
    %4392 = vmatprep.subr.bf16.mxu0 %v3702
    %4393 = vmatpush1.bf16.msra.mxu0 %v3701
    %4394 = vmatprep.subr.bf16.mxu0 %v3710
    %4395 = vmatpush1.bf16.msra.mxu0 %v3709
    %4396 = vmatprep.subr.bf16.mxu0 %v3718
    %4397 = vmatpush1.bf16.msra.mxu0 %v3717
    %4398 = vmatprep.subr.bf16.mxu0 %v3726
    %4399 = vmatpush1.bf16.msra.mxu0 %v3725
    %4400 = vmatprep.mubr.bf16.mxu0 %v1130
    %4401 = vmatmul.mubr.bf16.gmra.mrb[0].mxu0 %v1129
    %v4402 = vpop.f32.mrb[0].mxu0
    %v4403 = vadd.f32 %v4362, %v4402
    %v4404 = vpop.f32.mrb[0].mxu0
    %v4405 = vadd.f32 %v4364, %v4404
    %v4406 = vpop.f32.mrb[0].mxu0
    %v4407 = vpop.f32.mrb[0].mxu0
    %4408 = vdwg.mxu0
    %4409 = vmatprep.subr.bf16.mxu0 %v3224
    %4410 = vmatpush1.bf16.msra.mxu0 %v3223
    %4411 = vmatprep.subr.bf16.mxu0 %v3232
    %4412 = vmatpush1.bf16.msra.mxu0 %v3231
    %4413 = vmatprep.subr.bf16.mxu0 %v3240
    %4414 = vmatpush1.bf16.msra.mxu0 %v3239
    %4415 = vmatprep.subr.bf16.mxu0 %v3248
    %4416 = vmatpush1.bf16.msra.mxu0 %v3247
    %4417 = vmatprep.subr.bf16.mxu0 %v3256
    %4418 = vmatpush1.bf16.msra.mxu0 %v3255
    %4419 = vmatprep.subr.bf16.mxu0 %v3264
    %4420 = vmatpush1.bf16.msra.mxu0 %v3263
    %4421 = vmatprep.subr.bf16.mxu0 %v3272
    %4422 = vmatpush1.bf16.msra.mxu0 %v3271
    %4423 = vmatprep.subr.bf16.mxu0 %v3280
    %4424 = vmatpush1.bf16.msra.mxu0 %v3279
    %4425 = vmatprep.subr.bf16.mxu0 %v3288
    %4426 = vmatpush1.bf16.msra.mxu0 %v3287
    %4427 = vmatprep.subr.bf16.mxu0 %v3296
    %4428 = vmatpush1.bf16.msra.mxu0 %v3295
    %4429 = vmatprep.subr.bf16.mxu0 %v3304
    %4430 = vmatpush1.bf16.msra.mxu0 %v3303
    %4431 = vmatprep.subr.bf16.mxu0 %v3312
    %4432 = vmatpush1.bf16.msra.mxu0 %v3311
    %4433 = vmatprep.subr.bf16.mxu0 %v3320
    %4434 = vmatpush1.bf16.msra.mxu0 %v3319
    %4435 = vmatprep.subr.bf16.mxu0 %v3328
    %4436 = vmatpush1.bf16.msra.mxu0 %v3327
    %4437 = vmatprep.subr.bf16.mxu0 %v3336
    %4438 = vmatpush1.bf16.msra.mxu0 %v3335
    %4439 = vmatprep.subr.bf16.mxu0 %v3344
    %4440 = vmatpush1.bf16.msra.mxu0 %v3343
    %4441 = vmatprep.mubr.bf16.mxu0 %v1124
    %4442 = vmatmul.mubr.bf16.gmra.mrb[0].mxu0 %v1123
    %v4443 = vpop.f32.mrb[0].mxu0
    %v4444 = vadd.f32 %v1656, %v4443
    %v4445 = vpop.f32.mrb[0].mxu0
    %v4446 = vadd.f32 %v1660, %v4445
    %v4447 = vpop.f32.mrb[0].mxu0
    %v4448 = vpop.f32.mrb[0].mxu0
    %4449 = vdwg.mxu0
    %4450 = vmatprep.subr.bf16.mxu0 %v3352
    %4451 = vmatpush1.bf16.msra.mxu0 %v3351
    %4452 = vmatprep.subr.bf16.mxu0 %v3360
    %4453 = vmatpush1.bf16.msra.mxu0 %v3359
    %4454 = vmatprep.subr.bf16.mxu0 %v3368
    %4455 = vmatpush1.bf16.msra.mxu0 %v3367
    %4456 = vmatprep.subr.bf16.mxu0 %v3376
    %4457 = vmatpush1.bf16.msra.mxu0 %v3375
    %4458 = vmatprep.subr.bf16.mxu0 %v3384
    %4459 = vmatpush1.bf16.msra.mxu0 %v3383
    %4460 = vmatprep.subr.bf16.mxu0 %v3392
    %4461 = vmatpush1.bf16.msra.mxu0 %v3391
    %4462 = vmatprep.subr.bf16.mxu0 %v3400
    %4463 = vmatpush1.bf16.msra.mxu0 %v3399
    %4464 = vmatprep.subr.bf16.mxu0 %v3408
    %4465 = vmatpush1.bf16.msra.mxu0 %v3407
    %4466 = vmatprep.subr.bf16.mxu0 %v3416
    %4467 = vmatpush1.bf16.msra.mxu0 %v3415
    %4468 = vmatprep.subr.bf16.mxu0 %v3424
    %4469 = vmatpush1.bf16.msra.mxu0 %v3423
    %4470 = vmatprep.subr.bf16.mxu0 %v3432
    %4471 = vmatpush1.bf16.msra.mxu0 %v3431
    %4472 = vmatprep.subr.bf16.mxu0 %v3440
    %4473 = vmatpush1.bf16.msra.mxu0 %v3439
    %4474 = vmatprep.subr.bf16.mxu0 %v3448
    %4475 = vmatpush1.bf16.msra.mxu0 %v3447
    %4476 = vmatprep.subr.bf16.mxu0 %v3456
    %4477 = vmatpush1.bf16.msra.mxu0 %v3455
    %4478 = vmatprep.subr.bf16.mxu0 %v3464
    %4479 = vmatpush1.bf16.msra.mxu0 %v3463
    %4480 = vmatprep.subr.bf16.mxu0 %v3472
    %4481 = vmatpush1.bf16.msra.mxu0 %v3471
    %4482 = vmatprep.mubr.bf16.mxu0 %v1126
    %4483 = vmatmul.mubr.bf16.gmra.mrb[0].mxu0 %v1125
    %v4484 = vpop.f32.mrb[0].mxu0
    %v4485 = vadd.f32 %v4444, %v4484
    %v4486 = vpop.f32.mrb[0].mxu0
    %v4487 = vadd.f32 %v4446, %v4486
    %v4488 = vpop.f32.mrb[0].mxu0
    %v4489 = vpop.f32.mrb[0].mxu0
    %4490 = vdwg.mxu0
    %4491 = vmatprep.subr.bf16.mxu0 %v3480
    %4492 = vmatpush1.bf16.msra.mxu0 %v3479
    %4493 = vmatprep.subr.bf16.mxu0 %v3488
    %4494 = vmatpush1.bf16.msra.mxu0 %v3487
    %4495 = vmatprep.subr.bf16.mxu0 %v3496
    %4496 = vmatpush1.bf16.msra.mxu0 %v3495
    %4497 = vmatprep.subr.bf16.mxu0 %v3504
    %4498 = vmatpush1.bf16.msra.mxu0 %v3503
    %4499 = vmatprep.subr.bf16.mxu0 %v3512
    %4500 = vmatpush1.bf16.msra.mxu0 %v3511
    %4501 = vmatprep.subr.bf16.mxu0 %v3520
    %4502 = vmatpush1.bf16.msra.mxu0 %v3519
    %4503 = vmatprep.subr.bf16.mxu0 %v3528
    %4504 = vmatpush1.bf16.msra.mxu0 %v3527
    %4505 = vmatprep.subr.bf16.mxu0 %v3536
    %4506 = vmatpush1.bf16.msra.mxu0 %v3535
    %4507 = vmatprep.subr.bf16.mxu0 %v3544
    %4508 = vmatpush1.bf16.msra.mxu0 %v3543
    %4509 = vmatprep.subr.bf16.mxu0 %v3552
    %4510 = vmatpush1.bf16.msra.mxu0 %v3551
    %4511 = vmatprep.subr.bf16.mxu0 %v3560
    %4512 = vmatpush1.bf16.msra.mxu0 %v3559
    %4513 = vmatprep.subr.bf16.mxu0 %v3568
    %4514 = vmatpush1.bf16.msra.mxu0 %v3567
    %4515 = vmatprep.subr.bf16.mxu0 %v3576
    %4516 = vmatpush1.bf16.msra.mxu0 %v3575
    %4517 = vmatprep.subr.bf16.mxu0 %v3584
    %4518 = vmatpush1.bf16.msra.mxu0 %v3583
    %4519 = vmatprep.subr.bf16.mxu0 %v3592
    %4520 = vmatpush1.bf16.msra.mxu0 %v3591
    %4521 = vmatprep.subr.bf16.mxu0 %v3600
    %4522 = vmatpush1.bf16.msra.mxu0 %v3599
    %4523 = vmatprep.mubr.bf16.mxu0 %v1128
    %4524 = vmatmul.mubr.bf16.gmra.mrb[0].mxu0 %v1127
    %v4525 = vpop.f32.mrb[0].mxu0
    %v4526 = vadd.f32 %v4485, %v4525
    %v4527 = vpop.f32.mrb[0].mxu0
    %v4528 = vadd.f32 %v4487, %v4527
    %v4529 = vpop.f32.mrb[0].mxu0
    %v4530 = vpop.f32.mrb[0].mxu0
    %4531 = vdwg.mxu0
    %4532 = vmatprep.subr.bf16.mxu0 %v3608
    %4533 = vmatpush1.bf16.msra.mxu0 %v3607
    %4534 = vmatprep.subr.bf16.mxu0 %v3616
    %4535 = vmatpush1.bf16.msra.mxu0 %v3615
    %4536 = vmatprep.subr.bf16.mxu0 %v3624
    %4537 = vmatpush1.bf16.msra.mxu0 %v3623
    %4538 = vmatprep.subr.bf16.mxu0 %v3632
    %4539 = vmatpush1.bf16.msra.mxu0 %v3631
    %4540 = vmatprep.subr.bf16.mxu0 %v3640
    %4541 = vmatpush1.bf16.msra.mxu0 %v3639
    %4542 = vmatprep.subr.bf16.mxu0 %v3648
    %4543 = vmatpush1.bf16.msra.mxu0 %v3647
    %4544 = vmatprep.subr.bf16.mxu0 %v3656
    %4545 = vmatpush1.bf16.msra.mxu0 %v3655
    %4546 = vmatprep.subr.bf16.mxu0 %v3664
    %4547 = vmatpush1.bf16.msra.mxu0 %v3663
    %4548 = vmatprep.subr.bf16.mxu0 %v3672
    %4549 = vmatpush1.bf16.msra.mxu0 %v3671
    %4550 = vmatprep.subr.bf16.mxu0 %v3680
    %4551 = vmatpush1.bf16.msra.mxu0 %v3679
    %4552 = vmatprep.subr.bf16.mxu0 %v3688
    %4553 = vmatpush1.bf16.msra.mxu0 %v3687
    %4554 = vmatprep.subr.bf16.mxu0 %v3696
    %4555 = vmatpush1.bf16.msra.mxu0 %v3695
    %4556 = vmatprep.subr.bf16.mxu0 %v3704
    %4557 = vmatpush1.bf16.msra.mxu0 %v3703
    %4558 = vmatprep.subr.bf16.mxu0 %v3712
    %4559 = vmatpush1.bf16.msra.mxu0 %v3711
    %4560 = vmatprep.subr.bf16.mxu0 %v3720
    %4561 = vmatpush1.bf16.msra.mxu0 %v3719
    %4562 = vmatprep.subr.bf16.mxu0 %v3728
    %4563 = vmatpush1.bf16.msra.mxu0 %v3727
    %4564 = vmatprep.mubr.bf16.mxu0 %v1130
    %4565 = vmatmul.mubr.bf16.gmra.mrb[0].mxu0 %v1129
    %v4566 = vpop.f32.mrb[0].mxu0
    %v4567 = vadd.f32 %v4526, %v4566
    %v4568 = vpop.f32.mrb[0].mxu0
    %v4569 = vadd.f32 %v4528, %v4568
    %v4570 = vpop.f32.mrb[0].mxu0
    %v4571 = vpop.f32.mrb[0].mxu0
    %4572 = vdwg.mxu0
    %4573 = vmatprep.subr.bf16.mxu0 %v3226
    %4574 = vmatpush1.bf16.msra.mxu0 %v3225
    %4575 = vmatprep.subr.bf16.mxu0 %v3234
    %4576 = vmatpush1.bf16.msra.mxu0 %v3233
    %4577 = vmatprep.subr.bf16.mxu0 %v3242
    %4578 = vmatpush1.bf16.msra.mxu0 %v3241
    %4579 = vmatprep.subr.bf16.mxu0 %v3250
    %4580 = vmatpush1.bf16.msra.mxu0 %v3249
    %4581 = vmatprep.subr.bf16.mxu0 %v3258
    %4582 = vmatpush1.bf16.msra.mxu0 %v3257
    %4583 = vmatprep.subr.bf16.mxu0 %v3266
    %4584 = vmatpush1.bf16.msra.mxu0 %v3265
    %4585 = vmatprep.subr.bf16.mxu0 %v3274
    %4586 = vmatpush1.bf16.msra.mxu0 %v3273
    %4587 = vmatprep.subr.bf16.mxu0 %v3282
    %4588 = vmatpush1.bf16.msra.mxu0 %v3281
    %4589 = vmatprep.subr.bf16.mxu0 %v3290
    %4590 = vmatpush1.bf16.msra.mxu0 %v3289
    %4591 = vmatprep.subr.bf16.mxu0 %v3298
    %4592 = vmatpush1.bf16.msra.mxu0 %v3297
    %4593 = vmatprep.subr.bf16.mxu0 %v3306
    %4594 = vmatpush1.bf16.msra.mxu0 %v3305
    %4595 = vmatprep.subr.bf16.mxu0 %v3314
    %4596 = vmatpush1.bf16.msra.mxu0 %v3313
    %4597 = vmatprep.subr.bf16.mxu0 %v3322
    %4598 = vmatpush1.bf16.msra.mxu0 %v3321
    %4599 = vmatprep.subr.bf16.mxu0 %v3330
    %4600 = vmatpush1.bf16.msra.mxu0 %v3329
    %4601 = vmatprep.subr.bf16.mxu0 %v3338
    %4602 = vmatpush1.bf16.msra.mxu0 %v3337
    %4603 = vmatprep.subr.bf16.mxu0 %v3346
    %4604 = vmatpush1.bf16.msra.mxu0 %v3345
    %4605 = vmatprep.mubr.bf16.mxu0 %v1124
    %4606 = vmatmul.mubr.bf16.gmra.mrb[0].mxu0 %v1123
    %v4607 = vpop.f32.mrb[0].mxu0
    %v4608 = vadd.f32 %v1664, %v4607
    %v4609 = vpop.f32.mrb[0].mxu0
    %v4610 = vadd.f32 %v1668, %v4609
    %v4611 = vpop.f32.mrb[0].mxu0
    %v4612 = vpop.f32.mrb[0].mxu0
    %4613 = vdwg.mxu0
    %4614 = vmatprep.subr.bf16.mxu0 %v3354
    %4615 = vmatpush1.bf16.msra.mxu0 %v3353
    %4616 = vmatprep.subr.bf16.mxu0 %v3362
    %4617 = vmatpush1.bf16.msra.mxu0 %v3361
    %4618 = vmatprep.subr.bf16.mxu0 %v3370
    %4619 = vmatpush1.bf16.msra.mxu0 %v3369
    %4620 = vmatprep.subr.bf16.mxu0 %v3378
    %4621 = vmatpush1.bf16.msra.mxu0 %v3377
    %4622 = vmatprep.subr.bf16.mxu0 %v3386
    %4623 = vmatpush1.bf16.msra.mxu0 %v3385
    %4624 = vmatprep.subr.bf16.mxu0 %v3394
    %4625 = vmatpush1.bf16.msra.mxu0 %v3393
    %4626 = vmatprep.subr.bf16.mxu0 %v3402
    %4627 = vmatpush1.bf16.msra.mxu0 %v3401
    %4628 = vmatprep.subr.bf16.mxu0 %v3410
    %4629 = vmatpush1.bf16.msra.mxu0 %v3409
    %4630 = vmatprep.subr.bf16.mxu0 %v3418
    %4631 = vmatpush1.bf16.msra.mxu0 %v3417
    %4632 = vmatprep.subr.bf16.mxu0 %v3426
    %4633 = vmatpush1.bf16.msra.mxu0 %v3425
    %4634 = vmatprep.subr.bf16.mxu0 %v3434
    %4635 = vmatpush1.bf16.msra.mxu0 %v3433
    %4636 = vmatprep.subr.bf16.mxu0 %v3442
    %4637 = vmatpush1.bf16.msra.mxu0 %v3441
    %4638 = vmatprep.subr.bf16.mxu0 %v3450
    %4639 = vmatpush1.bf16.msra.mxu0 %v3449
    %4640 = vmatprep.subr.bf16.mxu0 %v3458
    %4641 = vmatpush1.bf16.msra.mxu0 %v3457
    %4642 = vmatprep.subr.bf16.mxu0 %v3466
    %4643 = vmatpush1.bf16.msra.mxu0 %v3465
    %4644 = vmatprep.subr.bf16.mxu0 %v3474
    %4645 = vmatpush1.bf16.msra.mxu0 %v3473
    %4646 = vmatprep.mubr.bf16.mxu0 %v1126
    %4647 = vmatmul.mubr.bf16.gmra.mrb[0].mxu0 %v1125
    %v4648 = vpop.f32.mrb[0].mxu0
    %v4649 = vadd.f32 %v4608, %v4648
    %v4650 = vpop.f32.mrb[0].mxu0
    %v4651 = vadd.f32 %v4610, %v4650
    %v4652 = vpop.f32.mrb[0].mxu0
    %v4653 = vpop.f32.mrb[0].mxu0
    %4654 = vdwg.mxu0
    %4655 = vmatprep.subr.bf16.mxu0 %v3482
    %4656 = vmatpush1.bf16.msra.mxu0 %v3481
    %4657 = vmatprep.subr.bf16.mxu0 %v3490
    %4658 = vmatpush1.bf16.msra.mxu0 %v3489
    %4659 = vmatprep.subr.bf16.mxu0 %v3498
    %4660 = vmatpush1.bf16.msra.mxu0 %v3497
    %4661 = vmatprep.subr.bf16.mxu0 %v3506
    %4662 = vmatpush1.bf16.msra.mxu0 %v3505
    %4663 = vmatprep.subr.bf16.mxu0 %v3514
    %4664 = vmatpush1.bf16.msra.mxu0 %v3513
    %4665 = vmatprep.subr.bf16.mxu0 %v3522
    %4666 = vmatpush1.bf16.msra.mxu0 %v3521
    %4667 = vmatprep.subr.bf16.mxu0 %v3530
    %4668 = vmatpush1.bf16.msra.mxu0 %v3529
    %4669 = vmatprep.subr.bf16.mxu0 %v3538
    %4670 = vmatpush1.bf16.msra.mxu0 %v3537
    %4671 = vmatprep.subr.bf16.mxu0 %v3546
    %4672 = vmatpush1.bf16.msra.mxu0 %v3545
    %4673 = vmatprep.subr.bf16.mxu0 %v3554
    %4674 = vmatpush1.bf16.msra.mxu0 %v3553
    %4675 = vmatprep.subr.bf16.mxu0 %v3562
    %4676 = vmatpush1.bf16.msra.mxu0 %v3561
    %4677 = vmatprep.subr.bf16.mxu0 %v3570
    %4678 = vmatpush1.bf16.msra.mxu0 %v3569
    %4679 = vmatprep.subr.bf16.mxu0 %v3578
    %4680 = vmatpush1.bf16.msra.mxu0 %v3577
    %4681 = vmatprep.subr.bf16.mxu0 %v3586
    %4682 = vmatpush1.bf16.msra.mxu0 %v3585
    %4683 = vmatprep.subr.bf16.mxu0 %v3594
    %4684 = vmatpush1.bf16.msra.mxu0 %v3593
    %4685 = vmatprep.subr.bf16.mxu0 %v3602
    %4686 = vmatpush1.bf16.msra.mxu0 %v3601
    %4687 = vmatprep.mubr.bf16.mxu0 %v1128
    %4688 = vmatmul.mubr.bf16.gmra.mrb[0].mxu0 %v1127
    %v4689 = vpop.f32.mrb[0].mxu0
    %v4690 = vadd.f32 %v4649, %v4689
    %v4691 = vpop.f32.mrb[0].mxu0
    %v4692 = vadd.f32 %v4651, %v4691
    %v4693 = vpop.f32.mrb[0].mxu0
    %v4694 = vpop.f32.mrb[0].mxu0
    %4695 = vdwg.mxu0
    %4696 = vmatprep.subr.bf16.mxu0 %v3610
    %4697 = vmatpush1.bf16.msra.mxu0 %v3609
    %4698 = vmatprep.subr.bf16.mxu0 %v3618
    %4699 = vmatpush1.bf16.msra.mxu0 %v3617
    %4700 = vmatprep.subr.bf16.mxu0 %v3626
    %4701 = vmatpush1.bf16.msra.mxu0 %v3625
    %4702 = vmatprep.subr.bf16.mxu0 %v3634
    %4703 = vmatpush1.bf16.msra.mxu0 %v3633
    %4704 = vmatprep.subr.bf16.mxu0 %v3642
    %4705 = vmatpush1.bf16.msra.mxu0 %v3641
    %4706 = vmatprep.subr.bf16.mxu0 %v3650
    %4707 = vmatpush1.bf16.msra.mxu0 %v3649
    %4708 = vmatprep.subr.bf16.mxu0 %v3658
    %4709 = vmatpush1.bf16.msra.mxu0 %v3657
    %4710 = vmatprep.subr.bf16.mxu0 %v3666
    %4711 = vmatpush1.bf16.msra.mxu0 %v3665
    %4712 = vmatprep.subr.bf16.mxu0 %v3674
    %4713 = vmatpush1.bf16.msra.mxu0 %v3673
    %4714 = vmatprep.subr.bf16.mxu0 %v3682
    %4715 = vmatpush1.bf16.msra.mxu0 %v3681
    %4716 = vmatprep.subr.bf16.mxu0 %v3690
    %4717 = vmatpush1.bf16.msra.mxu0 %v3689
    %4718 = vmatprep.subr.bf16.mxu0 %v3698
    %4719 = vmatpush1.bf16.msra.mxu0 %v3697
    %4720 = vmatprep.subr.bf16.mxu0 %v3706
    %4721 = vmatpush1.bf16.msra.mxu0 %v3705
    %4722 = vmatprep.subr.bf16.mxu0 %v3714
    %4723 = vmatpush1.bf16.msra.mxu0 %v3713
    %4724 = vmatprep.subr.bf16.mxu0 %v3722
    %4725 = vmatpush1.bf16.msra.mxu0 %v3721
    %4726 = vmatprep.subr.bf16.mxu0 %v3730
    %4727 = vmatpush1.bf16.msra.mxu0 %v3729
    %4728 = vmatprep.mubr.bf16.mxu0 %v1130
    %4729 = vmatmul.mubr.bf16.gmra.mrb[0].mxu0 %v1129
    %v4730 = vpop.f32.mrb[0].mxu0
    %v4731 = vadd.f32 %v4690, %v4730
    %v4732 = vpop.f32.mrb[0].mxu0
    %v4733 = vadd.f32 %v4692, %v4732
    %v4734 = vpop.f32.mrb[0].mxu0
    %v4735 = vpop.f32.mrb[0].mxu0
    %4736 = vdwg.mxu0
    %4737 = vmatprep.subr.bf16.mxu0 %v3228
    %4738 = vmatpush1.bf16.msra.mxu0 %v3227
    %4739 = vmatprep.subr.bf16.mxu0 %v3236
    %4740 = vmatpush1.bf16.msra.mxu0 %v3235
    %4741 = vmatprep.subr.bf16.mxu0 %v3244
    %4742 = vmatpush1.bf16.msra.mxu0 %v3243
    %4743 = vmatprep.subr.bf16.mxu0 %v3252
    %4744 = vmatpush1.bf16.msra.mxu0 %v3251
    %4745 = vmatprep.subr.bf16.mxu0 %v3260
    %4746 = vmatpush1.bf16.msra.mxu0 %v3259
    %4747 = vmatprep.subr.bf16.mxu0 %v3268
    %4748 = vmatpush1.bf16.msra.mxu0 %v3267
    %4749 = vmatprep.subr.bf16.mxu0 %v3276
    %4750 = vmatpush1.bf16.msra.mxu0 %v3275
    %4751 = vmatprep.subr.bf16.mxu0 %v3284
    %4752 = vmatpush1.bf16.msra.mxu0 %v3283
    %4753 = vmatprep.subr.bf16.mxu0 %v3292
    %4754 = vmatpush1.bf16.msra.mxu0 %v3291
    %4755 = vmatprep.subr.bf16.mxu0 %v3300
    %4756 = vmatpush1.bf16.msra.mxu0 %v3299
    %4757 = vmatprep.subr.bf16.mxu0 %v3308
    %4758 = vmatpush1.bf16.msra.mxu0 %v3307
    %4759 = vmatprep.subr.bf16.mxu0 %v3316
    %4760 = vmatpush1.bf16.msra.mxu0 %v3315
    %4761 = vmatprep.subr.bf16.mxu0 %v3324
    %4762 = vmatpush1.bf16.msra.mxu0 %v3323
    %4763 = vmatprep.subr.bf16.mxu0 %v3332
    %4764 = vmatpush1.bf16.msra.mxu0 %v3331
    %4765 = vmatprep.subr.bf16.mxu0 %v3340
    %4766 = vmatpush1.bf16.msra.mxu0 %v3339
    %4767 = vmatprep.subr.bf16.mxu0 %v3348
    %4768 = vmatpush1.bf16.msra.mxu0 %v3347
    %4769 = vmatprep.mubr.bf16.mxu0 %v1124
    %4770 = vmatmul.mubr.bf16.gmra.mrb[0].mxu0 %v1123
    %v4771 = vpop.f32.mrb[0].mxu0
    %v4772 = vadd.f32 %v1672, %v4771
    %v4773 = vpop.f32.mrb[0].mxu0
    %v4774 = vadd.f32 %v1676, %v4773
    %v4775 = vpop.f32.mrb[0].mxu0
    %v4776 = vpop.f32.mrb[0].mxu0
    %4777 = vdwg.mxu0
    %4778 = vmatprep.subr.bf16.mxu0 %v3356
    %4779 = vmatpush1.bf16.msra.mxu0 %v3355
    %4780 = vmatprep.subr.bf16.mxu0 %v3364
    %4781 = vmatpush1.bf16.msra.mxu0 %v3363
    %4782 = vmatprep.subr.bf16.mxu0 %v3372
    %4783 = vmatpush1.bf16.msra.mxu0 %v3371
    %4784 = vmatprep.subr.bf16.mxu0 %v3380
    %4785 = vmatpush1.bf16.msra.mxu0 %v3379
    %4786 = vmatprep.subr.bf16.mxu0 %v3388
    %4787 = vmatpush1.bf16.msra.mxu0 %v3387
    %4788 = vmatprep.subr.bf16.mxu0 %v3396
    %4789 = vmatpush1.bf16.msra.mxu0 %v3395
    %4790 = vmatprep.subr.bf16.mxu0 %v3404
    %4791 = vmatpush1.bf16.msra.mxu0 %v3403
    %4792 = vmatprep.subr.bf16.mxu0 %v3412
    %4793 = vmatpush1.bf16.msra.mxu0 %v3411
    %4794 = vmatprep.subr.bf16.mxu0 %v3420
    %4795 = vmatpush1.bf16.msra.mxu0 %v3419
    %4796 = vmatprep.subr.bf16.mxu0 %v3428
    %4797 = vmatpush1.bf16.msra.mxu0 %v3427
    %4798 = vmatprep.subr.bf16.mxu0 %v3436
    %4799 = vmatpush1.bf16.msra.mxu0 %v3435
    %4800 = vmatprep.subr.bf16.mxu0 %v3444
    %4801 = vmatpush1.bf16.msra.mxu0 %v3443
    %4802 = vmatprep.subr.bf16.mxu0 %v3452
    %4803 = vmatpush1.bf16.msra.mxu0 %v3451
    %4804 = vmatprep.subr.bf16.mxu0 %v3460
    %4805 = vmatpush1.bf16.msra.mxu0 %v3459
    %4806 = vmatprep.subr.bf16.mxu0 %v3468
    %4807 = vmatpush1.bf16.msra.mxu0 %v3467
    %4808 = vmatprep.subr.bf16.mxu0 %v3476
    %4809 = vmatpush1.bf16.msra.mxu0 %v3475
    %4810 = vmatprep.mubr.bf16.mxu0 %v1126
    %4811 = vmatmul.mubr.bf16.gmra.mrb[0].mxu0 %v1125
    %v4812 = vpop.f32.mrb[0].mxu0
    %v4813 = vadd.f32 %v4772, %v4812
    %v4814 = vpop.f32.mrb[0].mxu0
    %v4815 = vadd.f32 %v4774, %v4814
    %v4816 = vpop.f32.mrb[0].mxu0
    %v4817 = vpop.f32.mrb[0].mxu0
    %4818 = vdwg.mxu0
    %4819 = vmatprep.subr.bf16.mxu0 %v3484
    %4820 = vmatpush1.bf16.msra.mxu0 %v3483
    %4821 = vmatprep.subr.bf16.mxu0 %v3492
    %4822 = vmatpush1.bf16.msra.mxu0 %v3491
    %4823 = vmatprep.subr.bf16.mxu0 %v3500
    %4824 = vmatpush1.bf16.msra.mxu0 %v3499
    %4825 = vmatprep.subr.bf16.mxu0 %v3508
    %4826 = vmatpush1.bf16.msra.mxu0 %v3507
    %4827 = vmatprep.subr.bf16.mxu0 %v3516
    %4828 = vmatpush1.bf16.msra.mxu0 %v3515
    %4829 = vmatprep.subr.bf16.mxu0 %v3524
    %4830 = vmatpush1.bf16.msra.mxu0 %v3523
    %4831 = vmatprep.subr.bf16.mxu0 %v3532
    %4832 = vmatpush1.bf16.msra.mxu0 %v3531
    %4833 = vmatprep.subr.bf16.mxu0 %v3540
    %4834 = vmatpush1.bf16.msra.mxu0 %v3539
    %4835 = vmatprep.subr.bf16.mxu0 %v3548
    %4836 = vmatpush1.bf16.msra.mxu0 %v3547
    %4837 = vmatprep.subr.bf16.mxu0 %v3556
    %4838 = vmatpush1.bf16.msra.mxu0 %v3555
    %4839 = vmatprep.subr.bf16.mxu0 %v3564
    %4840 = vmatpush1.bf16.msra.mxu0 %v3563
    %4841 = vmatprep.subr.bf16.mxu0 %v3572
    %4842 = vmatpush1.bf16.msra.mxu0 %v3571
    %4843 = vmatprep.subr.bf16.mxu0 %v3580
    %4844 = vmatpush1.bf16.msra.mxu0 %v3579
    %4845 = vmatprep.subr.bf16.mxu0 %v3588
    %4846 = vmatpush1.bf16.msra.mxu0 %v3587
    %4847 = vmatprep.subr.bf16.mxu0 %v3596
    %4848 = vmatpush1.bf16.msra.mxu0 %v3595
    %4849 = vmatprep.subr.bf16.mxu0 %v3604
    %4850 = vmatpush1.bf16.msra.mxu0 %v3603
    %4851 = vmatprep.mubr.bf16.mxu0 %v1128
    %4852 = vmatmul.mubr.bf16.gmra.mrb[0].mxu0 %v1127
    %v4853 = vpop.f32.mrb[0].mxu0
    %v4854 = vadd.f32 %v4813, %v4853
    %v4855 = vpop.f32.mrb[0].mxu0
    %v4856 = vadd.f32 %v4815, %v4855
    %v4857 = vpop.f32.mrb[0].mxu0
    %v4858 = vpop.f32.mrb[0].mxu0
    %4859 = vdwg.mxu0
    %4860 = vmatprep.subr.bf16.mxu0 %v3612
    %4861 = vmatpush1.bf16.msra.mxu0 %v3611
    %4862 = vmatprep.subr.bf16.mxu0 %v3620
    %4863 = vmatpush1.bf16.msra.mxu0 %v3619
    %4864 = vmatprep.subr.bf16.mxu0 %v3628
    %4865 = vmatpush1.bf16.msra.mxu0 %v3627
    %4866 = vmatprep.subr.bf16.mxu0 %v3636
    %4867 = vmatpush1.bf16.msra.mxu0 %v3635
    %4868 = vmatprep.subr.bf16.mxu0 %v3644
    %4869 = vmatpush1.bf16.msra.mxu0 %v3643
    %4870 = vmatprep.subr.bf16.mxu0 %v3652
    %4871 = vmatpush1.bf16.msra.mxu0 %v3651
    %4872 = vmatprep.subr.bf16.mxu0 %v3660
    %4873 = vmatpush1.bf16.msra.mxu0 %v3659
    %4874 = vmatprep.subr.bf16.mxu0 %v3668
    %4875 = vmatpush1.bf16.msra.mxu0 %v3667
    %4876 = vmatprep.subr.bf16.mxu0 %v3676
    %4877 = vmatpush1.bf16.msra.mxu0 %v3675
    %4878 = vmatprep.subr.bf16.mxu0 %v3684
    %4879 = vmatpush1.bf16.msra.mxu0 %v3683
    %4880 = vmatprep.subr.bf16.mxu0 %v3692
    %4881 = vmatpush1.bf16.msra.mxu0 %v3691
    %4882 = vmatprep.subr.bf16.mxu0 %v3700
    %4883 = vmatpush1.bf16.msra.mxu0 %v3699
    %4884 = vmatprep.subr.bf16.mxu0 %v3708
    %4885 = vmatpush1.bf16.msra.mxu0 %v3707
    %4886 = vmatprep.subr.bf16.mxu0 %v3716
    %4887 = vmatpush1.bf16.msra.mxu0 %v3715
    %4888 = vmatprep.subr.bf16.mxu0 %v3724
    %4889 = vmatpush1.bf16.msra.mxu0 %v3723
    %4890 = vmatprep.subr.bf16.mxu0 %v3732
    %4891 = vmatpush1.bf16.msra.mxu0 %v3731
    %4892 = vmatprep.mubr.bf16.mxu0 %v1130
    %4893 = vmatmul.mubr.bf16.gmra.mrb[0].mxu0 %v1129
    %v4894 = vpop.f32.mrb[0].mxu0
    %v4895 = vadd.f32 %v4854, %v4894
    %v4896 = vpop.f32.mrb[0].mxu0
    %v4897 = vadd.f32 %v4856, %v4896
    %v4898 = vpop.f32.mrb[0].mxu0
    %v4899 = vpop.f32.mrb[0].mxu0
    %4900 = vdwg.mxu0
    %v4901 = vmax.f32 %v4403, 0.0
    %v4902 = vmax.f32 %v4405, 0.0
    %v4903 = vmax.f32 %v4567, 0.0
    %v4904 = vmax.f32 %v4569, 0.0
    %v4905 = vmax.f32 %v4731, 0.0
    %v4906 = vmax.f32 %v4733, 0.0
    %v4907 = vmax.f32 %v4895, 0.0
    %v4908 = vmax.f32 %v4897, 0.0
    %v4909 = vpack.c.bf16 %v4901, %v4901
    %v4910 = vpack.c.bf16 %v4902, %v4902
    %v4911 = vpack.c.bf16 %v4903, %v4903
    %v4912 = vpack.c.bf16 %v4904, %v4904
    %v4913 = vpack.c.bf16 %v4905, %v4905
    %v4914 = vpack.c.bf16 %v4906, %v4906
    %v4915 = vpack.c.bf16 %v4907, %v4907
    %v4916 = vpack.c.bf16 %v4908, %v4908
    %v4917 = vld [vmem:[#allocation11] sm:$0xff]
    %v4918 = vld [vmem:[#allocation11 + $0x8] sm:$0xff]
    %v4919 = vld [vmem:[#allocation11 + $0x10] sm:$0xff]
    %v4920 = vld [vmem:[#allocation11 + $0x18] sm:$0xff]
    %v4921 = vld [vmem:[#allocation11 + $0x20] sm:$0xff]
    %v4922 = vld [vmem:[#allocation11 + $0x28] sm:$0xff]
    %v4923 = vld [vmem:[#allocation11 + $0x30] sm:$0xff]
    %v4924 = vld [vmem:[#allocation11 + $0x38] sm:$0xff]
    %v4925 = vld [vmem:[#allocation11 + $0x40] sm:$0xff]
    %v4926 = vld [vmem:[#allocation11 + $0x48] sm:$0xff]
    %v4927 = vld [vmem:[#allocation11 + $0x50] sm:$0xff]
    %v4928 = vld [vmem:[#allocation11 + $0x58] sm:$0xff]
    %v4929 = vld [vmem:[#allocation11 + $0x60] sm:$0xff]
    %v4930 = vld [vmem:[#allocation11 + $0x68] sm:$0xff]
    %v4931 = vld [vmem:[#allocation11 + $0x70] sm:$0xff]
    %v4932 = vld [vmem:[#allocation11 + $0x78] sm:$0xff]
    %v4933 = vld [vmem:[#allocation11 + $0x80] sm:$0xff]
    %v4934 = vld [vmem:[#allocation11 + $0x88] sm:$0xff]
    %v4935 = vld [vmem:[#allocation11 + $0x90] sm:$0xff]
    %v4936 = vld [vmem:[#allocation11 + $0x98] sm:$0xff]
    %v4937 = vld [vmem:[#allocation11 + $0xa0] sm:$0xff]
    %v4938 = vld [vmem:[#allocation11 + $0xa8] sm:$0xff]
    %v4939 = vld [vmem:[#allocation11 + $0xb0] sm:$0xff]
    %v4940 = vld [vmem:[#allocation11 + $0xb8] sm:$0xff]
    %v4941 = vld [vmem:[#allocation11 + $0xc0] sm:$0xff]
    %v4942 = vld [vmem:[#allocation11 + $0xc8] sm:$0xff]
    %v4943 = vld [vmem:[#allocation11 + $0xd0] sm:$0xff]
    %v4944 = vld [vmem:[#allocation11 + $0xd8] sm:$0xff]
    %v4945 = vld [vmem:[#allocation11 + $0xe0] sm:$0xff]
    %v4946 = vld [vmem:[#allocation11 + $0xe8] sm:$0xff]
    %v4947 = vld [vmem:[#allocation11 + $0xf0] sm:$0xff]
    %v4948 = vld [vmem:[#allocation11 + $0xf8] sm:$0xff]
    %v4949 = vld [vmem:[#allocation11 + $0x100] sm:$0xff]
    %v4950 = vld [vmem:[#allocation11 + $0x108] sm:$0xff]
    %v4951 = vld [vmem:[#allocation11 + $0x110] sm:$0xff]
    %v4952 = vld [vmem:[#allocation11 + $0x118] sm:$0xff]
    %v4953 = vld [vmem:[#allocation11 + $0x120] sm:$0xff]
    %v4954 = vld [vmem:[#allocation11 + $0x128] sm:$0xff]
    %v4955 = vld [vmem:[#allocation11 + $0x130] sm:$0xff]
    %v4956 = vld [vmem:[#allocation11 + $0x138] sm:$0xff]
    %v4957 = vld [vmem:[#allocation11 + $0x140] sm:$0xff]
    %v4958 = vld [vmem:[#allocation11 + $0x148] sm:$0xff]
    %v4959 = vld [vmem:[#allocation11 + $0x150] sm:$0xff]
    %v4960 = vld [vmem:[#allocation11 + $0x158] sm:$0xff]
    %v4961 = vld [vmem:[#allocation11 + $0x160] sm:$0xff]
    %v4962 = vld [vmem:[#allocation11 + $0x168] sm:$0xff]
    %v4963 = vld [vmem:[#allocation11 + $0x170] sm:$0xff]
    %v4964 = vld [vmem:[#allocation11 + $0x178] sm:$0xff]
    %v4965 = vld [vmem:[#allocation11 + $0x180] sm:$0xff]
    %v4966 = vld [vmem:[#allocation11 + $0x188] sm:$0xff]
    %v4967 = vld [vmem:[#allocation11 + $0x190] sm:$0xff]
    %v4968 = vld [vmem:[#allocation11 + $0x198] sm:$0xff]
    %v4969 = vld [vmem:[#allocation11 + $0x1a0] sm:$0xff]
    %v4970 = vld [vmem:[#allocation11 + $0x1a8] sm:$0xff]
    %v4971 = vld [vmem:[#allocation11 + $0x1b0] sm:$0xff]
    %v4972 = vld [vmem:[#allocation11 + $0x1b8] sm:$0xff]
    %v4973 = vld [vmem:[#allocation11 + $0x1c0] sm:$0xff]
    %v4974 = vld [vmem:[#allocation11 + $0x1c8] sm:$0xff]
    %v4975 = vld [vmem:[#allocation11 + $0x1d0] sm:$0xff]
    %v4976 = vld [vmem:[#allocation11 + $0x1d8] sm:$0xff]
    %v4977 = vld [vmem:[#allocation11 + $0x1e0] sm:$0xff]
    %v4978 = vld [vmem:[#allocation11 + $0x1e8] sm:$0xff]
    %v4979 = vld [vmem:[#allocation11 + $0x1f0] sm:$0xff]
    %v4980 = vld [vmem:[#allocation11 + $0x1f8] sm:$0xff]
    %v4981 = vld [vmem:[#allocation11 + $0x200] sm:$0xff]
    %v4982 = vld [vmem:[#allocation11 + $0x208] sm:$0xff]
    %v4983 = vld [vmem:[#allocation11 + $0x210] sm:$0xff]
    %v4984 = vld [vmem:[#allocation11 + $0x218] sm:$0xff]
    %v4985 = vld [vmem:[#allocation11 + $0x220] sm:$0xff]
    %v4986 = vld [vmem:[#allocation11 + $0x228] sm:$0xff]
    %v4987 = vld [vmem:[#allocation11 + $0x230] sm:$0xff]
    %v4988 = vld [vmem:[#allocation11 + $0x238] sm:$0xff]
    %v4989 = vld [vmem:[#allocation11 + $0x240] sm:$0xff]
    %v4990 = vld [vmem:[#allocation11 + $0x248] sm:$0xff]
    %v4991 = vld [vmem:[#allocation11 + $0x250] sm:$0xff]
    %v4992 = vld [vmem:[#allocation11 + $0x258] sm:$0xff]
    %v4993 = vld [vmem:[#allocation11 + $0x260] sm:$0xff]
    %v4994 = vld [vmem:[#allocation11 + $0x268] sm:$0xff]
    %v4995 = vld [vmem:[#allocation11 + $0x270] sm:$0xff]
    %v4996 = vld [vmem:[#allocation11 + $0x278] sm:$0xff]
    %v4997 = vld [vmem:[#allocation11 + $0x280] sm:$0xff]
    %v4998 = vld [vmem:[#allocation11 + $0x288] sm:$0xff]
    %v4999 = vld [vmem:[#allocation11 + $0x290] sm:$0xff]
    %v5000 = vld [vmem:[#allocation11 + $0x298] sm:$0xff]
    %v5001 = vld [vmem:[#allocation11 + $0x2a0] sm:$0xff]
    %v5002 = vld [vmem:[#allocation11 + $0x2a8] sm:$0xff]
    %v5003 = vld [vmem:[#allocation11 + $0x2b0] sm:$0xff]
    %v5004 = vld [vmem:[#allocation11 + $0x2b8] sm:$0xff]
    %v5005 = vld [vmem:[#allocation11 + $0x2c0] sm:$0xff]
    %v5006 = vld [vmem:[#allocation11 + $0x2c8] sm:$0xff]
    %v5007 = vld [vmem:[#allocation11 + $0x2d0] sm:$0xff]
    %v5008 = vld [vmem:[#allocation11 + $0x2d8] sm:$0xff]
    %v5009 = vld [vmem:[#allocation11 + $0x2e0] sm:$0xff]
    %v5010 = vld [vmem:[#allocation11 + $0x2e8] sm:$0xff]
    %v5011 = vld [vmem:[#allocation11 + $0x2f0] sm:$0xff]
    %v5012 = vld [vmem:[#allocation11 + $0x2f8] sm:$0xff]
    %v5013 = vld [vmem:[#allocation11 + $0x300] sm:$0xff]
    %v5014 = vld [vmem:[#allocation11 + $0x308] sm:$0xff]
    %v5015 = vld [vmem:[#allocation11 + $0x310] sm:$0xff]
    %v5016 = vld [vmem:[#allocation11 + $0x318] sm:$0xff]
    %v5017 = vld [vmem:[#allocation11 + $0x320] sm:$0xff]
    %v5018 = vld [vmem:[#allocation11 + $0x328] sm:$0xff]
    %v5019 = vld [vmem:[#allocation11 + $0x330] sm:$0xff]
    %v5020 = vld [vmem:[#allocation11 + $0x338] sm:$0xff]
    %v5021 = vld [vmem:[#allocation11 + $0x340] sm:$0xff]
    %v5022 = vld [vmem:[#allocation11 + $0x348] sm:$0xff]
    %v5023 = vld [vmem:[#allocation11 + $0x350] sm:$0xff]
    %v5024 = vld [vmem:[#allocation11 + $0x358] sm:$0xff]
    %v5025 = vld [vmem:[#allocation11 + $0x360] sm:$0xff]
    %v5026 = vld [vmem:[#allocation11 + $0x368] sm:$0xff]
    %v5027 = vld [vmem:[#allocation11 + $0x370] sm:$0xff]
    %v5028 = vld [vmem:[#allocation11 + $0x378] sm:$0xff]
    %v5029 = vld [vmem:[#allocation11 + $0x380] sm:$0xff]
    %v5030 = vld [vmem:[#allocation11 + $0x388] sm:$0xff]
    %v5031 = vld [vmem:[#allocation11 + $0x390] sm:$0xff]
    %v5032 = vld [vmem:[#allocation11 + $0x398] sm:$0xff]
    %v5033 = vld [vmem:[#allocation11 + $0x3a0] sm:$0xff]
    %v5034 = vld [vmem:[#allocation11 + $0x3a8] sm:$0xff]
    %v5035 = vld [vmem:[#allocation11 + $0x3b0] sm:$0xff]
    %v5036 = vld [vmem:[#allocation11 + $0x3b8] sm:$0xff]
    %v5037 = vld [vmem:[#allocation11 + $0x3c0] sm:$0xff]
    %v5038 = vld [vmem:[#allocation11 + $0x3c8] sm:$0xff]
    %v5039 = vld [vmem:[#allocation11 + $0x3d0] sm:$0xff]
    %v5040 = vld [vmem:[#allocation11 + $0x3d8] sm:$0xff]
    %v5041 = vld [vmem:[#allocation11 + $0x3e0] sm:$0xff]
    %v5042 = vld [vmem:[#allocation11 + $0x3e8] sm:$0xff]
    %v5043 = vld [vmem:[#allocation11 + $0x3f0] sm:$0xff]
    %v5044 = vld [vmem:[#allocation11 + $0x3f8] sm:$0xff]
    %v5045 = vld [vmem:[#allocation11 + $0x400] sm:$0xff]
    %v5046 = vld [vmem:[#allocation11 + $0x408] sm:$0xff]
    %v5047 = vld [vmem:[#allocation11 + $0x410] sm:$0xff]
    %v5048 = vld [vmem:[#allocation11 + $0x418] sm:$0xff]
    %v5049 = vld [vmem:[#allocation11 + $0x420] sm:$0xff]
    %v5050 = vld [vmem:[#allocation11 + $0x428] sm:$0xff]
    %v5051 = vld [vmem:[#allocation11 + $0x430] sm:$0xff]
    %v5052 = vld [vmem:[#allocation11 + $0x438] sm:$0xff]
    %v5053 = vld [vmem:[#allocation11 + $0x440] sm:$0xff]
    %v5054 = vld [vmem:[#allocation11 + $0x448] sm:$0xff]
    %v5055 = vld [vmem:[#allocation11 + $0x450] sm:$0xff]
    %v5056 = vld [vmem:[#allocation11 + $0x458] sm:$0xff]
    %v5057 = vld [vmem:[#allocation11 + $0x460] sm:$0xff]
    %v5058 = vld [vmem:[#allocation11 + $0x468] sm:$0xff]
    %v5059 = vld [vmem:[#allocation11 + $0x470] sm:$0xff]
    %v5060 = vld [vmem:[#allocation11 + $0x478] sm:$0xff]
    %v5061 = vld [vmem:[#allocation11 + $0x480] sm:$0xff]
    %v5062 = vld [vmem:[#allocation11 + $0x488] sm:$0xff]
    %v5063 = vld [vmem:[#allocation11 + $0x490] sm:$0xff]
    %v5064 = vld [vmem:[#allocation11 + $0x498] sm:$0xff]
    %v5065 = vld [vmem:[#allocation11 + $0x4a0] sm:$0xff]
    %v5066 = vld [vmem:[#allocation11 + $0x4a8] sm:$0xff]
    %v5067 = vld [vmem:[#allocation11 + $0x4b0] sm:$0xff]
    %v5068 = vld [vmem:[#allocation11 + $0x4b8] sm:$0xff]
    %v5069 = vld [vmem:[#allocation11 + $0x4c0] sm:$0xff]
    %v5070 = vld [vmem:[#allocation11 + $0x4c8] sm:$0xff]
    %v5071 = vld [vmem:[#allocation11 + $0x4d0] sm:$0xff]
    %v5072 = vld [vmem:[#allocation11 + $0x4d8] sm:$0xff]
    %v5073 = vld [vmem:[#allocation11 + $0x4e0] sm:$0xff]
    %v5074 = vld [vmem:[#allocation11 + $0x4e8] sm:$0xff]
    %v5075 = vld [vmem:[#allocation11 + $0x4f0] sm:$0xff]
    %v5076 = vld [vmem:[#allocation11 + $0x4f8] sm:$0xff]
    %v5077 = vld [vmem:[#allocation11 + $0x500] sm:$0xff]
    %v5078 = vld [vmem:[#allocation11 + $0x508] sm:$0xff]
    %v5079 = vld [vmem:[#allocation11 + $0x510] sm:$0xff]
    %v5080 = vld [vmem:[#allocation11 + $0x518] sm:$0xff]
    %v5081 = vld [vmem:[#allocation11 + $0x520] sm:$0xff]
    %v5082 = vld [vmem:[#allocation11 + $0x528] sm:$0xff]
    %v5083 = vld [vmem:[#allocation11 + $0x530] sm:$0xff]
    %v5084 = vld [vmem:[#allocation11 + $0x538] sm:$0xff]
    %v5085 = vld [vmem:[#allocation11 + $0x540] sm:$0xff]
    %v5086 = vld [vmem:[#allocation11 + $0x548] sm:$0xff]
    %v5087 = vld [vmem:[#allocation11 + $0x550] sm:$0xff]
    %v5088 = vld [vmem:[#allocation11 + $0x558] sm:$0xff]
    %v5089 = vld [vmem:[#allocation11 + $0x560] sm:$0xff]
    %v5090 = vld [vmem:[#allocation11 + $0x568] sm:$0xff]
    %v5091 = vld [vmem:[#allocation11 + $0x570] sm:$0xff]
    %v5092 = vld [vmem:[#allocation11 + $0x578] sm:$0xff]
    %v5093 = vld [vmem:[#allocation11 + $0x580] sm:$0xff]
    %v5094 = vld [vmem:[#allocation11 + $0x588] sm:$0xff]
    %v5095 = vld [vmem:[#allocation11 + $0x590] sm:$0xff]
    %v5096 = vld [vmem:[#allocation11 + $0x598] sm:$0xff]
    %v5097 = vld [vmem:[#allocation11 + $0x5a0] sm:$0xff]
    %v5098 = vld [vmem:[#allocation11 + $0x5a8] sm:$0xff]
    %v5099 = vld [vmem:[#allocation11 + $0x5b0] sm:$0xff]
    %v5100 = vld [vmem:[#allocation11 + $0x5b8] sm:$0xff]
    %v5101 = vld [vmem:[#allocation11 + $0x5c0] sm:$0xff]
    %v5102 = vld [vmem:[#allocation11 + $0x5c8] sm:$0xff]
    %v5103 = vld [vmem:[#allocation11 + $0x5d0] sm:$0xff]
    %v5104 = vld [vmem:[#allocation11 + $0x5d8] sm:$0xff]
    %v5105 = vld [vmem:[#allocation11 + $0x5e0] sm:$0xff]
    %v5106 = vld [vmem:[#allocation11 + $0x5e8] sm:$0xff]
    %v5107 = vld [vmem:[#allocation11 + $0x5f0] sm:$0xff]
    %v5108 = vld [vmem:[#allocation11 + $0x5f8] sm:$0xff]
    %v5109 = vld [vmem:[#allocation11 + $0x600] sm:$0xff]
    %v5110 = vld [vmem:[#allocation11 + $0x608] sm:$0xff]
    %v5111 = vld [vmem:[#allocation11 + $0x610] sm:$0xff]
    %v5112 = vld [vmem:[#allocation11 + $0x618] sm:$0xff]
    %v5113 = vld [vmem:[#allocation11 + $0x620] sm:$0xff]
    %v5114 = vld [vmem:[#allocation11 + $0x628] sm:$0xff]
    %v5115 = vld [vmem:[#allocation11 + $0x630] sm:$0xff]
    %v5116 = vld [vmem:[#allocation11 + $0x638] sm:$0xff]
    %v5117 = vld [vmem:[#allocation11 + $0x640] sm:$0xff]
    %v5118 = vld [vmem:[#allocation11 + $0x648] sm:$0xff]
    %v5119 = vld [vmem:[#allocation11 + $0x650] sm:$0xff]
    %v5120 = vld [vmem:[#allocation11 + $0x658] sm:$0xff]
    %v5121 = vld [vmem:[#allocation11 + $0x660] sm:$0xff]
    %v5122 = vld [vmem:[#allocation11 + $0x668] sm:$0xff]
    %v5123 = vld [vmem:[#allocation11 + $0x670] sm:$0xff]
    %v5124 = vld [vmem:[#allocation11 + $0x678] sm:$0xff]
    %v5125 = vld [vmem:[#allocation11 + $0x680] sm:$0xff]
    %v5126 = vld [vmem:[#allocation11 + $0x688] sm:$0xff]
    %v5127 = vld [vmem:[#allocation11 + $0x690] sm:$0xff]
    %v5128 = vld [vmem:[#allocation11 + $0x698] sm:$0xff]
    %v5129 = vld [vmem:[#allocation11 + $0x6a0] sm:$0xff]
    %v5130 = vld [vmem:[#allocation11 + $0x6a8] sm:$0xff]
    %v5131 = vld [vmem:[#allocation11 + $0x6b0] sm:$0xff]
    %v5132 = vld [vmem:[#allocation11 + $0x6b8] sm:$0xff]
    %v5133 = vld [vmem:[#allocation11 + $0x6c0] sm:$0xff]
    %v5134 = vld [vmem:[#allocation11 + $0x6c8] sm:$0xff]
    %v5135 = vld [vmem:[#allocation11 + $0x6d0] sm:$0xff]
    %v5136 = vld [vmem:[#allocation11 + $0x6d8] sm:$0xff]
    %v5137 = vld [vmem:[#allocation11 + $0x6e0] sm:$0xff]
    %v5138 = vld [vmem:[#allocation11 + $0x6e8] sm:$0xff]
    %v5139 = vld [vmem:[#allocation11 + $0x6f0] sm:$0xff]
    %v5140 = vld [vmem:[#allocation11 + $0x6f8] sm:$0xff]
    %v5141 = vld [vmem:[#allocation11 + $0x700] sm:$0xff]
    %v5142 = vld [vmem:[#allocation11 + $0x708] sm:$0xff]
    %v5143 = vld [vmem:[#allocation11 + $0x710] sm:$0xff]
    %v5144 = vld [vmem:[#allocation11 + $0x718] sm:$0xff]
    %v5145 = vld [vmem:[#allocation11 + $0x720] sm:$0xff]
    %v5146 = vld [vmem:[#allocation11 + $0x728] sm:$0xff]
    %v5147 = vld [vmem:[#allocation11 + $0x730] sm:$0xff]
    %v5148 = vld [vmem:[#allocation11 + $0x738] sm:$0xff]
    %v5149 = vld [vmem:[#allocation11 + $0x740] sm:$0xff]
    %v5150 = vld [vmem:[#allocation11 + $0x748] sm:$0xff]
    %v5151 = vld [vmem:[#allocation11 + $0x750] sm:$0xff]
    %v5152 = vld [vmem:[#allocation11 + $0x758] sm:$0xff]
    %v5153 = vld [vmem:[#allocation11 + $0x760] sm:$0xff]
    %v5154 = vld [vmem:[#allocation11 + $0x768] sm:$0xff]
    %v5155 = vld [vmem:[#allocation11 + $0x770] sm:$0xff]
    %v5156 = vld [vmem:[#allocation11 + $0x778] sm:$0xff]
    %v5157 = vld [vmem:[#allocation11 + $0x780] sm:$0xff]
    %v5158 = vld [vmem:[#allocation11 + $0x788] sm:$0xff]
    %v5159 = vld [vmem:[#allocation11 + $0x790] sm:$0xff]
    %v5160 = vld [vmem:[#allocation11 + $0x798] sm:$0xff]
    %v5161 = vld [vmem:[#allocation11 + $0x7a0] sm:$0xff]
    %v5162 = vld [vmem:[#allocation11 + $0x7a8] sm:$0xff]
    %v5163 = vld [vmem:[#allocation11 + $0x7b0] sm:$0xff]
    %v5164 = vld [vmem:[#allocation11 + $0x7b8] sm:$0xff]
    %v5165 = vld [vmem:[#allocation11 + $0x7c0] sm:$0xff]
    %v5166 = vld [vmem:[#allocation11 + $0x7c8] sm:$0xff]
    %v5167 = vld [vmem:[#allocation11 + $0x7d0] sm:$0xff]
    %v5168 = vld [vmem:[#allocation11 + $0x7d8] sm:$0xff]
    %v5169 = vld [vmem:[#allocation11 + $0x7e0] sm:$0xff]
    %v5170 = vld [vmem:[#allocation11 + $0x7e8] sm:$0xff]
    %v5171 = vld [vmem:[#allocation11 + $0x7f0] sm:$0xff]
    %v5172 = vld [vmem:[#allocation11 + $0x7f8] sm:$0xff]
    %v5173 = vld [vmem:[#allocation13] sm:$0xf]
    %v5175 = vlaneseq
    %v5176 = vshrl.u32 %v5175, 7
    %v5177 = vsub.s32 0, %v5176
    %v5178 = vrot.slane %v5173, %v5177
    %v5179 = vlaneseq
    %v5180 = vshrl.u32 %v5179, 7
    %v5181 = vsub.s32 1, %v5180
    %v5182 = vrot.slane %v5173, %v5181
    %v5183 = vlaneseq
    %v5184 = vshrl.u32 %v5183, 7
    %v5185 = vsub.s32 2, %v5184
    %v5186 = vrot.slane %v5173, %v5185
    %v5187 = vlaneseq
    %v5188 = vshrl.u32 %v5187, 7
    %v5189 = vsub.s32 3, %v5188
    %v5190 = vrot.slane %v5173, %v5189
    %v5451 = vunpack.c.l.b16 %v4917
    %v5452 = vunpack.c.h.b16 %v4917
    %v5453 = vunpack.c.l.b16 %v4918
    %v5454 = vunpack.c.h.b16 %v4918
    %v5455 = vunpack.c.l.b16 %v4919
    %v5456 = vunpack.c.h.b16 %v4919
    %v5457 = vunpack.c.l.b16 %v4920
    %v5458 = vunpack.c.h.b16 %v4920
    %v5459 = vunpack.c.l.b16 %v4921
    %v5460 = vunpack.c.h.b16 %v4921
    %v5461 = vunpack.c.l.b16 %v4922
    %v5462 = vunpack.c.h.b16 %v4922
    %v5463 = vunpack.c.l.b16 %v4923
    %v5464 = vunpack.c.h.b16 %v4923
    %v5465 = vunpack.c.l.b16 %v4924
    %v5466 = vunpack.c.h.b16 %v4924
    %v5467 = vunpack.c.l.b16 %v4925
    %v5468 = vunpack.c.h.b16 %v4925
    %v5469 = vunpack.c.l.b16 %v4926
    %v5470 = vunpack.c.h.b16 %v4926
    %v5471 = vunpack.c.l.b16 %v4927
    %v5472 = vunpack.c.h.b16 %v4927
    %v5473 = vunpack.c.l.b16 %v4928
    %v5474 = vunpack.c.h.b16 %v4928
    %v5475 = vunpack.c.l.b16 %v4929
    %v5476 = vunpack.c.h.b16 %v4929
    %v5477 = vunpack.c.l.b16 %v4930
    %v5478 = vunpack.c.h.b16 %v4930
    %v5479 = vunpack.c.l.b16 %v4931
    %v5480 = vunpack.c.h.b16 %v4931
    %v5481 = vunpack.c.l.b16 %v4932
    %v5482 = vunpack.c.h.b16 %v4932
    %v5483 = vunpack.c.l.b16 %v4933
    %v5484 = vunpack.c.h.b16 %v4933
    %v5485 = vunpack.c.l.b16 %v4934
    %v5486 = vunpack.c.h.b16 %v4934
    %v5487 = vunpack.c.l.b16 %v4935
    %v5488 = vunpack.c.h.b16 %v4935
    %v5489 = vunpack.c.l.b16 %v4936
    %v5490 = vunpack.c.h.b16 %v4936
    %v5491 = vunpack.c.l.b16 %v4937
    %v5492 = vunpack.c.h.b16 %v4937
    %v5493 = vunpack.c.l.b16 %v4938
    %v5494 = vunpack.c.h.b16 %v4938
    %v5495 = vunpack.c.l.b16 %v4939
    %v5496 = vunpack.c.h.b16 %v4939
    %v5497 = vunpack.c.l.b16 %v4940
    %v5498 = vunpack.c.h.b16 %v4940
    %v5499 = vunpack.c.l.b16 %v4941
    %v5500 = vunpack.c.h.b16 %v4941
    %v5501 = vunpack.c.l.b16 %v4942
    %v5502 = vunpack.c.h.b16 %v4942
    %v5503 = vunpack.c.l.b16 %v4943
    %v5504 = vunpack.c.h.b16 %v4943
    %v5505 = vunpack.c.l.b16 %v4944
    %v5506 = vunpack.c.h.b16 %v4944
    %v5507 = vunpack.c.l.b16 %v4945
    %v5508 = vunpack.c.h.b16 %v4945
    %v5509 = vunpack.c.l.b16 %v4946
    %v5510 = vunpack.c.h.b16 %v4946
    %v5511 = vunpack.c.l.b16 %v4947
    %v5512 = vunpack.c.h.b16 %v4947
    %v5513 = vunpack.c.l.b16 %v4948
    %v5514 = vunpack.c.h.b16 %v4948
    %v5515 = vunpack.c.l.b16 %v4949
    %v5516 = vunpack.c.h.b16 %v4949
    %v5517 = vunpack.c.l.b16 %v4950
    %v5518 = vunpack.c.h.b16 %v4950
    %v5519 = vunpack.c.l.b16 %v4951
    %v5520 = vunpack.c.h.b16 %v4951
    %v5521 = vunpack.c.l.b16 %v4952
    %v5522 = vunpack.c.h.b16 %v4952
    %v5523 = vunpack.c.l.b16 %v4953
    %v5524 = vunpack.c.h.b16 %v4953
    %v5525 = vunpack.c.l.b16 %v4954
    %v5526 = vunpack.c.h.b16 %v4954
    %v5527 = vunpack.c.l.b16 %v4955
    %v5528 = vunpack.c.h.b16 %v4955
    %v5529 = vunpack.c.l.b16 %v4956
    %v5530 = vunpack.c.h.b16 %v4956
    %v5531 = vunpack.c.l.b16 %v4957
    %v5532 = vunpack.c.h.b16 %v4957
    %v5533 = vunpack.c.l.b16 %v4958
    %v5534 = vunpack.c.h.b16 %v4958
    %v5535 = vunpack.c.l.b16 %v4959
    %v5536 = vunpack.c.h.b16 %v4959
    %v5537 = vunpack.c.l.b16 %v4960
    %v5538 = vunpack.c.h.b16 %v4960
    %v5539 = vunpack.c.l.b16 %v4961
    %v5540 = vunpack.c.h.b16 %v4961
    %v5541 = vunpack.c.l.b16 %v4962
    %v5542 = vunpack.c.h.b16 %v4962
    %v5543 = vunpack.c.l.b16 %v4963
    %v5544 = vunpack.c.h.b16 %v4963
    %v5545 = vunpack.c.l.b16 %v4964
    %v5546 = vunpack.c.h.b16 %v4964
    %v5547 = vunpack.c.l.b16 %v4965
    %v5548 = vunpack.c.h.b16 %v4965
    %v5549 = vunpack.c.l.b16 %v4966
    %v5550 = vunpack.c.h.b16 %v4966
    %v5551 = vunpack.c.l.b16 %v4967
    %v5552 = vunpack.c.h.b16 %v4967
    %v5553 = vunpack.c.l.b16 %v4968
    %v5554 = vunpack.c.h.b16 %v4968
    %v5555 = vunpack.c.l.b16 %v4969
    %v5556 = vunpack.c.h.b16 %v4969
    %v5557 = vunpack.c.l.b16 %v4970
    %v5558 = vunpack.c.h.b16 %v4970
    %v5559 = vunpack.c.l.b16 %v4971
    %v5560 = vunpack.c.h.b16 %v4971
    %v5561 = vunpack.c.l.b16 %v4972
    %v5562 = vunpack.c.h.b16 %v4972
    %v5563 = vunpack.c.l.b16 %v4973
    %v5564 = vunpack.c.h.b16 %v4973
    %v5565 = vunpack.c.l.b16 %v4974
    %v5566 = vunpack.c.h.b16 %v4974
    %v5567 = vunpack.c.l.b16 %v4975
    %v5568 = vunpack.c.h.b16 %v4975
    %v5569 = vunpack.c.l.b16 %v4976
    %v5570 = vunpack.c.h.b16 %v4976
    %v5571 = vunpack.c.l.b16 %v4977
    %v5572 = vunpack.c.h.b16 %v4977
    %v5573 = vunpack.c.l.b16 %v4978
    %v5574 = vunpack.c.h.b16 %v4978
    %v5575 = vunpack.c.l.b16 %v4979
    %v5576 = vunpack.c.h.b16 %v4979
    %v5577 = vunpack.c.l.b16 %v4980
    %v5578 = vunpack.c.h.b16 %v4980
    %v5579 = vunpack.c.l.b16 %v4981
    %v5580 = vunpack.c.h.b16 %v4981
    %v5581 = vunpack.c.l.b16 %v4982
    %v5582 = vunpack.c.h.b16 %v4982
    %v5583 = vunpack.c.l.b16 %v4983
    %v5584 = vunpack.c.h.b16 %v4983
    %v5585 = vunpack.c.l.b16 %v4984
    %v5586 = vunpack.c.h.b16 %v4984
    %v5587 = vunpack.c.l.b16 %v4985
    %v5588 = vunpack.c.h.b16 %v4985
    %v5589 = vunpack.c.l.b16 %v4986
    %v5590 = vunpack.c.h.b16 %v4986
    %v5591 = vunpack.c.l.b16 %v4987
    %v5592 = vunpack.c.h.b16 %v4987
    %v5593 = vunpack.c.l.b16 %v4988
    %v5594 = vunpack.c.h.b16 %v4988
    %v5595 = vunpack.c.l.b16 %v4989
    %v5596 = vunpack.c.h.b16 %v4989
    %v5597 = vunpack.c.l.b16 %v4990
    %v5598 = vunpack.c.h.b16 %v4990
    %v5599 = vunpack.c.l.b16 %v4991
    %v5600 = vunpack.c.h.b16 %v4991
    %v5601 = vunpack.c.l.b16 %v4992
    %v5602 = vunpack.c.h.b16 %v4992
    %v5603 = vunpack.c.l.b16 %v4993
    %v5604 = vunpack.c.h.b16 %v4993
    %v5605 = vunpack.c.l.b16 %v4994
    %v5606 = vunpack.c.h.b16 %v4994
    %v5607 = vunpack.c.l.b16 %v4995
    %v5608 = vunpack.c.h.b16 %v4995
    %v5609 = vunpack.c.l.b16 %v4996
    %v5610 = vunpack.c.h.b16 %v4996
    %v5611 = vunpack.c.l.b16 %v4997
    %v5612 = vunpack.c.h.b16 %v4997
    %v5613 = vunpack.c.l.b16 %v4998
    %v5614 = vunpack.c.h.b16 %v4998
    %v5615 = vunpack.c.l.b16 %v4999
    %v5616 = vunpack.c.h.b16 %v4999
    %v5617 = vunpack.c.l.b16 %v5000
    %v5618 = vunpack.c.h.b16 %v5000
    %v5619 = vunpack.c.l.b16 %v5001
    %v5620 = vunpack.c.h.b16 %v5001
    %v5621 = vunpack.c.l.b16 %v5002
    %v5622 = vunpack.c.h.b16 %v5002
    %v5623 = vunpack.c.l.b16 %v5003
    %v5624 = vunpack.c.h.b16 %v5003
    %v5625 = vunpack.c.l.b16 %v5004
    %v5626 = vunpack.c.h.b16 %v5004
    %v5627 = vunpack.c.l.b16 %v5005
    %v5628 = vunpack.c.h.b16 %v5005
    %v5629 = vunpack.c.l.b16 %v5006
    %v5630 = vunpack.c.h.b16 %v5006
    %v5631 = vunpack.c.l.b16 %v5007
    %v5632 = vunpack.c.h.b16 %v5007
    %v5633 = vunpack.c.l.b16 %v5008
    %v5634 = vunpack.c.h.b16 %v5008
    %v5635 = vunpack.c.l.b16 %v5009
    %v5636 = vunpack.c.h.b16 %v5009
    %v5637 = vunpack.c.l.b16 %v5010
    %v5638 = vunpack.c.h.b16 %v5010
    %v5639 = vunpack.c.l.b16 %v5011
    %v5640 = vunpack.c.h.b16 %v5011
    %v5641 = vunpack.c.l.b16 %v5012
    %v5642 = vunpack.c.h.b16 %v5012
    %v5643 = vunpack.c.l.b16 %v5013
    %v5644 = vunpack.c.h.b16 %v5013
    %v5645 = vunpack.c.l.b16 %v5014
    %v5646 = vunpack.c.h.b16 %v5014
    %v5647 = vunpack.c.l.b16 %v5015
    %v5648 = vunpack.c.h.b16 %v5015
    %v5649 = vunpack.c.l.b16 %v5016
    %v5650 = vunpack.c.h.b16 %v5016
    %v5651 = vunpack.c.l.b16 %v5017
    %v5652 = vunpack.c.h.b16 %v5017
    %v5653 = vunpack.c.l.b16 %v5018
    %v5654 = vunpack.c.h.b16 %v5018
    %v5655 = vunpack.c.l.b16 %v5019
    %v5656 = vunpack.c.h.b16 %v5019
    %v5657 = vunpack.c.l.b16 %v5020
    %v5658 = vunpack.c.h.b16 %v5020
    %v5659 = vunpack.c.l.b16 %v5021
    %v5660 = vunpack.c.h.b16 %v5021
    %v5661 = vunpack.c.l.b16 %v5022
    %v5662 = vunpack.c.h.b16 %v5022
    %v5663 = vunpack.c.l.b16 %v5023
    %v5664 = vunpack.c.h.b16 %v5023
    %v5665 = vunpack.c.l.b16 %v5024
    %v5666 = vunpack.c.h.b16 %v5024
    %v5667 = vunpack.c.l.b16 %v5025
    %v5668 = vunpack.c.h.b16 %v5025
    %v5669 = vunpack.c.l.b16 %v5026
    %v5670 = vunpack.c.h.b16 %v5026
    %v5671 = vunpack.c.l.b16 %v5027
    %v5672 = vunpack.c.h.b16 %v5027
    %v5673 = vunpack.c.l.b16 %v5028
    %v5674 = vunpack.c.h.b16 %v5028
    %v5675 = vunpack.c.l.b16 %v5029
    %v5676 = vunpack.c.h.b16 %v5029
    %v5677 = vunpack.c.l.b16 %v5030
    %v5678 = vunpack.c.h.b16 %v5030
    %v5679 = vunpack.c.l.b16 %v5031
    %v5680 = vunpack.c.h.b16 %v5031
    %v5681 = vunpack.c.l.b16 %v5032
    %v5682 = vunpack.c.h.b16 %v5032
    %v5683 = vunpack.c.l.b16 %v5033
    %v5684 = vunpack.c.h.b16 %v5033
    %v5685 = vunpack.c.l.b16 %v5034
    %v5686 = vunpack.c.h.b16 %v5034
    %v5687 = vunpack.c.l.b16 %v5035
    %v5688 = vunpack.c.h.b16 %v5035
    %v5689 = vunpack.c.l.b16 %v5036
    %v5690 = vunpack.c.h.b16 %v5036
    %v5691 = vunpack.c.l.b16 %v5037
    %v5692 = vunpack.c.h.b16 %v5037
    %v5693 = vunpack.c.l.b16 %v5038
    %v5694 = vunpack.c.h.b16 %v5038
    %v5695 = vunpack.c.l.b16 %v5039
    %v5696 = vunpack.c.h.b16 %v5039
    %v5697 = vunpack.c.l.b16 %v5040
    %v5698 = vunpack.c.h.b16 %v5040
    %v5699 = vunpack.c.l.b16 %v5041
    %v5700 = vunpack.c.h.b16 %v5041
    %v5701 = vunpack.c.l.b16 %v5042
    %v5702 = vunpack.c.h.b16 %v5042
    %v5703 = vunpack.c.l.b16 %v5043
    %v5704 = vunpack.c.h.b16 %v5043
    %v5705 = vunpack.c.l.b16 %v5044
    %v5706 = vunpack.c.h.b16 %v5044
    %v5707 = vunpack.c.l.b16 %v5045
    %v5708 = vunpack.c.h.b16 %v5045
    %v5709 = vunpack.c.l.b16 %v5046
    %v5710 = vunpack.c.h.b16 %v5046
    %v5711 = vunpack.c.l.b16 %v5047
    %v5712 = vunpack.c.h.b16 %v5047
    %v5713 = vunpack.c.l.b16 %v5048
    %v5714 = vunpack.c.h.b16 %v5048
    %v5715 = vunpack.c.l.b16 %v5049
    %v5716 = vunpack.c.h.b16 %v5049
    %v5717 = vunpack.c.l.b16 %v5050
    %v5718 = vunpack.c.h.b16 %v5050
    %v5719 = vunpack.c.l.b16 %v5051
    %v5720 = vunpack.c.h.b16 %v5051
    %v5721 = vunpack.c.l.b16 %v5052
    %v5722 = vunpack.c.h.b16 %v5052
    %v5723 = vunpack.c.l.b16 %v5053
    %v5724 = vunpack.c.h.b16 %v5053
    %v5725 = vunpack.c.l.b16 %v5054
    %v5726 = vunpack.c.h.b16 %v5054
    %v5727 = vunpack.c.l.b16 %v5055
    %v5728 = vunpack.c.h.b16 %v5055
    %v5729 = vunpack.c.l.b16 %v5056
    %v5730 = vunpack.c.h.b16 %v5056
    %v5731 = vunpack.c.l.b16 %v5057
    %v5732 = vunpack.c.h.b16 %v5057
    %v5733 = vunpack.c.l.b16 %v5058
    %v5734 = vunpack.c.h.b16 %v5058
    %v5735 = vunpack.c.l.b16 %v5059
    %v5736 = vunpack.c.h.b16 %v5059
    %v5737 = vunpack.c.l.b16 %v5060
    %v5738 = vunpack.c.h.b16 %v5060
    %v5739 = vunpack.c.l.b16 %v5061
    %v5740 = vunpack.c.h.b16 %v5061
    %v5741 = vunpack.c.l.b16 %v5062
    %v5742 = vunpack.c.h.b16 %v5062
    %v5743 = vunpack.c.l.b16 %v5063
    %v5744 = vunpack.c.h.b16 %v5063
    %v5745 = vunpack.c.l.b16 %v5064
    %v5746 = vunpack.c.h.b16 %v5064
    %v5747 = vunpack.c.l.b16 %v5065
    %v5748 = vunpack.c.h.b16 %v5065
    %v5749 = vunpack.c.l.b16 %v5066
    %v5750 = vunpack.c.h.b16 %v5066
    %v5751 = vunpack.c.l.b16 %v5067
    %v5752 = vunpack.c.h.b16 %v5067
    %v5753 = vunpack.c.l.b16 %v5068
    %v5754 = vunpack.c.h.b16 %v5068
    %v5755 = vunpack.c.l.b16 %v5069
    %v5756 = vunpack.c.h.b16 %v5069
    %v5757 = vunpack.c.l.b16 %v5070
    %v5758 = vunpack.c.h.b16 %v5070
    %v5759 = vunpack.c.l.b16 %v5071
    %v5760 = vunpack.c.h.b16 %v5071
    %v5761 = vunpack.c.l.b16 %v5072
    %v5762 = vunpack.c.h.b16 %v5072
    %v5763 = vunpack.c.l.b16 %v5073
    %v5764 = vunpack.c.h.b16 %v5073
    %v5765 = vunpack.c.l.b16 %v5074
    %v5766 = vunpack.c.h.b16 %v5074
    %v5767 = vunpack.c.l.b16 %v5075
    %v5768 = vunpack.c.h.b16 %v5075
    %v5769 = vunpack.c.l.b16 %v5076
    %v5770 = vunpack.c.h.b16 %v5076
    %v5771 = vunpack.c.l.b16 %v5077
    %v5772 = vunpack.c.h.b16 %v5077
    %v5773 = vunpack.c.l.b16 %v5078
    %v5774 = vunpack.c.h.b16 %v5078
    %v5775 = vunpack.c.l.b16 %v5079
    %v5776 = vunpack.c.h.b16 %v5079
    %v5777 = vunpack.c.l.b16 %v5080
    %v5778 = vunpack.c.h.b16 %v5080
    %v5779 = vunpack.c.l.b16 %v5081
    %v5780 = vunpack.c.h.b16 %v5081
    %v5781 = vunpack.c.l.b16 %v5082
    %v5782 = vunpack.c.h.b16 %v5082
    %v5783 = vunpack.c.l.b16 %v5083
    %v5784 = vunpack.c.h.b16 %v5083
    %v5785 = vunpack.c.l.b16 %v5084
    %v5786 = vunpack.c.h.b16 %v5084
    %v5787 = vunpack.c.l.b16 %v5085
    %v5788 = vunpack.c.h.b16 %v5085
    %v5789 = vunpack.c.l.b16 %v5086
    %v5790 = vunpack.c.h.b16 %v5086
    %v5791 = vunpack.c.l.b16 %v5087
    %v5792 = vunpack.c.h.b16 %v5087
    %v5793 = vunpack.c.l.b16 %v5088
    %v5794 = vunpack.c.h.b16 %v5088
    %v5795 = vunpack.c.l.b16 %v5089
    %v5796 = vunpack.c.h.b16 %v5089
    %v5797 = vunpack.c.l.b16 %v5090
    %v5798 = vunpack.c.h.b16 %v5090
    %v5799 = vunpack.c.l.b16 %v5091
    %v5800 = vunpack.c.h.b16 %v5091
    %v5801 = vunpack.c.l.b16 %v5092
    %v5802 = vunpack.c.h.b16 %v5092
    %v5803 = vunpack.c.l.b16 %v5093
    %v5804 = vunpack.c.h.b16 %v5093
    %v5805 = vunpack.c.l.b16 %v5094
    %v5806 = vunpack.c.h.b16 %v5094
    %v5807 = vunpack.c.l.b16 %v5095
    %v5808 = vunpack.c.h.b16 %v5095
    %v5809 = vunpack.c.l.b16 %v5096
    %v5810 = vunpack.c.h.b16 %v5096
    %v5811 = vunpack.c.l.b16 %v5097
    %v5812 = vunpack.c.h.b16 %v5097
    %v5813 = vunpack.c.l.b16 %v5098
    %v5814 = vunpack.c.h.b16 %v5098
    %v5815 = vunpack.c.l.b16 %v5099
    %v5816 = vunpack.c.h.b16 %v5099
    %v5817 = vunpack.c.l.b16 %v5100
    %v5818 = vunpack.c.h.b16 %v5100
    %v5819 = vunpack.c.l.b16 %v5101
    %v5820 = vunpack.c.h.b16 %v5101
    %v5821 = vunpack.c.l.b16 %v5102
    %v5822 = vunpack.c.h.b16 %v5102
    %v5823 = vunpack.c.l.b16 %v5103
    %v5824 = vunpack.c.h.b16 %v5103
    %v5825 = vunpack.c.l.b16 %v5104
    %v5826 = vunpack.c.h.b16 %v5104
    %v5827 = vunpack.c.l.b16 %v5105
    %v5828 = vunpack.c.h.b16 %v5105
    %v5829 = vunpack.c.l.b16 %v5106
    %v5830 = vunpack.c.h.b16 %v5106
    %v5831 = vunpack.c.l.b16 %v5107
    %v5832 = vunpack.c.h.b16 %v5107
    %v5833 = vunpack.c.l.b16 %v5108
    %v5834 = vunpack.c.h.b16 %v5108
    %v5835 = vunpack.c.l.b16 %v5109
    %v5836 = vunpack.c.h.b16 %v5109
    %v5837 = vunpack.c.l.b16 %v5110
    %v5838 = vunpack.c.h.b16 %v5110
    %v5839 = vunpack.c.l.b16 %v5111
    %v5840 = vunpack.c.h.b16 %v5111
    %v5841 = vunpack.c.l.b16 %v5112
    %v5842 = vunpack.c.h.b16 %v5112
    %v5843 = vunpack.c.l.b16 %v5113
    %v5844 = vunpack.c.h.b16 %v5113
    %v5845 = vunpack.c.l.b16 %v5114
    %v5846 = vunpack.c.h.b16 %v5114
    %v5847 = vunpack.c.l.b16 %v5115
    %v5848 = vunpack.c.h.b16 %v5115
    %v5849 = vunpack.c.l.b16 %v5116
    %v5850 = vunpack.c.h.b16 %v5116
    %v5851 = vunpack.c.l.b16 %v5117
    %v5852 = vunpack.c.h.b16 %v5117
    %v5853 = vunpack.c.l.b16 %v5118
    %v5854 = vunpack.c.h.b16 %v5118
    %v5855 = vunpack.c.l.b16 %v5119
    %v5856 = vunpack.c.h.b16 %v5119
    %v5857 = vunpack.c.l.b16 %v5120
    %v5858 = vunpack.c.h.b16 %v5120
    %v5859 = vunpack.c.l.b16 %v5121
    %v5860 = vunpack.c.h.b16 %v5121
    %v5861 = vunpack.c.l.b16 %v5122
    %v5862 = vunpack.c.h.b16 %v5122
    %v5863 = vunpack.c.l.b16 %v5123
    %v5864 = vunpack.c.h.b16 %v5123
    %v5865 = vunpack.c.l.b16 %v5124
    %v5866 = vunpack.c.h.b16 %v5124
    %v5867 = vunpack.c.l.b16 %v5125
    %v5868 = vunpack.c.h.b16 %v5125
    %v5869 = vunpack.c.l.b16 %v5126
    %v5870 = vunpack.c.h.b16 %v5126
    %v5871 = vunpack.c.l.b16 %v5127
    %v5872 = vunpack.c.h.b16 %v5127
    %v5873 = vunpack.c.l.b16 %v5128
    %v5874 = vunpack.c.h.b16 %v5128
    %v5875 = vunpack.c.l.b16 %v5129
    %v5876 = vunpack.c.h.b16 %v5129
    %v5877 = vunpack.c.l.b16 %v5130
    %v5878 = vunpack.c.h.b16 %v5130
    %v5879 = vunpack.c.l.b16 %v5131
    %v5880 = vunpack.c.h.b16 %v5131
    %v5881 = vunpack.c.l.b16 %v5132
    %v5882 = vunpack.c.h.b16 %v5132
    %v5883 = vunpack.c.l.b16 %v5133
    %v5884 = vunpack.c.h.b16 %v5133
    %v5885 = vunpack.c.l.b16 %v5134
    %v5886 = vunpack.c.h.b16 %v5134
    %v5887 = vunpack.c.l.b16 %v5135
    %v5888 = vunpack.c.h.b16 %v5135
    %v5889 = vunpack.c.l.b16 %v5136
    %v5890 = vunpack.c.h.b16 %v5136
    %v5891 = vunpack.c.l.b16 %v5137
    %v5892 = vunpack.c.h.b16 %v5137
    %v5893 = vunpack.c.l.b16 %v5138
    %v5894 = vunpack.c.h.b16 %v5138
    %v5895 = vunpack.c.l.b16 %v5139
    %v5896 = vunpack.c.h.b16 %v5139
    %v5897 = vunpack.c.l.b16 %v5140
    %v5898 = vunpack.c.h.b16 %v5140
    %v5899 = vunpack.c.l.b16 %v5141
    %v5900 = vunpack.c.h.b16 %v5141
    %v5901 = vunpack.c.l.b16 %v5142
    %v5902 = vunpack.c.h.b16 %v5142
    %v5903 = vunpack.c.l.b16 %v5143
    %v5904 = vunpack.c.h.b16 %v5143
    %v5905 = vunpack.c.l.b16 %v5144
    %v5906 = vunpack.c.h.b16 %v5144
    %v5907 = vunpack.c.l.b16 %v5145
    %v5908 = vunpack.c.h.b16 %v5145
    %v5909 = vunpack.c.l.b16 %v5146
    %v5910 = vunpack.c.h.b16 %v5146
    %v5911 = vunpack.c.l.b16 %v5147
    %v5912 = vunpack.c.h.b16 %v5147
    %v5913 = vunpack.c.l.b16 %v5148
    %v5914 = vunpack.c.h.b16 %v5148
    %v5915 = vunpack.c.l.b16 %v5149
    %v5916 = vunpack.c.h.b16 %v5149
    %v5917 = vunpack.c.l.b16 %v5150
    %v5918 = vunpack.c.h.b16 %v5150
    %v5919 = vunpack.c.l.b16 %v5151
    %v5920 = vunpack.c.h.b16 %v5151
    %v5921 = vunpack.c.l.b16 %v5152
    %v5922 = vunpack.c.h.b16 %v5152
    %v5923 = vunpack.c.l.b16 %v5153
    %v5924 = vunpack.c.h.b16 %v5153
    %v5925 = vunpack.c.l.b16 %v5154
    %v5926 = vunpack.c.h.b16 %v5154
    %v5927 = vunpack.c.l.b16 %v5155
    %v5928 = vunpack.c.h.b16 %v5155
    %v5929 = vunpack.c.l.b16 %v5156
    %v5930 = vunpack.c.h.b16 %v5156
    %v5931 = vunpack.c.l.b16 %v5157
    %v5932 = vunpack.c.h.b16 %v5157
    %v5933 = vunpack.c.l.b16 %v5158
    %v5934 = vunpack.c.h.b16 %v5158
    %v5935 = vunpack.c.l.b16 %v5159
    %v5936 = vunpack.c.h.b16 %v5159
    %v5937 = vunpack.c.l.b16 %v5160
    %v5938 = vunpack.c.h.b16 %v5160
    %v5939 = vunpack.c.l.b16 %v5161
    %v5940 = vunpack.c.h.b16 %v5161
    %v5941 = vunpack.c.l.b16 %v5162
    %v5942 = vunpack.c.h.b16 %v5162
    %v5943 = vunpack.c.l.b16 %v5163
    %v5944 = vunpack.c.h.b16 %v5163
    %v5945 = vunpack.c.l.b16 %v5164
    %v5946 = vunpack.c.h.b16 %v5164
    %v5947 = vunpack.c.l.b16 %v5165
    %v5948 = vunpack.c.h.b16 %v5165
    %v5949 = vunpack.c.l.b16 %v5166
    %v5950 = vunpack.c.h.b16 %v5166
    %v5951 = vunpack.c.l.b16 %v5167
    %v5952 = vunpack.c.h.b16 %v5167
    %v5953 = vunpack.c.l.b16 %v5168
    %v5954 = vunpack.c.h.b16 %v5168
    %v5955 = vunpack.c.l.b16 %v5169
    %v5956 = vunpack.c.h.b16 %v5169
    %v5957 = vunpack.c.l.b16 %v5170
    %v5958 = vunpack.c.h.b16 %v5170
    %v5959 = vunpack.c.l.b16 %v5171
    %v5960 = vunpack.c.h.b16 %v5171
    %v5961 = vunpack.c.l.b16 %v5172
    %v5962 = vunpack.c.h.b16 %v5172
    %v5963 = vpack.c.b16 %v5455, %v5451
    %v5964 = vpack.c.b16 %v5456, %v5452
    %v5965 = vpack.c.b16 %v5457, %v5453
    %v5966 = vpack.c.b16 %v5458, %v5454
    %v5967 = vpack.c.b16 %v5463, %v5459
    %v5968 = vpack.c.b16 %v5464, %v5460
    %v5969 = vpack.c.b16 %v5465, %v5461
    %v5970 = vpack.c.b16 %v5466, %v5462
    %v5971 = vpack.c.b16 %v5471, %v5467
    %v5972 = vpack.c.b16 %v5472, %v5468
    %v5973 = vpack.c.b16 %v5473, %v5469
    %v5974 = vpack.c.b16 %v5474, %v5470
    %v5975 = vpack.c.b16 %v5479, %v5475
    %v5976 = vpack.c.b16 %v5480, %v5476
    %v5977 = vpack.c.b16 %v5481, %v5477
    %v5978 = vpack.c.b16 %v5482, %v5478
    %v5979 = vpack.c.b16 %v5487, %v5483
    %v5980 = vpack.c.b16 %v5488, %v5484
    %v5981 = vpack.c.b16 %v5489, %v5485
    %v5982 = vpack.c.b16 %v5490, %v5486
    %v5983 = vpack.c.b16 %v5495, %v5491
    %v5984 = vpack.c.b16 %v5496, %v5492
    %v5985 = vpack.c.b16 %v5497, %v5493
    %v5986 = vpack.c.b16 %v5498, %v5494
    %v5987 = vpack.c.b16 %v5503, %v5499
    %v5988 = vpack.c.b16 %v5504, %v5500
    %v5989 = vpack.c.b16 %v5505, %v5501
    %v5990 = vpack.c.b16 %v5506, %v5502
    %v5991 = vpack.c.b16 %v5511, %v5507
    %v5992 = vpack.c.b16 %v5512, %v5508
    %v5993 = vpack.c.b16 %v5513, %v5509
    %v5994 = vpack.c.b16 %v5514, %v5510
    %v5995 = vpack.c.b16 %v5519, %v5515
    %v5996 = vpack.c.b16 %v5520, %v5516
    %v5997 = vpack.c.b16 %v5521, %v5517
    %v5998 = vpack.c.b16 %v5522, %v5518
    %v5999 = vpack.c.b16 %v5527, %v5523
    %v6000 = vpack.c.b16 %v5528, %v5524
    %v6001 = vpack.c.b16 %v5529, %v5525
    %v6002 = vpack.c.b16 %v5530, %v5526
    %v6003 = vpack.c.b16 %v5535, %v5531
    %v6004 = vpack.c.b16 %v5536, %v5532
    %v6005 = vpack.c.b16 %v5537, %v5533
    %v6006 = vpack.c.b16 %v5538, %v5534
    %v6007 = vpack.c.b16 %v5543, %v5539
    %v6008 = vpack.c.b16 %v5544, %v5540
    %v6009 = vpack.c.b16 %v5545, %v5541
    %v6010 = vpack.c.b16 %v5546, %v5542
    %v6011 = vpack.c.b16 %v5551, %v5547
    %v6012 = vpack.c.b16 %v5552, %v5548
    %v6013 = vpack.c.b16 %v5553, %v5549
    %v6014 = vpack.c.b16 %v5554, %v5550
    %v6015 = vpack.c.b16 %v5559, %v5555
    %v6016 = vpack.c.b16 %v5560, %v5556
    %v6017 = vpack.c.b16 %v5561, %v5557
    %v6018 = vpack.c.b16 %v5562, %v5558
    %v6019 = vpack.c.b16 %v5567, %v5563
    %v6020 = vpack.c.b16 %v5568, %v5564
    %v6021 = vpack.c.b16 %v5569, %v5565
    %v6022 = vpack.c.b16 %v5570, %v5566
    %v6023 = vpack.c.b16 %v5575, %v5571
    %v6024 = vpack.c.b16 %v5576, %v5572
    %v6025 = vpack.c.b16 %v5577, %v5573
    %v6026 = vpack.c.b16 %v5578, %v5574
    %v6027 = vpack.c.b16 %v5583, %v5579
    %v6028 = vpack.c.b16 %v5584, %v5580
    %v6029 = vpack.c.b16 %v5585, %v5581
    %v6030 = vpack.c.b16 %v5586, %v5582
    %v6031 = vpack.c.b16 %v5591, %v5587
    %v6032 = vpack.c.b16 %v5592, %v5588
    %v6033 = vpack.c.b16 %v5593, %v5589
    %v6034 = vpack.c.b16 %v5594, %v5590
    %v6035 = vpack.c.b16 %v5599, %v5595
    %v6036 = vpack.c.b16 %v5600, %v5596
    %v6037 = vpack.c.b16 %v5601, %v5597
    %v6038 = vpack.c.b16 %v5602, %v5598
    %v6039 = vpack.c.b16 %v5607, %v5603
    %v6040 = vpack.c.b16 %v5608, %v5604
    %v6041 = vpack.c.b16 %v5609, %v5605
    %v6042 = vpack.c.b16 %v5610, %v5606
    %v6043 = vpack.c.b16 %v5615, %v5611
    %v6044 = vpack.c.b16 %v5616, %v5612
    %v6045 = vpack.c.b16 %v5617, %v5613
    %v6046 = vpack.c.b16 %v5618, %v5614
    %v6047 = vpack.c.b16 %v5623, %v5619
    %v6048 = vpack.c.b16 %v5624, %v5620
    %v6049 = vpack.c.b16 %v5625, %v5621
    %v6050 = vpack.c.b16 %v5626, %v5622
    %v6051 = vpack.c.b16 %v5631, %v5627
    %v6052 = vpack.c.b16 %v5632, %v5628
    %v6053 = vpack.c.b16 %v5633, %v5629
    %v6054 = vpack.c.b16 %v5634, %v5630
    %v6055 = vpack.c.b16 %v5639, %v5635
    %v6056 = vpack.c.b16 %v5640, %v5636
    %v6057 = vpack.c.b16 %v5641, %v5637
    %v6058 = vpack.c.b16 %v5642, %v5638
    %v6059 = vpack.c.b16 %v5647, %v5643
    %v6060 = vpack.c.b16 %v5648, %v5644
    %v6061 = vpack.c.b16 %v5649, %v5645
    %v6062 = vpack.c.b16 %v5650, %v5646
    %v6063 = vpack.c.b16 %v5655, %v5651
    %v6064 = vpack.c.b16 %v5656, %v5652
    %v6065 = vpack.c.b16 %v5657, %v5653
    %v6066 = vpack.c.b16 %v5658, %v5654
    %v6067 = vpack.c.b16 %v5663, %v5659
    %v6068 = vpack.c.b16 %v5664, %v5660
    %v6069 = vpack.c.b16 %v5665, %v5661
    %v6070 = vpack.c.b16 %v5666, %v5662
    %v6071 = vpack.c.b16 %v5671, %v5667
    %v6072 = vpack.c.b16 %v5672, %v5668
    %v6073 = vpack.c.b16 %v5673, %v5669
    %v6074 = vpack.c.b16 %v5674, %v5670
    %v6075 = vpack.c.b16 %v5679, %v5675
    %v6076 = vpack.c.b16 %v5680, %v5676
    %v6077 = vpack.c.b16 %v5681, %v5677
    %v6078 = vpack.c.b16 %v5682, %v5678
    %v6079 = vpack.c.b16 %v5687, %v5683
    %v6080 = vpack.c.b16 %v5688, %v5684
    %v6081 = vpack.c.b16 %v5689, %v5685
    %v6082 = vpack.c.b16 %v5690, %v5686
    %v6083 = vpack.c.b16 %v5695, %v5691
    %v6084 = vpack.c.b16 %v5696, %v5692
    %v6085 = vpack.c.b16 %v5697, %v5693
    %v6086 = vpack.c.b16 %v5698, %v5694
    %v6087 = vpack.c.b16 %v5703, %v5699
    %v6088 = vpack.c.b16 %v5704, %v5700
    %v6089 = vpack.c.b16 %v5705, %v5701
    %v6090 = vpack.c.b16 %v5706, %v5702
    %v6091 = vpack.c.b16 %v5711, %v5707
    %v6092 = vpack.c.b16 %v5712, %v5708
    %v6093 = vpack.c.b16 %v5713, %v5709
    %v6094 = vpack.c.b16 %v5714, %v5710
    %v6095 = vpack.c.b16 %v5719, %v5715
    %v6096 = vpack.c.b16 %v5720, %v5716
    %v6097 = vpack.c.b16 %v5721, %v5717
    %v6098 = vpack.c.b16 %v5722, %v5718
    %v6099 = vpack.c.b16 %v5727, %v5723
    %v6100 = vpack.c.b16 %v5728, %v5724
    %v6101 = vpack.c.b16 %v5729, %v5725
    %v6102 = vpack.c.b16 %v5730, %v5726
    %v6103 = vpack.c.b16 %v5735, %v5731
    %v6104 = vpack.c.b16 %v5736, %v5732
    %v6105 = vpack.c.b16 %v5737, %v5733
    %v6106 = vpack.c.b16 %v5738, %v5734
    %v6107 = vpack.c.b16 %v5743, %v5739
    %v6108 = vpack.c.b16 %v5744, %v5740
    %v6109 = vpack.c.b16 %v5745, %v5741
    %v6110 = vpack.c.b16 %v5746, %v5742
    %v6111 = vpack.c.b16 %v5751, %v5747
    %v6112 = vpack.c.b16 %v5752, %v5748
    %v6113 = vpack.c.b16 %v5753, %v5749
    %v6114 = vpack.c.b16 %v5754, %v5750
    %v6115 = vpack.c.b16 %v5759, %v5755
    %v6116 = vpack.c.b16 %v5760, %v5756
    %v6117 = vpack.c.b16 %v5761, %v5757
    %v6118 = vpack.c.b16 %v5762, %v5758
    %v6119 = vpack.c.b16 %v5767, %v5763
    %v6120 = vpack.c.b16 %v5768, %v5764
    %v6121 = vpack.c.b16 %v5769, %v5765
    %v6122 = vpack.c.b16 %v5770, %v5766
    %v6123 = vpack.c.b16 %v5775, %v5771
    %v6124 = vpack.c.b16 %v5776, %v5772
    %v6125 = vpack.c.b16 %v5777, %v5773
    %v6126 = vpack.c.b16 %v5778, %v5774
    %v6127 = vpack.c.b16 %v5783, %v5779
    %v6128 = vpack.c.b16 %v5784, %v5780
    %v6129 = vpack.c.b16 %v5785, %v5781
    %v6130 = vpack.c.b16 %v5786, %v5782
    %v6131 = vpack.c.b16 %v5791, %v5787
    %v6132 = vpack.c.b16 %v5792, %v5788
    %v6133 = vpack.c.b16 %v5793, %v5789
    %v6134 = vpack.c.b16 %v5794, %v5790
    %v6135 = vpack.c.b16 %v5799, %v5795
    %v6136 = vpack.c.b16 %v5800, %v5796
    %v6137 = vpack.c.b16 %v5801, %v5797
    %v6138 = vpack.c.b16 %v5802, %v5798
    %v6139 = vpack.c.b16 %v5807, %v5803
    %v6140 = vpack.c.b16 %v5808, %v5804
    %v6141 = vpack.c.b16 %v5809, %v5805
    %v6142 = vpack.c.b16 %v5810, %v5806
    %v6143 = vpack.c.b16 %v5815, %v5811
    %v6144 = vpack.c.b16 %v5816, %v5812
    %v6145 = vpack.c.b16 %v5817, %v5813
    %v6146 = vpack.c.b16 %v5818, %v5814
    %v6147 = vpack.c.b16 %v5823, %v5819
    %v6148 = vpack.c.b16 %v5824, %v5820
    %v6149 = vpack.c.b16 %v5825, %v5821
    %v6150 = vpack.c.b16 %v5826, %v5822
    %v6151 = vpack.c.b16 %v5831, %v5827
    %v6152 = vpack.c.b16 %v5832, %v5828
    %v6153 = vpack.c.b16 %v5833, %v5829
    %v6154 = vpack.c.b16 %v5834, %v5830
    %v6155 = vpack.c.b16 %v5839, %v5835
    %v6156 = vpack.c.b16 %v5840, %v5836
    %v6157 = vpack.c.b16 %v5841, %v5837
    %v6158 = vpack.c.b16 %v5842, %v5838
    %v6159 = vpack.c.b16 %v5847, %v5843
    %v6160 = vpack.c.b16 %v5848, %v5844
    %v6161 = vpack.c.b16 %v5849, %v5845
    %v6162 = vpack.c.b16 %v5850, %v5846
    %v6163 = vpack.c.b16 %v5855, %v5851
    %v6164 = vpack.c.b16 %v5856, %v5852
    %v6165 = vpack.c.b16 %v5857, %v5853
    %v6166 = vpack.c.b16 %v5858, %v5854
    %v6167 = vpack.c.b16 %v5863, %v5859
    %v6168 = vpack.c.b16 %v5864, %v5860
    %v6169 = vpack.c.b16 %v5865, %v5861
    %v6170 = vpack.c.b16 %v5866, %v5862
    %v6171 = vpack.c.b16 %v5871, %v5867
    %v6172 = vpack.c.b16 %v5872, %v5868
    %v6173 = vpack.c.b16 %v5873, %v5869
    %v6174 = vpack.c.b16 %v5874, %v5870
    %v6175 = vpack.c.b16 %v5879, %v5875
    %v6176 = vpack.c.b16 %v5880, %v5876
    %v6177 = vpack.c.b16 %v5881, %v5877
    %v6178 = vpack.c.b16 %v5882, %v5878
    %v6179 = vpack.c.b16 %v5887, %v5883
    %v6180 = vpack.c.b16 %v5888, %v5884
    %v6181 = vpack.c.b16 %v5889, %v5885
    %v6182 = vpack.c.b16 %v5890, %v5886
    %v6183 = vpack.c.b16 %v5895, %v5891
    %v6184 = vpack.c.b16 %v5896, %v5892
    %v6185 = vpack.c.b16 %v5897, %v5893
    %v6186 = vpack.c.b16 %v5898, %v5894
    %v6187 = vpack.c.b16 %v5903, %v5899
    %v6188 = vpack.c.b16 %v5904, %v5900
    %v6189 = vpack.c.b16 %v5905, %v5901
    %v6190 = vpack.c.b16 %v5906, %v5902
    %v6191 = vpack.c.b16 %v5911, %v5907
    %v6192 = vpack.c.b16 %v5912, %v5908
    %v6193 = vpack.c.b16 %v5913, %v5909
    %v6194 = vpack.c.b16 %v5914, %v5910
    %v6195 = vpack.c.b16 %v5919, %v5915
    %v6196 = vpack.c.b16 %v5920, %v5916
    %v6197 = vpack.c.b16 %v5921, %v5917
    %v6198 = vpack.c.b16 %v5922, %v5918
    %v6199 = vpack.c.b16 %v5927, %v5923
    %v6200 = vpack.c.b16 %v5928, %v5924
    %v6201 = vpack.c.b16 %v5929, %v5925
    %v6202 = vpack.c.b16 %v5930, %v5926
    %v6203 = vpack.c.b16 %v5935, %v5931
    %v6204 = vpack.c.b16 %v5936, %v5932
    %v6205 = vpack.c.b16 %v5937, %v5933
    %v6206 = vpack.c.b16 %v5938, %v5934
    %v6207 = vpack.c.b16 %v5943, %v5939
    %v6208 = vpack.c.b16 %v5944, %v5940
    %v6209 = vpack.c.b16 %v5945, %v5941
    %v6210 = vpack.c.b16 %v5946, %v5942
    %v6211 = vpack.c.b16 %v5951, %v5947
    %v6212 = vpack.c.b16 %v5952, %v5948
    %v6213 = vpack.c.b16 %v5953, %v5949
    %v6214 = vpack.c.b16 %v5954, %v5950
    %v6215 = vpack.c.b16 %v5959, %v5955
    %v6216 = vpack.c.b16 %v5960, %v5956
    %v6217 = vpack.c.b16 %v5961, %v5957
    %v6218 = vpack.c.b16 %v5962, %v5958
    %6475 = vmatprep.subr.bf16.mxu0 %v5964
    %6476 = vmatpush1.bf16.msra.mxu0 %v5963
    %6477 = vmatprep.subr.bf16.mxu0 %v5968
    %6478 = vmatpush1.bf16.msra.mxu0 %v5967
    %6479 = vmatprep.subr.bf16.mxu0 %v5972
    %6480 = vmatpush1.bf16.msra.mxu0 %v5971
    %6481 = vmatprep.subr.bf16.mxu0 %v5976
    %6482 = vmatpush1.bf16.msra.mxu0 %v5975
    %6483 = vmatprep.subr.bf16.mxu0 %v5980
    %6484 = vmatpush1.bf16.msra.mxu0 %v5979
    %6485 = vmatprep.subr.bf16.mxu0 %v5984
    %6486 = vmatpush1.bf16.msra.mxu0 %v5983
    %6487 = vmatprep.subr.bf16.mxu0 %v5988
    %6488 = vmatpush1.bf16.msra.mxu0 %v5987
    %6489 = vmatprep.subr.bf16.mxu0 %v5992
    %6490 = vmatpush1.bf16.msra.mxu0 %v5991
    %6491 = vmatprep.subr.bf16.mxu0 %v5996
    %6492 = vmatpush1.bf16.msra.mxu0 %v5995
    %6493 = vmatprep.subr.bf16.mxu0 %v6000
    %6494 = vmatpush1.bf16.msra.mxu0 %v5999
    %6495 = vmatprep.subr.bf16.mxu0 %v6004
    %6496 = vmatpush1.bf16.msra.mxu0 %v6003
    %6497 = vmatprep.subr.bf16.mxu0 %v6008
    %6498 = vmatpush1.bf16.msra.mxu0 %v6007
    %6499 = vmatprep.subr.bf16.mxu0 %v6012
    %6500 = vmatpush1.bf16.msra.mxu0 %v6011
    %6501 = vmatprep.subr.bf16.mxu0 %v6016
    %6502 = vmatpush1.bf16.msra.mxu0 %v6015
    %6503 = vmatprep.subr.bf16.mxu0 %v6020
    %6504 = vmatpush1.bf16.msra.mxu0 %v6019
    %6505 = vmatprep.subr.bf16.mxu0 %v6024
    %6506 = vmatpush1.bf16.msra.mxu0 %v6023
    %6507 = vmatprep.mubr.bf16.mxu0 %v4910
    %6508 = vmatmul.mubr.bf16.gmra.mrb[0].mxu0 %v4909
    %v6509 = vpop.f32.mrb[0].mxu0
    %v6510 = vadd.f32 %v5178, %v6509
    %v6511 = vpop.f32.mrb[0].mxu0
    %v6512 = vadd.f32 %v5182, %v6511
    %v6513 = vpop.f32.mrb[0].mxu0
    %v6514 = vpop.f32.mrb[0].mxu0
    %6515 = vdwg.mxu0
    %6516 = vmatprep.subr.bf16.mxu0 %v6028
    %6517 = vmatpush1.bf16.msra.mxu0 %v6027
    %6518 = vmatprep.subr.bf16.mxu0 %v6032
    %6519 = vmatpush1.bf16.msra.mxu0 %v6031
    %6520 = vmatprep.subr.bf16.mxu0 %v6036
    %6521 = vmatpush1.bf16.msra.mxu0 %v6035
    %6522 = vmatprep.subr.bf16.mxu0 %v6040
    %6523 = vmatpush1.bf16.msra.mxu0 %v6039
    %6524 = vmatprep.subr.bf16.mxu0 %v6044
    %6525 = vmatpush1.bf16.msra.mxu0 %v6043
    %6526 = vmatprep.subr.bf16.mxu0 %v6048
    %6527 = vmatpush1.bf16.msra.mxu0 %v6047
    %6528 = vmatprep.subr.bf16.mxu0 %v6052
    %6529 = vmatpush1.bf16.msra.mxu0 %v6051
    %6530 = vmatprep.subr.bf16.mxu0 %v6056
    %6531 = vmatpush1.bf16.msra.mxu0 %v6055
    %6532 = vmatprep.subr.bf16.mxu0 %v6060
    %6533 = vmatpush1.bf16.msra.mxu0 %v6059
    %6534 = vmatprep.subr.bf16.mxu0 %v6064
    %6535 = vmatpush1.bf16.msra.mxu0 %v6063
    %6536 = vmatprep.subr.bf16.mxu0 %v6068
    %6537 = vmatpush1.bf16.msra.mxu0 %v6067
    %6538 = vmatprep.subr.bf16.mxu0 %v6072
    %6539 = vmatpush1.bf16.msra.mxu0 %v6071
    %6540 = vmatprep.subr.bf16.mxu0 %v6076
    %6541 = vmatpush1.bf16.msra.mxu0 %v6075
    %6542 = vmatprep.subr.bf16.mxu0 %v6080
    %6543 = vmatpush1.bf16.msra.mxu0 %v6079
    %6544 = vmatprep.subr.bf16.mxu0 %v6084
    %6545 = vmatpush1.bf16.msra.mxu0 %v6083
    %6546 = vmatprep.subr.bf16.mxu0 %v6088
    %6547 = vmatpush1.bf16.msra.mxu0 %v6087
    %6548 = vmatprep.mubr.bf16.mxu0 %v4912
    %6549 = vmatmul.mubr.bf16.gmra.mrb[0].mxu0 %v4911
    %v6550 = vpop.f32.mrb[0].mxu0
    %v6551 = vadd.f32 %v6510, %v6550
    %v6552 = vpop.f32.mrb[0].mxu0
    %v6553 = vadd.f32 %v6512, %v6552
    %v6554 = vpop.f32.mrb[0].mxu0
    %v6555 = vpop.f32.mrb[0].mxu0
    %6556 = vdwg.mxu0
    %6557 = vmatprep.subr.bf16.mxu0 %v6092
    %6558 = vmatpush1.bf16.msra.mxu0 %v6091
    %6559 = vmatprep.subr.bf16.mxu0 %v6096
    %6560 = vmatpush1.bf16.msra.mxu0 %v6095
    %6561 = vmatprep.subr.bf16.mxu0 %v6100
    %6562 = vmatpush1.bf16.msra.mxu0 %v6099
    %6563 = vmatprep.subr.bf16.mxu0 %v6104
    %6564 = vmatpush1.bf16.msra.mxu0 %v6103
    %6565 = vmatprep.subr.bf16.mxu0 %v6108
    %6566 = vmatpush1.bf16.msra.mxu0 %v6107
    %6567 = vmatprep.subr.bf16.mxu0 %v6112
    %6568 = vmatpush1.bf16.msra.mxu0 %v6111
    %6569 = vmatprep.subr.bf16.mxu0 %v6116
    %6570 = vmatpush1.bf16.msra.mxu0 %v6115
    %6571 = vmatprep.subr.bf16.mxu0 %v6120
    %6572 = vmatpush1.bf16.msra.mxu0 %v6119
    %6573 = vmatprep.subr.bf16.mxu0 %v6124
    %6574 = vmatpush1.bf16.msra.mxu0 %v6123
    %6575 = vmatprep.subr.bf16.mxu0 %v6128
    %6576 = vmatpush1.bf16.msra.mxu0 %v6127
    %6577 = vmatprep.subr.bf16.mxu0 %v6132
    %6578 = vmatpush1.bf16.msra.mxu0 %v6131
    %6579 = vmatprep.subr.bf16.mxu0 %v6136
    %6580 = vmatpush1.bf16.msra.mxu0 %v6135
    %6581 = vmatprep.subr.bf16.mxu0 %v6140
    %6582 = vmatpush1.bf16.msra.mxu0 %v6139
    %6583 = vmatprep.subr.bf16.mxu0 %v6144
    %6584 = vmatpush1.bf16.msra.mxu0 %v6143
    %6585 = vmatprep.subr.bf16.mxu0 %v6148
    %6586 = vmatpush1.bf16.msra.mxu0 %v6147
    %6587 = vmatprep.subr.bf16.mxu0 %v6152
    %6588 = vmatpush1.bf16.msra.mxu0 %v6151
    %6589 = vmatprep.mubr.bf16.mxu0 %v4914
    %6590 = vmatmul.mubr.bf16.gmra.mrb[0].mxu0 %v4913
    %v6591 = vpop.f32.mrb[0].mxu0
    %v6592 = vadd.f32 %v6551, %v6591
    %v6593 = vpop.f32.mrb[0].mxu0
    %v6594 = vadd.f32 %v6553, %v6593
    %v6595 = vpop.f32.mrb[0].mxu0
    %v6596 = vpop.f32.mrb[0].mxu0
    %6597 = vdwg.mxu0
    %6598 = vmatprep.subr.bf16.mxu0 %v6156
    %6599 = vmatpush1.bf16.msra.mxu0 %v6155
    %6600 = vmatprep.subr.bf16.mxu0 %v6160
    %6601 = vmatpush1.bf16.msra.mxu0 %v6159
    %6602 = vmatprep.subr.bf16.mxu0 %v6164
    %6603 = vmatpush1.bf16.msra.mxu0 %v6163
    %6604 = vmatprep.subr.bf16.mxu0 %v6168
    %6605 = vmatpush1.bf16.msra.mxu0 %v6167
    %6606 = vmatprep.subr.bf16.mxu0 %v6172
    %6607 = vmatpush1.bf16.msra.mxu0 %v6171
    %6608 = vmatprep.subr.bf16.mxu0 %v6176
    %6609 = vmatpush1.bf16.msra.mxu0 %v6175
    %6610 = vmatprep.subr.bf16.mxu0 %v6180
    %6611 = vmatpush1.bf16.msra.mxu0 %v6179
    %6612 = vmatprep.subr.bf16.mxu0 %v6184
    %6613 = vmatpush1.bf16.msra.mxu0 %v6183
    %6614 = vmatprep.subr.bf16.mxu0 %v6188
    %6615 = vmatpush1.bf16.msra.mxu0 %v6187
    %6616 = vmatprep.subr.bf16.mxu0 %v6192
    %6617 = vmatpush1.bf16.msra.mxu0 %v6191
    %6618 = vmatprep.subr.bf16.mxu0 %v6196
    %6619 = vmatpush1.bf16.msra.mxu0 %v6195
    %6620 = vmatprep.subr.bf16.mxu0 %v6200
    %6621 = vmatpush1.bf16.msra.mxu0 %v6199
    %6622 = vmatprep.subr.bf16.mxu0 %v6204
    %6623 = vmatpush1.bf16.msra.mxu0 %v6203
    %6624 = vmatprep.subr.bf16.mxu0 %v6208
    %6625 = vmatpush1.bf16.msra.mxu0 %v6207
    %6626 = vmatprep.subr.bf16.mxu0 %v6212
    %6627 = vmatpush1.bf16.msra.mxu0 %v6211
    %6628 = vmatprep.subr.bf16.mxu0 %v6216
    %6629 = vmatpush1.bf16.msra.mxu0 %v6215
    %6630 = vmatprep.mubr.bf16.mxu0 %v4916
    %6631 = vmatmul.mubr.bf16.gmra.mrb[0].mxu0 %v4915
    %v6632 = vpop.f32.mrb[0].mxu0
    %v6633 = vadd.f32 %v6592, %v6632
    %v6634 = vpop.f32.mrb[0].mxu0
    %v6635 = vadd.f32 %v6594, %v6634
    %v6636 = vpop.f32.mrb[0].mxu0
    %v6637 = vpop.f32.mrb[0].mxu0
    %6638 = vdwg.mxu0
    %6639 = vmatprep.subr.bf16.mxu0 %v5966
    %6640 = vmatpush1.bf16.msra.mxu0 %v5965
    %6641 = vmatprep.subr.bf16.mxu0 %v5970
    %6642 = vmatpush1.bf16.msra.mxu0 %v5969
    %6643 = vmatprep.subr.bf16.mxu0 %v5974
    %6644 = vmatpush1.bf16.msra.mxu0 %v5973
    %6645 = vmatprep.subr.bf16.mxu0 %v5978
    %6646 = vmatpush1.bf16.msra.mxu0 %v5977
    %6647 = vmatprep.subr.bf16.mxu0 %v5982
    %6648 = vmatpush1.bf16.msra.mxu0 %v5981
    %6649 = vmatprep.subr.bf16.mxu0 %v5986
    %6650 = vmatpush1.bf16.msra.mxu0 %v5985
    %6651 = vmatprep.subr.bf16.mxu0 %v5990
    %6652 = vmatpush1.bf16.msra.mxu0 %v5989
    %6653 = vmatprep.subr.bf16.mxu0 %v5994
    %6654 = vmatpush1.bf16.msra.mxu0 %v5993
    %6655 = vmatprep.subr.bf16.mxu0 %v5998
    %6656 = vmatpush1.bf16.msra.mxu0 %v5997
    %6657 = vmatprep.subr.bf16.mxu0 %v6002
    %6658 = vmatpush1.bf16.msra.mxu0 %v6001
    %6659 = vmatprep.subr.bf16.mxu0 %v6006
    %6660 = vmatpush1.bf16.msra.mxu0 %v6005
    %6661 = vmatprep.subr.bf16.mxu0 %v6010
    %6662 = vmatpush1.bf16.msra.mxu0 %v6009
    %6663 = vmatprep.subr.bf16.mxu0 %v6014
    %6664 = vmatpush1.bf16.msra.mxu0 %v6013
    %6665 = vmatprep.subr.bf16.mxu0 %v6018
    %6666 = vmatpush1.bf16.msra.mxu0 %v6017
    %6667 = vmatprep.subr.bf16.mxu0 %v6022
    %6668 = vmatpush1.bf16.msra.mxu0 %v6021
    %6669 = vmatprep.subr.bf16.mxu0 %v6026
    %6670 = vmatpush1.bf16.msra.mxu0 %v6025
    %6671 = vmatprep.mubr.bf16.mxu0 %v4910
    %6672 = vmatmul.mubr.bf16.gmra.mrb[0].mxu0 %v4909
    %v6673 = vpop.f32.mrb[0].mxu0
    %v6674 = vadd.f32 %v5186, %v6673
    %v6675 = vpop.f32.mrb[0].mxu0
    %v6676 = vadd.f32 %v5190, %v6675
    %v6677 = vpop.f32.mrb[0].mxu0
    %v6678 = vpop.f32.mrb[0].mxu0
    %6679 = vdwg.mxu0
    %6680 = vmatprep.subr.bf16.mxu0 %v6030
    %6681 = vmatpush1.bf16.msra.mxu0 %v6029
    %6682 = vmatprep.subr.bf16.mxu0 %v6034
    %6683 = vmatpush1.bf16.msra.mxu0 %v6033
    %6684 = vmatprep.subr.bf16.mxu0 %v6038
    %6685 = vmatpush1.bf16.msra.mxu0 %v6037
    %6686 = vmatprep.subr.bf16.mxu0 %v6042
    %6687 = vmatpush1.bf16.msra.mxu0 %v6041
    %6688 = vmatprep.subr.bf16.mxu0 %v6046
    %6689 = vmatpush1.bf16.msra.mxu0 %v6045
    %6690 = vmatprep.subr.bf16.mxu0 %v6050
    %6691 = vmatpush1.bf16.msra.mxu0 %v6049
    %6692 = vmatprep.subr.bf16.mxu0 %v6054
    %6693 = vmatpush1.bf16.msra.mxu0 %v6053
    %6694 = vmatprep.subr.bf16.mxu0 %v6058
    %6695 = vmatpush1.bf16.msra.mxu0 %v6057
    %6696 = vmatprep.subr.bf16.mxu0 %v6062
    %6697 = vmatpush1.bf16.msra.mxu0 %v6061
    %6698 = vmatprep.subr.bf16.mxu0 %v6066
    %6699 = vmatpush1.bf16.msra.mxu0 %v6065
    %6700 = vmatprep.subr.bf16.mxu0 %v6070
    %6701 = vmatpush1.bf16.msra.mxu0 %v6069
    %6702 = vmatprep.subr.bf16.mxu0 %v6074
    %6703 = vmatpush1.bf16.msra.mxu0 %v6073
    %6704 = vmatprep.subr.bf16.mxu0 %v6078
    %6705 = vmatpush1.bf16.msra.mxu0 %v6077
    %6706 = vmatprep.subr.bf16.mxu0 %v6082
    %6707 = vmatpush1.bf16.msra.mxu0 %v6081
    %6708 = vmatprep.subr.bf16.mxu0 %v6086
    %6709 = vmatpush1.bf16.msra.mxu0 %v6085
    %6710 = vmatprep.subr.bf16.mxu0 %v6090
    %6711 = vmatpush1.bf16.msra.mxu0 %v6089
    %6712 = vmatprep.mubr.bf16.mxu0 %v4912
    %6713 = vmatmul.mubr.bf16.gmra.mrb[0].mxu0 %v4911
    %v6714 = vpop.f32.mrb[0].mxu0
    %v6715 = vadd.f32 %v6674, %v6714
    %v6716 = vpop.f32.mrb[0].mxu0
    %v6717 = vadd.f32 %v6676, %v6716
    %v6718 = vpop.f32.mrb[0].mxu0
    %v6719 = vpop.f32.mrb[0].mxu0
    %6720 = vdwg.mxu0
    %6721 = vmatprep.subr.bf16.mxu0 %v6094
    %6722 = vmatpush1.bf16.msra.mxu0 %v6093
    %6723 = vmatprep.subr.bf16.mxu0 %v6098
    %6724 = vmatpush1.bf16.msra.mxu0 %v6097
    %6725 = vmatprep.subr.bf16.mxu0 %v6102
    %6726 = vmatpush1.bf16.msra.mxu0 %v6101
    %6727 = vmatprep.subr.bf16.mxu0 %v6106
    %6728 = vmatpush1.bf16.msra.mxu0 %v6105
    %6729 = vmatprep.subr.bf16.mxu0 %v6110
    %6730 = vmatpush1.bf16.msra.mxu0 %v6109
    %6731 = vmatprep.subr.bf16.mxu0 %v6114
    %6732 = vmatpush1.bf16.msra.mxu0 %v6113
    %6733 = vmatprep.subr.bf16.mxu0 %v6118
    %6734 = vmatpush1.bf16.msra.mxu0 %v6117
    %6735 = vmatprep.subr.bf16.mxu0 %v6122
    %6736 = vmatpush1.bf16.msra.mxu0 %v6121
    %6737 = vmatprep.subr.bf16.mxu0 %v6126
    %6738 = vmatpush1.bf16.msra.mxu0 %v6125
    %6739 = vmatprep.subr.bf16.mxu0 %v6130
    %6740 = vmatpush1.bf16.msra.mxu0 %v6129
    %6741 = vmatprep.subr.bf16.mxu0 %v6134
    %6742 = vmatpush1.bf16.msra.mxu0 %v6133
    %6743 = vmatprep.subr.bf16.mxu0 %v6138
    %6744 = vmatpush1.bf16.msra.mxu0 %v6137
    %6745 = vmatprep.subr.bf16.mxu0 %v6142
    %6746 = vmatpush1.bf16.msra.mxu0 %v6141
    %6747 = vmatprep.subr.bf16.mxu0 %v6146
    %6748 = vmatpush1.bf16.msra.mxu0 %v6145
    %6749 = vmatprep.subr.bf16.mxu0 %v6150
    %6750 = vmatpush1.bf16.msra.mxu0 %v6149
    %6751 = vmatprep.subr.bf16.mxu0 %v6154
    %6752 = vmatpush1.bf16.msra.mxu0 %v6153
    %6753 = vmatprep.mubr.bf16.mxu0 %v4914
    %6754 = vmatmul.mubr.bf16.gmra.mrb[0].mxu0 %v4913
    %v6755 = vpop.f32.mrb[0].mxu0
    %v6756 = vadd.f32 %v6715, %v6755
    %v6757 = vpop.f32.mrb[0].mxu0
    %v6758 = vadd.f32 %v6717, %v6757
    %v6759 = vpop.f32.mrb[0].mxu0
    %v6760 = vpop.f32.mrb[0].mxu0
    %6761 = vdwg.mxu0
    %6762 = vmatprep.subr.bf16.mxu0 %v6158
    %6763 = vmatpush1.bf16.msra.mxu0 %v6157
    %6764 = vmatprep.subr.bf16.mxu0 %v6162
    %6765 = vmatpush1.bf16.msra.mxu0 %v6161
    %6766 = vmatprep.subr.bf16.mxu0 %v6166
    %6767 = vmatpush1.bf16.msra.mxu0 %v6165
    %6768 = vmatprep.subr.bf16.mxu0 %v6170
    %6769 = vmatpush1.bf16.msra.mxu0 %v6169
    %6770 = vmatprep.subr.bf16.mxu0 %v6174
    %6771 = vmatpush1.bf16.msra.mxu0 %v6173
    %6772 = vmatprep.subr.bf16.mxu0 %v6178
    %6773 = vmatpush1.bf16.msra.mxu0 %v6177
    %6774 = vmatprep.subr.bf16.mxu0 %v6182
    %6775 = vmatpush1.bf16.msra.mxu0 %v6181
    %6776 = vmatprep.subr.bf16.mxu0 %v6186
    %6777 = vmatpush1.bf16.msra.mxu0 %v6185
    %6778 = vmatprep.subr.bf16.mxu0 %v6190
    %6779 = vmatpush1.bf16.msra.mxu0 %v6189
    %6780 = vmatprep.subr.bf16.mxu0 %v6194
    %6781 = vmatpush1.bf16.msra.mxu0 %v6193
    %6782 = vmatprep.subr.bf16.mxu0 %v6198
    %6783 = vmatpush1.bf16.msra.mxu0 %v6197
    %6784 = vmatprep.subr.bf16.mxu0 %v6202
    %6785 = vmatpush1.bf16.msra.mxu0 %v6201
    %6786 = vmatprep.subr.bf16.mxu0 %v6206
    %6787 = vmatpush1.bf16.msra.mxu0 %v6205
    %6788 = vmatprep.subr.bf16.mxu0 %v6210
    %6789 = vmatpush1.bf16.msra.mxu0 %v6209
    %6790 = vmatprep.subr.bf16.mxu0 %v6214
    %6791 = vmatpush1.bf16.msra.mxu0 %v6213
    %6792 = vmatprep.subr.bf16.mxu0 %v6218
    %6793 = vmatpush1.bf16.msra.mxu0 %v6217
    %6794 = vmatprep.mubr.bf16.mxu0 %v4916
    %6795 = vmatmul.mubr.bf16.gmra.mrb[0].mxu0 %v4915
    %v6796 = vpop.f32.mrb[0].mxu0
    %v6797 = vadd.f32 %v6756, %v6796
    %v6798 = vpop.f32.mrb[0].mxu0
    %v6799 = vadd.f32 %v6758, %v6798
    %v6800 = vpop.f32.mrb[0].mxu0
    %v6801 = vpop.f32.mrb[0].mxu0
    %6802 = vdwg.mxu0
    %v6803 = vmax.f32 %v6633, 0.0
    %v6804 = vmax.f32 %v6635, 0.0
    %v6805 = vmax.f32 %v6797, 0.0
    %v6806 = vmax.f32 %v6799, 0.0
    %v6807 = vld [vmem:[#allocation14] sm:$0xf]
    %v6809 = vlaneseq
    %v6810 = vshrl.u32 %v6809, 7
    %v6811 = vsub.s32 0, %v6810
    %v6812 = vrot.slane %v6807, %v6811
    %v6813 = vlaneseq
    %v6814 = vshrl.u32 %v6813, 7
    %v6815 = vsub.s32 1, %v6814
    %v6816 = vrot.slane %v6807, %v6815
    %v6817 = vlaneseq
    %v6818 = vshrl.u32 %v6817, 7
    %v6819 = vsub.s32 2, %v6818
    %v6820 = vrot.slane %v6807, %v6819
    %v6821 = vlaneseq
    %v6822 = vshrl.u32 %v6821, 7
    %v6823 = vsub.s32 3, %v6822
    %v6824 = vrot.slane %v6807, %v6823
    %v6829 = vmul.f32 %v6803, %v6812
    %v6830 = vmul.f32 %v6804, %v6816
    %v6831 = vmul.f32 %v6805, %v6820
    %v6832 = vmul.f32 %v6806, %v6824
    %v6833 = vadd.f32 %v6829, %v6830
    %v6834 = vadd.f32 %v6833, %v6831
    %v6835 = vadd.f32 %v6834, %v6832
    %6836 = vadd.xlane.f32.xlu0 %v6835
    %v6837 = vpop.xlane.xlu0 %6836
    %v6838 = vld [vmem:[#allocation2] sm:$0x1]
    %v6840 = vlaneseq
    %v6841 = vshrl.u32 %v6840, 7
    %v6842 = vsub.s32 0, %v6841
    %v6843 = vrot.slane %v6838, %v6842
    %v6845 = vadd.f32 %v6837, %v6843
    %vm6846 = vcmask 7168
    %6847 = vst.msk [vmem:[%s9] sm:$0xff] %vm6846, %v6845
    // Predicated region
    $region70: #{tpu_custom_call.1} parent=1 // pred_check
      _
    $region71: #{tpu_custom_call.1} parent=1 // pred_check_branch
      %6849 = sbr.rel (0) target = $region73
    $region72: #{tpu_custom_call.1} parent=1 // pred_region
      _
    $region73: #{tpu_custom_call.1} parent=1 // pred_fallthru
      _
    // Predicated region
    $region74: #{tpu_custom_call.1} parent=1 // pred_check
      _
    $region75: #{tpu_custom_call.1} parent=1 // pred_check_branch
      %6851 = sbr.rel (0) target = $region77
    $region76: #{tpu_custom_call.1} parent=1 // pred_region
      _
    $region77: #{tpu_custom_call.1} parent=1 // pred_fallthru
      _
    %6852 = vsyncpa [#allocation4], 1
    %6853 = vsyncpa [#allocation6], 1
    %6854 = vsyncpa [#allocation9], 1
    %6855 = vsyncpa [#allocation12], 1
    %6856 = vsyncpa [#allocation15], 1

</llo_original>
